<compile_context>
chip_gen: v7x
topology: tpu7x:2x2x1
jax: 0.10.0
libtpu: 0.0.40
codegen_flags: <defaults>
</compile_context>

<pallas_src>
import jax
import jax.numpy as jnp
from jax.experimental import pallas as pl
from jax.experimental.pallas import tpu as pltpu

BN_EPS = 1e-5
MATMUL_DTYPE = jnp.float32   # flip to jnp.bfloat16 on v5e/v6e for ~2x GEMM operand
                             # traffic (loosen the check tolerance to ~2e-2)
BATCH_BLOCK = 1              # images per grid step; raise for small images / big batches


# ----------------------------------------------------------------------------
# Fused conv-as-GEMM kernel: per-tap slice -> dot -> accumulate, single store,
# BatchNorm sum / sum-of-squares side output.
# ----------------------------------------------------------------------------
def _make_layer_kernel(meta):
    G, Hp, Wp, Cin = meta["G"], meta["Hp"], meta["Wp"], meta["Cin"]
    Ho, Wo, Ctot = meta["Ho"], meta["Wo"], meta["Ctot"]
    taps = meta["taps"]              # [(plane, row_off, col_off), ...] pads folded in
    Bt = meta["Bt"]
    mm_dtype = meta["mm_dtype"]
    M = Ho * Wo

    def kernel(x_ref, b_ref, w_ref, y_ref, st_ref):
        bias = b_ref[...]                                   # (1, Ctot) f32
        s_acc = jnp.zeros((1, Ctot), jnp.float32)
        q_acc = jnp.zeros((1, Ctot), jnp.float32)
        for b in range(Bt):
            x = x_ref[b]                                    # (G, Hp, Wp, Cin)
            acc = jnp.zeros((M, Ctot), jnp.float32)
            for t, (g, r0, c0) in enumerate(taps):
                # contiguous window of the pre-padded plane; no in-kernel padding
                col = x[g, r0:r0 + Ho, c0:c0 + Wo, :]       # (Ho, Wo, Cin)
                col = col.reshape(M, Cin).astype(mm_dtype)
                acc = acc + jnp.dot(col, w_ref[t],
                                    preferred_element_type=jnp.float32)
            # BatchNorm batch statistics of the pre-bias conv output (no extra pass,
            # no cancellation against the bias).
            s_acc = s_acc + jnp.sum(acc, axis=0, keepdims=True)
            q_acc = q_acc + jnp.sum(acc * acc, axis=0, keepdims=True)
            y_ref[b] = (acc + bias).astype(y_ref.dtype)     # one full-block store
        st_ref[0] = jnp.concatenate([s_acc, q_acc], axis=0)  # (2, Ctot)

    return kernel


def _run_layer(xp, w_stack, bias, meta):
    """xp: (N, G, Hp, Wp, Cin) pre-padded input planes; w_stack: (T, Cin, Ctot)."""
    N = xp.shape[0]
    G, Hp, Wp, Cin = meta["G"], meta["Hp"], meta["Wp"], meta["Cin"]
    Ho, Wo, Ctot = meta["Ho"], meta["Wo"], meta["Ctot"]
    Bt = meta["Bt"]
    assert N % Bt == 0
    steps = N // Bt
    T = w_stack.shape[0]
    M = Ho * Wo

    kernel = _make_layer_kernel(meta)

    in_specs = [
        pl.BlockSpec((Bt, G, Hp, Wp, Cin), lambda n: (n, 0, 0, 0, 0)),
        pl.BlockSpec((1, Ctot), lambda n: (0, 0)),
        pl.BlockSpec((T, Cin, Ctot), lambda n: (0, 0, 0)),
    ]
    out_specs = (
        pl.BlockSpec((Bt, M, Ctot), lambda n: (n, 0, 0)),
        pl.BlockSpec((1, 2, Ctot), lambda n: (n, 0, 0)),
    )
    out_shape = (
        jax.ShapeDtypeStruct((N, M, Ctot), jnp.float32),
        jax.ShapeDtypeStruct((steps, 2, Ctot), jnp.float32),
    )

    # explicit VMEM budget: double-buffered input/output blocks + weights + slack
    blk_in = Bt * G * Hp * Wp * Cin * 4
    blk_out = Bt * M * Ctot * 4
    blk_w = T * Cin * Ctot * 4
    need = 2 * (blk_in + blk_out) + blk_w + (1 << 20)
    vmem_limit = int(min(64 * 2**20, max(32 * 2**20, 2 * need)))

    y, stats = pl.pallas_call(
        kernel,
        out_shape=out_shape,
        grid=(steps,),
        in_specs=in_specs,
        out_specs=out_specs,
        compiler_params=pltpu.CompilerParams(
            dimension_semantics=("parallel",),
            vmem_limit_bytes=vmem_limit),
    )(xp, bias.reshape(1, Ctot).astype(jnp.float32), w_stack)
    return y, stats


# ----------------------------------------------------------------------------
# Layer wrappers (layout transforms + previous-layer BN affine/ReLU fused into them)
# ----------------------------------------------------------------------------
def _pick_bt(N, batch_block):
    bt = max(1, int(batch_block))
    while N % bt:
        bt -= 1
    return bt


def _pad_offsets(taps, Ho, Wo, Hin, Win):
    dys = [dy for (_, dy, _) in taps]
    dxs = [dx for (_, _, dx) in taps]
    pt = max(0, -min(dys))
    pb = max(0, Ho - 1 + max(dys) - (Hin - 1))
    pleft = max(0, -min(dxs))
    pr = max(0, Wo - 1 + max(dxs) - (Win - 1))
    return pt, pb, pleft, pr


def conv2d_s2(x_nhwc, w_oihw, bias, affine, *, batch_block=BATCH_BLOCK,
              mm_dtype=MATMUL_DTYPE):
    """stride-2 Conv2d, padding (k-1)//2.  `affine` = (scale, shift) is the previous
    layer's BatchNorm affine + ReLU, folded into the wrapper layout transform.
    Returns (y[N, Ho*Wo, Cout], stats[steps, 2, Cout], (Ho, Wo))."""
    N, H, W, Cin = x_nhwc.shape
    Cout, Cin_w, k, _ = w_oihw.shape
    assert Cin_w == Cin and k % 2 == 1
    assert H % 2 == 0 and W % 2 == 0, "even spatial dims required (stride-2 S2D)"
    p = (k - 1) // 2
    H2, W2 = H // 2, W // 2
    Ho = (H + 2 * p - k) // 2 + 1
    Wo = (W + 2 * p - k) // 2 + 1

    # kernel taps -> (parity plane, row offset, col offset) + per-tap GEMM weights
    taps, w_list = [], []
    for i in range(k):
        gy = (i - p) % 2
        dy = (i - p - gy) // 2
        for j in range(k):
            gx = (j - p) % 2
            dx = (j - p - gx) // 2
            taps.append((gy * 2 + gx, dy, dx))
            w_list.append(jnp.transpose(w_oihw[:, :, i, j]))       # (Cin, Cout)
    pt, pb, pleft, pr = _pad_offsets(taps, Ho, Wo, H2, W2)
    taps = [(g, dy + pt, dx + pleft) for (g, dy, dx) in taps]
    w_stack = jnp.stack(w_list, axis=0).astype(mm_dtype)           # (k*k, Cin, Cout)

    # wrapper-side: prev BN affine + ReLU, space-to-depth parity planes, zero pad
    x = x_nhwc
    if affine is not None:
        scale, shift = affine
        x = jnp.maximum(x * scale + shift, 0.0)
    xp = x.reshape(N, H2, 2, W2, 2, Cin)
    xp = jnp.transpose(xp, (0, 2, 4, 1, 3, 5)).reshape(N, 4, H2, W2, Cin)
    xp = jnp.pad(xp, ((0, 0), (0, 0), (pt, pb), (pleft, pr), (0, 0)))

    meta = dict(G=4, Hp=H2 + pt + pb, Wp=W2 + pleft + pr, Cin=Cin,
                Ho=Ho, Wo=Wo, Ctot=Cout, taps=taps,
                Bt=_pick_bt(N, batch_block), mm_dtype=mm_dtype)
    y, stats = _run_layer(xp, w_stack, bias, meta)
    return y, stats, (Ho, Wo)


def conv_transpose2d_s2(x_nhwc, w_iohw, bias, affine, *, batch_block=BATCH_BLOCK,
                        mm_dtype=MATMUL_DTYPE):
    """stride-2 ConvTranspose2d, padding (k-1)//2, output_padding=1.  The 4 output
    parity planes are produced by ONE merged GEMM per tap (output width 4*Cout,
    packed as (ry, rx, co)).  Returns (y[N, H*W, 4*Cout], stats[steps, 2, 4*Cout])."""
    N, H, W, Cin = x_nhwc.shape
    Cin_w, Cout, k, _ = w_iohw.shape
    assert Cin_w == Cin and k % 2 == 1
    p = (k - 1) // 2
    assert (H - 1) * 2 - 2 * p + k + 1 == 2 * H, "parity decomposition assumes odd k"

    # merged taps: (dy, dx) -> (Cin, 4*Cout) weight, parity blocks ordered (ry, rx)
    tap_keys, tap_blocks = [], {}
    for ry in range(2):
        for rx in range(2):
            for ky in range(k):
                if (ry + p - ky) % 2:
                    continue
                dy = (ry + p - ky) // 2
                for kx in range(k):
                    if (rx + p - kx) % 2:
                        continue
                    dx = (rx + p - kx) // 2
                    key = (dy, dx)
                    if key not in tap_blocks:
                        tap_blocks[key] = {}
                        tap_keys.append(key)
                    tap_blocks[key][ry * 2 + rx] = w_iohw[:, :, ky, kx]   # (Cin, Cout)
    zeros = jnp.zeros((Cin, Cout), w_iohw.dtype)
    taps, w_list = [], []
    for (dy, dx) in tap_keys:
        taps.append((0, dy, dx))
        blocks = [tap_blocks[(dy, dx)].get(par, zeros) for par in range(4)]
        w_list.append(jnp.concatenate(blocks, axis=1))                 # (Cin, 4*Cout)
    pt, pb, pleft, pr = _pad_offsets(taps, H, W, H, W)
    taps = [(g, dy + pt, dx + pleft) for (g, dy, dx) in taps]
    w_stack = jnp.stack(w_list, axis=0).astype(mm_dtype)               # (T, Cin, 4*Cout)
    bias4 = jnp.tile(bias, 4)                                          # (4*Cout,) (ry,rx,co)

    # wrapper-side: prev BN affine + ReLU, zero pad, add parity-plane axis
    x = x_nhwc
    if affine is not None:
        scale, shift = affine
        x = jnp.maximum(x * scale + shift, 0.0)
    xp = jnp.pad(x, ((0, 0), (pt, pb), (pleft, pr), (0, 0)))[:, None]  # (N,1,Hp,Wp,Cin)

    meta = dict(G=1, Hp=H + pt + pb, Wp=W + pleft + pr, Cin=Cin,
                Ho=H, Wo=W, Ctot=4 * Cout, taps=taps,
                Bt=_pick_bt(N, batch_block), mm_dtype=mm_dtype)
    y, stats = _run_layer(xp, w_stack, bias4, meta)
    return y, stats


def _subpixel_to_nhwc(y_packed, Cout, H, W):
    """(N, H*W, 4*Cout) packed (ry, rx, co) -> NHWC (N, 2H, 2W, Cout)."""
    N = y_packed.shape[0]
    y = y_packed.reshape(N, H, W, 2, 2, Cout)
    y = jnp.transpose(y, (0, 1, 3, 2, 4, 5))
    return y.reshape(N, 2 * H, 2 * W, Cout)


def _bn_affine_from_stats(stats, bias, gamma, beta, count, eps=BN_EPS):
    """PyTorch training-mode BatchNorm forward (biased batch var) -> scale/shift.
    `stats` holds sums of the *pre-bias* conv output (variance is bias-invariant)."""
    tot = jnp.sum(stats, axis=0)                           # (2, parities*C)
    par = tot.shape[1] // gamma.shape[0]
    tot = tot.reshape(2, par, gamma.shape[0]).sum(axis=1)  # (2, C)
    mean0 = tot[0] / count
    var = jnp.maximum(tot[1] / count - mean0 * mean0, 0.0)
    scale = gamma * jax.lax.rsqrt(var + eps)
    shift = beta - (mean0 + bias) * scale
    return scale, shift
# TODO(synk): BatchNorm running-mean/var buffer updates (training-time side effect)
#             are not modeled; only the forward output is produced.


# ----------------------------------------------------------------------------
# Model: parameters + forward (mirrors ConvEncoderDecoder_with_stride)
# ----------------------------------------------------------------------------
def build_model(key, in_features, hidden_channels, kernel_sizes, aux_features=0):
    fwd = [in_features + aux_features] + list(hidden_channels)
    rev = list(hidden_channels[::-1]) + [in_features]
    nL = len(hidden_channels)
    keys = iter(jax.random.split(key, 8 * nL))
    enc, dec = [], []
    for n in range(nL):
        k = kernel_sizes[n]
        cin, cout = fwd[n], fwd[n + 1]
        layer = {
            "w": 0.1 * jax.random.normal(next(keys), (cout, cin, k, k), jnp.float32),
            "b": 0.01 * jax.random.normal(next(keys), (cout,), jnp.float32),
        }
        if n < nL - 1:
            layer["gamma"] = 1.0 + 0.1 * jax.random.normal(next(keys), (cout,), jnp.float32)
            layer["beta"] = 0.01 * jax.random.normal(next(keys), (cout,), jnp.float32)
        enc.append(layer)

        cin_d, cout_d = rev[n], rev[n + 1]
        dlayer = {
            "w": 0.1 * jax.random.normal(next(keys), (cin_d, cout_d, k, k), jnp.float32),
            "b": 0.01 * jax.random.normal(next(keys), (cout_d,), jnp.float32),
        }
        if n < nL - 1:
            dlayer["gamma"] = 1.0 + 0.1 * jax.random.normal(next(keys), (cout_d,), jnp.float32)
            dlayer["beta"] = 0.01 * jax.random.normal(next(keys), (cout_d,), jnp.float32)
        dec.append(dlayer)
    return {"enc": enc, "dec": dec}


def forward(params, x_nchw, *, batch_block=BATCH_BLOCK):
    x = jnp.transpose(x_nchw, (0, 2, 3, 1)).astype(jnp.float32)   # NHWC between layers
    N = x.shape[0]
    affine = None            # previous layer's BN affine + ReLU, fused into next prep
    for layer in params["enc"]:
        Cout = layer["b"].shape[0]
        y, stats, (Ho, Wo) = conv2d_s2(x, layer["w"], layer["b"], affine,
                                       batch_block=batch_block)
        x = y.reshape(N, Ho, Wo, Cout)                            # free reshape
        if "gamma" in layer:
            affine = _bn_affine_from_stats(stats, layer["b"], layer["gamma"],
                                           layer["beta"], N * Ho * Wo)
        else:
            affine = None
    for layer in params["dec"]:
        H, W = x.shape[1], x.shape[2]
        Cout = layer["b"].shape[0]
        y, stats = conv_transpose2d_s2(x, layer["w"], layer["b"], affine,
                                       batch_block=batch_block)
        x = _subpixel_to_nhwc(y, Cout, H, W)
        if "gamma" in layer:
            affine = _bn_affine_from_stats(stats, layer["b"], layer["gamma"],
                                           layer["beta"], N * 4 * H * W)
        else:
            affine = None
    return jnp.transpose(x, (0, 3, 1, 2))                         # NHWC -> NCHW


# ----------------------------------------------------------------------------
# Pure-JAX reference (lax convs) for the correctness check
# ----------------------------------------------------------------------------
def _ref_conv(x, w_oihw, b, stride, padding):
    rhs = jnp.transpose(w_oihw, (2, 3, 1, 0))  # HWIO
    y = jax.lax.conv_general_dilated(
        x, rhs, (stride, stride), [(padding, padding)] * 2,
        dimension_numbers=("NHWC", "HWIO", "NHWC"))
    return y + b


def _ref_convt(x, w_iohw, b, stride, padding, op):
    k = w_iohw.shape[2]
    rhs = jnp.transpose(jnp.flip(w_iohw, (2, 3)), (2, 3, 0, 1))  # HWIO (I=Cin, O=Cout)
    y = jax.lax.conv_general_dilated(
        x, rhs, (1, 1), [(k - 1 - padding, k - 1 - padding + op)] * 2,
        lhs_dilation=(stride, stride),
        dimension_numbers=("NHWC", "HWIO", "NHWC"))
    return y + b


def _ref_bn_relu(x, gamma, beta, eps=BN_EPS):
    mean = jnp.mean(x, axis=(0, 1, 2))
    var = jnp.mean((x - mean) ** 2, axis=(0, 1, 2))
    return jnp.maximum((x - mean) / jnp.sqrt(var + eps) * gamma + beta, 0.0)


def ref_forward(params, x_nchw):
    x = jnp.transpose(x_nchw, (0, 2, 3, 1)).astype(jnp.float32)
    for layer in params["enc"]:
        k = layer["w"].shape[2]
        x = _ref_conv(x, layer["w"], layer["b"], 2, (k - 1) // 2)
        if "gamma" in layer:
            x = _ref_bn_relu(x, layer["gamma"], layer["beta"])
    for layer in params["dec"]:
        k = layer["w"].shape[2]
        x = _ref_convt(x, layer["w"], layer["b"], 2, (k - 1) // 2, 1)
        if "gamma" in layer:
            x = _ref_bn_relu(x, layer["gamma"], layer["beta"])
    return jnp.transpose(x, (0, 3, 1, 2))


# ----------------------------------------------------------------------------
if __name__ == "__main__":
    key = jax.random.PRNGKey(0)
    pkey, xkey = jax.random.split(key)

    in_features, hidden_channels, kernel_sizes = 4, [8, 16], [3, 3]
    params = build_model(pkey, in_features, hidden_channels, kernel_sizes)

    x = jax.random.normal(xkey, (2, in_features, 16, 16), jnp.float32)

    out = jax.block_until_ready(jax.jit(forward)(params, x))
    assert out.shape == x.shape, (out.shape, x.shape)

    ref = jax.block_until_ready(ref_forward(params, x))
    if not bool(jnp.allclose(out, ref, rtol=1e-3, atol=1e-3)):
        err = float(jnp.max(jnp.abs(out - ref)))
        raise AssertionError(f"Pallas result does not match JAX reference (max err {err})")

    print("KERNEL_OK")
</pallas_src>

<mosaic_0001>
module attributes {stable_mosaic.version = 11 : i64} {
  func.func @kernel(%arg0: i32, %arg1: memref<1x4x9x9x4xf32, #tpu.memory_space<vmem>>, %arg2: memref<1x8xf32, #tpu.memory_space<vmem>>, %arg3: memref<9x4x8xf32, #tpu.memory_space<vmem>>, %arg4: memref<1x64x8xf32, #tpu.memory_space<vmem>>, %arg5: memref<1x2x8xf32, #tpu.memory_space<vmem>>) attributes {dimension_semantics = [#tpu.dimension_semantics<parallel>], iteration_bounds = array<i64: 2>, scalar_prefetch = 0 : i64, scratch_operands = 0 : i64, tpu.core_type = #tpu.core_type<tc>, window_params = [{transform_indices = @transform_0, window_bounds = array<i64: 1, 4, 9, 9, 4>}, {pipeline_mode = #tpu.pipeline_mode<synchronous>, transform_indices = @transform_1, window_bounds = array<i64: 1, 8>}, {pipeline_mode = #tpu.pipeline_mode<synchronous>, transform_indices = @transform_2, window_bounds = array<i64: 9, 4, 8>}, {transform_indices = @transform_3, window_bounds = array<i64: 1, 64, 8>}, {transform_indices = @transform_4, window_bounds = array<i64: 1, 2, 8>}]} {
    %c0 = arith.constant 0 : index
    %c0_0 = arith.constant 0 : index
    %0 = vector.load %arg2[%c0, %c0_0] : memref<1x8xf32, #tpu.memory_space<vmem>>, vector<1x8xf32>
    %cst = arith.constant 0.000000e+00 : f32
    %1 = vector.broadcast %cst : f32 to vector<1x8xf32>
    %cst_1 = arith.constant 0.000000e+00 : f32
    %2 = vector.broadcast %cst_1 : f32 to vector<1x8xf32>
    %c0_2 = arith.constant 0 : index
    %c0_3 = arith.constant 0 : index
    %c0_4 = arith.constant 0 : index
    %c0_5 = arith.constant 0 : index
    %c0_6 = arith.constant 0 : index
    %3 = vector.load %arg1[%c0_2, %c0_3, %c0_4, %c0_5, %c0_6] : memref<1x4x9x9x4xf32, #tpu.memory_space<vmem>>, vector<1x4x9x9x4xf32>
    %4 = vector.shape_cast %3 : vector<1x4x9x9x4xf32> to vector<4x9x9x4xf32>
    %cst_7 = arith.constant 0.000000e+00 : f32
    %5 = vector.broadcast %cst_7 : f32 to vector<64x8xf32>
    %6 = vector.extract_strided_slice %4 {offsets = [3, 0, 0, 0], sizes = [1, 8, 8, 4], strides = [1, 1, 1, 1]} : vector<4x9x9x4xf32> to vector<1x8x8x4xf32>
    %7 = vector.shape_cast %6 : vector<1x8x8x4xf32> to vector<8x8x4xf32>
    %8 = vector.shape_cast %7 : vector<8x8x4xf32> to vector<64x4xf32>
    %c0_8 = arith.constant 0 : index
    %c0_9 = arith.constant 0 : index
    %c0_10 = arith.constant 0 : index
    %9 = vector.load %arg3[%c0_8, %c0_9, %c0_10] : memref<9x4x8xf32, #tpu.memory_space<vmem>>, vector<1x4x8xf32>
    %10 = vector.shape_cast %9 : vector<1x4x8xf32> to vector<4x8xf32>
    %cst_11 = arith.constant dense<0.000000e+00> : vector<64x8xf32>
    %11 = tpu.matmul %8, %10, %cst_11 {dimension_numbers = #tpu.dot_dimension_numbers<[1], [0], [0], [1], [0, 0, 1, 1], [], []>} : vector<64x4xf32>, vector<4x8xf32>, vector<64x8xf32> -> vector<64x8xf32>
    %12 = arith.addf %5, %11 : vector<64x8xf32>
    %13 = vector.extract_strided_slice %4 {offsets = [2, 0, 1, 0], sizes = [1, 8, 8, 4], strides = [1, 1, 1, 1]} : vector<4x9x9x4xf32> to vector<1x8x8x4xf32>
    %14 = vector.shape_cast %13 : vector<1x8x8x4xf32> to vector<8x8x4xf32>
    %15 = vector.shape_cast %14 : vector<8x8x4xf32> to vector<64x4xf32>
    %c1 = arith.constant 1 : index
    %c0_12 = arith.constant 0 : index
    %c0_13 = arith.constant 0 : index
    %16 = vector.load %arg3[%c1, %c0_12, %c0_13] : memref<9x4x8xf32, #tpu.memory_space<vmem>>, vector<1x4x8xf32>
    %17 = vector.shape_cast %16 : vector<1x4x8xf32> to vector<4x8xf32>
    %cst_14 = arith.constant dense<0.000000e+00> : vector<64x8xf32>
    %18 = tpu.matmul %15, %17, %cst_14 {dimension_numbers = #tpu.dot_dimension_numbers<[1], [0], [0], [1], [0, 0, 1, 1], [], []>} : vector<64x4xf32>, vector<4x8xf32>, vector<64x8xf32> -> vector<64x8xf32>
    %19 = arith.addf %12, %18 : vector<64x8xf32>
    %20 = vector.extract_strided_slice %4 {offsets = [3, 0, 1, 0], sizes = [1, 8, 8, 4], strides = [1, 1, 1, 1]} : vector<4x9x9x4xf32> to vector<1x8x8x4xf32>
    %21 = vector.shape_cast %20 : vector<1x8x8x4xf32> to vector<8x8x4xf32>
    %22 = vector.shape_cast %21 : vector<8x8x4xf32> to vector<64x4xf32>
    %c2 = arith.constant 2 : index
    %c0_15 = arith.constant 0 : index
    %c0_16 = arith.constant 0 : index
    %23 = vector.load %arg3[%c2, %c0_15, %c0_16] : memref<9x4x8xf32, #tpu.memory_space<vmem>>, vector<1x4x8xf32>
    %24 = vector.shape_cast %23 : vector<1x4x8xf32> to vector<4x8xf32>
    %cst_17 = arith.constant dense<0.000000e+00> : vector<64x8xf32>
    %25 = tpu.matmul %22, %24, %cst_17 {dimension_numbers = #tpu.dot_dimension_numbers<[1], [0], [0], [1], [0, 0, 1, 1], [], []>} : vector<64x4xf32>, vector<4x8xf32>, vector<64x8xf32> -> vector<64x8xf32>
    %26 = arith.addf %19, %25 : vector<64x8xf32>
    %27 = vector.extract_strided_slice %4 {offsets = [1, 1, 0, 0], sizes = [1, 8, 8, 4], strides = [1, 1, 1, 1]} : vector<4x9x9x4xf32> to vector<1x8x8x4xf32>
    %28 = vector.shape_cast %27 : vector<1x8x8x4xf32> to vector<8x8x4xf32>
    %29 = vector.shape_cast %28 : vector<8x8x4xf32> to vector<64x4xf32>
    %c3 = arith.constant 3 : index
    %c0_18 = arith.constant 0 : index
    %c0_19 = arith.constant 0 : index
    %30 = vector.load %arg3[%c3, %c0_18, %c0_19] : memref<9x4x8xf32, #tpu.memory_space<vmem>>, vector<1x4x8xf32>
    %31 = vector.shape_cast %30 : vector<1x4x8xf32> to vector<4x8xf32>
    %cst_20 = arith.constant dense<0.000000e+00> : vector<64x8xf32>
    %32 = tpu.matmul %29, %31, %cst_20 {dimension_numbers = #tpu.dot_dimension_numbers<[1], [0], [0], [1], [0, 0, 1, 1], [], []>} : vector<64x4xf32>, vector<4x8xf32>, vector<64x8xf32> -> vector<64x8xf32>
    %33 = arith.addf %26, %32 : vector<64x8xf32>
    %34 = vector.extract_strided_slice %4 {offsets = [0, 1, 1, 0], sizes = [1, 8, 8, 4], strides = [1, 1, 1, 1]} : vector<4x9x9x4xf32> to vector<1x8x8x4xf32>
    %35 = vector.shape_cast %34 : vector<1x8x8x4xf32> to vector<8x8x4xf32>
    %36 = vector.shape_cast %35 : vector<8x8x4xf32> to vector<64x4xf32>
    %c4 = arith.constant 4 : index
    %c0_21 = arith.constant 0 : index
    %c0_22 = arith.constant 0 : index
    %37 = vector.load %arg3[%c4, %c0_21, %c0_22] : memref<9x4x8xf32, #tpu.memory_space<vmem>>, vector<1x4x8xf32>
    %38 = vector.shape_cast %37 : vector<1x4x8xf32> to vector<4x8xf32>
    %cst_23 = arith.constant dense<0.000000e+00> : vector<64x8xf32>
    %39 = tpu.matmul %36, %38, %cst_23 {dimension_numbers = #tpu.dot_dimension_numbers<[1], [0], [0], [1], [0, 0, 1, 1], [], []>} : vector<64x4xf32>, vector<4x8xf32>, vector<64x8xf32> -> vector<64x8xf32>
    %40 = arith.addf %33, %39 : vector<64x8xf32>
    %41 = vector.extract_strided_slice %4 {offsets = [1, 1, 1, 0], sizes = [1, 8, 8, 4], strides = [1, 1, 1, 1]} : vector<4x9x9x4xf32> to vector<1x8x8x4xf32>
    %42 = vector.shape_cast %41 : vector<1x8x8x4xf32> to vector<8x8x4xf32>
    %43 = vector.shape_cast %42 : vector<8x8x4xf32> to vector<64x4xf32>
    %c5 = arith.constant 5 : index
    %c0_24 = arith.constant 0 : index
    %c0_25 = arith.constant 0 : index
    %44 = vector.load %arg3[%c5, %c0_24, %c0_25] : memref<9x4x8xf32, #tpu.memory_space<vmem>>, vector<1x4x8xf32>
    %45 = vector.shape_cast %44 : vector<1x4x8xf32> to vector<4x8xf32>
    %cst_26 = arith.constant dense<0.000000e+00> : vector<64x8xf32>
    %46 = tpu.matmul %43, %45, %cst_26 {dimension_numbers = #tpu.dot_dimension_numbers<[1], [0], [0], [1], [0, 0, 1, 1], [], []>} : vector<64x4xf32>, vector<4x8xf32>, vector<64x8xf32> -> vector<64x8xf32>
    %47 = arith.addf %40, %46 : vector<64x8xf32>
    %48 = vector.extract_strided_slice %4 {offsets = [3, 1, 0, 0], sizes = [1, 8, 8, 4], strides = [1, 1, 1, 1]} : vector<4x9x9x4xf32> to vector<1x8x8x4xf32>
    %49 = vector.shape_cast %48 : vector<1x8x8x4xf32> to vector<8x8x4xf32>
    %50 = vector.shape_cast %49 : vector<8x8x4xf32> to vector<64x4xf32>
    %c6 = arith.constant 6 : index
    %c0_27 = arith.constant 0 : index
    %c0_28 = arith.constant 0 : index
    %51 = vector.load %arg3[%c6, %c0_27, %c0_28] : memref<9x4x8xf32, #tpu.memory_space<vmem>>, vector<1x4x8xf32>
    %52 = vector.shape_cast %51 : vector<1x4x8xf32> to vector<4x8xf32>
    %cst_29 = arith.constant dense<0.000000e+00> : vector<64x8xf32>
    %53 = tpu.matmul %50, %52, %cst_29 {dimension_numbers = #tpu.dot_dimension_numbers<[1], [0], [0], [1], [0, 0, 1, 1], [], []>} : vector<64x4xf32>, vector<4x8xf32>, vector<64x8xf32> -> vector<64x8xf32>
    %54 = arith.addf %47, %53 : vector<64x8xf32>
    %55 = vector.extract_strided_slice %4 {offsets = [2, 1, 1, 0], sizes = [1, 8, 8, 4], strides = [1, 1, 1, 1]} : vector<4x9x9x4xf32> to vector<1x8x8x4xf32>
    %56 = vector.shape_cast %55 : vector<1x8x8x4xf32> to vector<8x8x4xf32>
    %57 = vector.shape_cast %56 : vector<8x8x4xf32> to vector<64x4xf32>
    %c7 = arith.constant 7 : index
    %c0_30 = arith.constant 0 : index
    %c0_31 = arith.constant 0 : index
    %58 = vector.load %arg3[%c7, %c0_30, %c0_31] : memref<9x4x8xf32, #tpu.memory_space<vmem>>, vector<1x4x8xf32>
    %59 = vector.shape_cast %58 : vector<1x4x8xf32> to vector<4x8xf32>
    %cst_32 = arith.constant dense<0.000000e+00> : vector<64x8xf32>
    %60 = tpu.matmul %57, %59, %cst_32 {dimension_numbers = #tpu.dot_dimension_numbers<[1], [0], [0], [1], [0, 0, 1, 1], [], []>} : vector<64x4xf32>, vector<4x8xf32>, vector<64x8xf32> -> vector<64x8xf32>
    %61 = arith.addf %54, %60 : vector<64x8xf32>
    %62 = vector.extract_strided_slice %4 {offsets = [3, 1, 1, 0], sizes = [1, 8, 8, 4], strides = [1, 1, 1, 1]} : vector<4x9x9x4xf32> to vector<1x8x8x4xf32>
    %63 = vector.shape_cast %62 : vector<1x8x8x4xf32> to vector<8x8x4xf32>
    %64 = vector.shape_cast %63 : vector<8x8x4xf32> to vector<64x4xf32>
    %c8 = arith.constant 8 : index
    %c0_33 = arith.constant 0 : index
    %c0_34 = arith.constant 0 : index
    %65 = vector.load %arg3[%c8, %c0_33, %c0_34] : memref<9x4x8xf32, #tpu.memory_space<vmem>>, vector<1x4x8xf32>
    %66 = vector.shape_cast %65 : vector<1x4x8xf32> to vector<4x8xf32>
    %cst_35 = arith.constant dense<0.000000e+00> : vector<64x8xf32>
    %67 = tpu.matmul %64, %66, %cst_35 {dimension_numbers = #tpu.dot_dimension_numbers<[1], [0], [0], [1], [0, 0, 1, 1], [], []>} : vector<64x4xf32>, vector<4x8xf32>, vector<64x8xf32> -> vector<64x8xf32>
    %68 = arith.addf %61, %67 : vector<64x8xf32>
    %cst_36 = arith.constant dense<0.000000e+00> : vector<8xf32>
    %69 = vector.multi_reduction <add>, %68, %cst_36 [0] : vector<64x8xf32> to vector<8xf32>
    %70 = vector.shape_cast %69 : vector<8xf32> to vector<1x8xf32>
    %71 = arith.addf %1, %70 : vector<1x8xf32>
    %72 = arith.mulf %68, %68 : vector<64x8xf32>
    %cst_37 = arith.constant dense<0.000000e+00> : vector<8xf32>
    %73 = vector.multi_reduction <add>, %72, %cst_37 [0] : vector<64x8xf32> to vector<8xf32>
    %74 = vector.shape_cast %73 : vector<8xf32> to vector<1x8xf32>
    %75 = arith.addf %2, %74 : vector<1x8xf32>
    %76 = vector.broadcast %0 : vector<1x8xf32> to vector<64x8xf32>
    %77 = arith.addf %68, %76 : vector<64x8xf32>
    %c0_38 = arith.constant 0 : index
    %c0_39 = arith.constant 0 : index
    %c0_40 = arith.constant 0 : index
    %78 = vector.load %arg4[%c0_38, %c0_39, %c0_40] : memref<1x64x8xf32, #tpu.memory_space<vmem>>, vector<1x64x8xf32>
    %79 = vector.shape_cast %78 : vector<1x64x8xf32> to vector<64x8xf32>
    %80 = vector.shape_cast %77 : vector<64x8xf32> to vector<1x64x8xf32>
    tpu.vector_store %arg4[%c0_38, %c0_39, %c0_40], %80 {strides = array<i32>} : memref<1x64x8xf32, #tpu.memory_space<vmem>>, vector<1x64x8xf32>,
    %81 = tpu.concatenate %71, %75 in 0 : vector<1x8xf32>, vector<1x8xf32> -> vector<2x8xf32>
    %c0_41 = arith.constant 0 : index
    %c0_42 = arith.constant 0 : index
    %c0_43 = arith.constant 0 : index
    %82 = vector.load %arg5[%c0_41, %c0_42, %c0_43] : memref<1x2x8xf32, #tpu.memory_space<vmem>>, vector<1x2x8xf32>
    %83 = vector.shape_cast %82 : vector<1x2x8xf32> to vector<2x8xf32>
    %84 = vector.shape_cast %81 : vector<2x8xf32> to vector<1x2x8xf32>
    tpu.vector_store %arg5[%c0_41, %c0_42, %c0_43], %84 {strides = array<i32>} : memref<1x2x8xf32, #tpu.memory_space<vmem>>, vector<1x2x8xf32>,
    return
  }
  func.func @transform_0(%arg0: i32) -> (i32, i32, i32, i32, i32) {
    %c0_i32 = arith.constant 0 : i32
    %c0_i32_0 = arith.constant 0 : i32
    %c0_i32_1 = arith.constant 0 : i32
    %c0_i32_2 = arith.constant 0 : i32
    %c0_i32_3 = arith.constant 0 : i32
    return %arg0, %c0_i32, %c0_i32_0, %c0_i32_1, %c0_i32_2 : i32, i32, i32, i32, i32
  }
  func.func @transform_1(%arg0: i32) -> (i32, i32) {
    %c0_i32 = arith.constant 0 : i32
    %c0_i32_0 = arith.constant 0 : i32
    %c0_i32_1 = arith.constant 0 : i32
    return %c0_i32, %c0_i32_0 : i32, i32
  }
  func.func @transform_2(%arg0: i32) -> (i32, i32, i32) {
    %c0_i32 = arith.constant 0 : i32
    %c0_i32_0 = arith.constant 0 : i32
    %c0_i32_1 = arith.constant 0 : i32
    %c0_i32_2 = arith.constant 0 : i32
    return %c0_i32, %c0_i32_0, %c0_i32_1 : i32, i32, i32
  }
  func.func @transform_3(%arg0: i32) -> (i32, i32, i32) {
    %c0_i32 = arith.constant 0 : i32
    %c0_i32_0 = arith.constant 0 : i32
    %c0_i32_1 = arith.constant 0 : i32
    return %arg0, %c0_i32, %c0_i32_0 : i32, i32, i32
  }
  func.func @transform_4(%arg0: i32) -> (i32, i32, i32) {
    %c0_i32 = arith.constant 0 : i32
    %c0_i32_0 = arith.constant 0 : i32
    %c0_i32_1 = arith.constant 0 : i32
    return %arg0, %c0_i32, %c0_i32_0 : i32, i32, i32
  }
}

module attributes {stable_mosaic.version = 11 : i64} {
  func.func @kernel(%arg0: i32, %arg1: memref<1x4x5x5x8xf32, #tpu.memory_space<vmem>>, %arg2: memref<1x16xf32, #tpu.memory_space<vmem>>, %arg3: memref<9x8x16xf32, #tpu.memory_space<vmem>>, %arg4: memref<1x16x16xf32, #tpu.memory_space<vmem>>, %arg5: memref<1x2x16xf32, #tpu.memory_space<vmem>>) attributes {dimension_semantics = [#tpu.dimension_semantics<parallel>], iteration_bounds = array<i64: 2>, scalar_prefetch = 0 : i64, scratch_operands = 0 : i64, tpu.core_type = #tpu.core_type<tc>, window_params = [{transform_indices = @transform_0, window_bounds = array<i64: 1, 4, 5, 5, 8>}, {pipeline_mode = #tpu.pipeline_mode<synchronous>, transform_indices = @transform_1, window_bounds = array<i64: 1, 16>}, {pipeline_mode = #tpu.pipeline_mode<synchronous>, transform_indices = @transform_2, window_bounds = array<i64: 9, 8, 16>}, {transform_indices = @transform_3, window_bounds = array<i64: 1, 16, 16>}, {transform_indices = @transform_4, window_bounds = array<i64: 1, 2, 16>}]} {
    %c0 = arith.constant 0 : index
    %c0_0 = arith.constant 0 : index
    %0 = vector.load %arg2[%c0, %c0_0] : memref<1x16xf32, #tpu.memory_space<vmem>>, vector<1x16xf32>
    %cst = arith.constant 0.000000e+00 : f32
    %1 = vector.broadcast %cst : f32 to vector<1x16xf32>
    %cst_1 = arith.constant 0.000000e+00 : f32
    %2 = vector.broadcast %cst_1 : f32 to vector<1x16xf32>
    %c0_2 = arith.constant 0 : index
    %c0_3 = arith.constant 0 : index
    %c0_4 = arith.constant 0 : index
    %c0_5 = arith.constant 0 : index
    %c0_6 = arith.constant 0 : index
    %3 = vector.load %arg1[%c0_2, %c0_3, %c0_4, %c0_5, %c0_6] : memref<1x4x5x5x8xf32, #tpu.memory_space<vmem>>, vector<1x4x5x5x8xf32>
    %4 = vector.shape_cast %3 : vector<1x4x5x5x8xf32> to vector<4x5x5x8xf32>
    %cst_7 = arith.constant 0.000000e+00 : f32
    %5 = vector.broadcast %cst_7 : f32 to vector<16x16xf32>
    %6 = vector.extract_strided_slice %4 {offsets = [3, 0, 0, 0], sizes = [1, 4, 4, 8], strides = [1, 1, 1, 1]} : vector<4x5x5x8xf32> to vector<1x4x4x8xf32>
    %7 = vector.shape_cast %6 : vector<1x4x4x8xf32> to vector<4x4x8xf32>
    %8 = vector.shape_cast %7 : vector<4x4x8xf32> to vector<16x8xf32>
    %c0_8 = arith.constant 0 : index
    %c0_9 = arith.constant 0 : index
    %c0_10 = arith.constant 0 : index
    %9 = vector.load %arg3[%c0_8, %c0_9, %c0_10] : memref<9x8x16xf32, #tpu.memory_space<vmem>>, vector<1x8x16xf32>
    %10 = vector.shape_cast %9 : vector<1x8x16xf32> to vector<8x16xf32>
    %cst_11 = arith.constant dense<0.000000e+00> : vector<16x16xf32>
    %11 = tpu.matmul %8, %10, %cst_11 {dimension_numbers = #tpu.dot_dimension_numbers<[1], [0], [0], [1], [0, 0, 1, 1], [], []>} : vector<16x8xf32>, vector<8x16xf32>, vector<16x16xf32> -> vector<16x16xf32>
    %12 = arith.addf %5, %11 : vector<16x16xf32>
    %13 = vector.extract_strided_slice %4 {offsets = [2, 0, 1, 0], sizes = [1, 4, 4, 8], strides = [1, 1, 1, 1]} : vector<4x5x5x8xf32> to vector<1x4x4x8xf32>
    %14 = vector.shape_cast %13 : vector<1x4x4x8xf32> to vector<4x4x8xf32>
    %15 = vector.shape_cast %14 : vector<4x4x8xf32> to vector<16x8xf32>
    %c1 = arith.constant 1 : index
    %c0_12 = arith.constant 0 : index
    %c0_13 = arith.constant 0 : index
    %16 = vector.load %arg3[%c1, %c0_12, %c0_13] : memref<9x8x16xf32, #tpu.memory_space<vmem>>, vector<1x8x16xf32>
    %17 = vector.shape_cast %16 : vector<1x8x16xf32> to vector<8x16xf32>
    %cst_14 = arith.constant dense<0.000000e+00> : vector<16x16xf32>
    %18 = tpu.matmul %15, %17, %cst_14 {dimension_numbers = #tpu.dot_dimension_numbers<[1], [0], [0], [1], [0, 0, 1, 1], [], []>} : vector<16x8xf32>, vector<8x16xf32>, vector<16x16xf32> -> vector<16x16xf32>
    %19 = arith.addf %12, %18 : vector<16x16xf32>
    %20 = vector.extract_strided_slice %4 {offsets = [3, 0, 1, 0], sizes = [1, 4, 4, 8], strides = [1, 1, 1, 1]} : vector<4x5x5x8xf32> to vector<1x4x4x8xf32>
    %21 = vector.shape_cast %20 : vector<1x4x4x8xf32> to vector<4x4x8xf32>
    %22 = vector.shape_cast %21 : vector<4x4x8xf32> to vector<16x8xf32>
    %c2 = arith.constant 2 : index
    %c0_15 = arith.constant 0 : index
    %c0_16 = arith.constant 0 : index
    %23 = vector.load %arg3[%c2, %c0_15, %c0_16] : memref<9x8x16xf32, #tpu.memory_space<vmem>>, vector<1x8x16xf32>
    %24 = vector.shape_cast %23 : vector<1x8x16xf32> to vector<8x16xf32>
    %cst_17 = arith.constant dense<0.000000e+00> : vector<16x16xf32>
    %25 = tpu.matmul %22, %24, %cst_17 {dimension_numbers = #tpu.dot_dimension_numbers<[1], [0], [0], [1], [0, 0, 1, 1], [], []>} : vector<16x8xf32>, vector<8x16xf32>, vector<16x16xf32> -> vector<16x16xf32>
    %26 = arith.addf %19, %25 : vector<16x16xf32>
    %27 = vector.extract_strided_slice %4 {offsets = [1, 1, 0, 0], sizes = [1, 4, 4, 8], strides = [1, 1, 1, 1]} : vector<4x5x5x8xf32> to vector<1x4x4x8xf32>
    %28 = vector.shape_cast %27 : vector<1x4x4x8xf32> to vector<4x4x8xf32>
    %29 = vector.shape_cast %28 : vector<4x4x8xf32> to vector<16x8xf32>
    %c3 = arith.constant 3 : index
    %c0_18 = arith.constant 0 : index
    %c0_19 = arith.constant 0 : index
    %30 = vector.load %arg3[%c3, %c0_18, %c0_19] : memref<9x8x16xf32, #tpu.memory_space<vmem>>, vector<1x8x16xf32>
    %31 = vector.shape_cast %30 : vector<1x8x16xf32> to vector<8x16xf32>
    %cst_20 = arith.constant dense<0.000000e+00> : vector<16x16xf32>
    %32 = tpu.matmul %29, %31, %cst_20 {dimension_numbers = #tpu.dot_dimension_numbers<[1], [0], [0], [1], [0, 0, 1, 1], [], []>} : vector<16x8xf32>, vector<8x16xf32>, vector<16x16xf32> -> vector<16x16xf32>
    %33 = arith.addf %26, %32 : vector<16x16xf32>
    %34 = vector.extract_strided_slice %4 {offsets = [0, 1, 1, 0], sizes = [1, 4, 4, 8], strides = [1, 1, 1, 1]} : vector<4x5x5x8xf32> to vector<1x4x4x8xf32>
    %35 = vector.shape_cast %34 : vector<1x4x4x8xf32> to vector<4x4x8xf32>
    %36 = vector.shape_cast %35 : vector<4x4x8xf32> to vector<16x8xf32>
    %c4 = arith.constant 4 : index
    %c0_21 = arith.constant 0 : index
    %c0_22 = arith.constant 0 : index
    %37 = vector.load %arg3[%c4, %c0_21, %c0_22] : memref<9x8x16xf32, #tpu.memory_space<vmem>>, vector<1x8x16xf32>
    %38 = vector.shape_cast %37 : vector<1x8x16xf32> to vector<8x16xf32>
    %cst_23 = arith.constant dense<0.000000e+00> : vector<16x16xf32>
    %39 = tpu.matmul %36, %38, %cst_23 {dimension_numbers = #tpu.dot_dimension_numbers<[1], [0], [0], [1], [0, 0, 1, 1], [], []>} : vector<16x8xf32>, vector<8x16xf32>, vector<16x16xf32> -> vector<16x16xf32>
    %40 = arith.addf %33, %39 : vector<16x16xf32>
    %41 = vector.extract_strided_slice %4 {offsets = [1, 1, 1, 0], sizes = [1, 4, 4, 8], strides = [1, 1, 1, 1]} : vector<4x5x5x8xf32> to vector<1x4x4x8xf32>
    %42 = vector.shape_cast %41 : vector<1x4x4x8xf32> to vector<4x4x8xf32>
    %43 = vector.shape_cast %42 : vector<4x4x8xf32> to vector<16x8xf32>
    %c5 = arith.constant 5 : index
    %c0_24 = arith.constant 0 : index
    %c0_25 = arith.constant 0 : index
    %44 = vector.load %arg3[%c5, %c0_24, %c0_25] : memref<9x8x16xf32, #tpu.memory_space<vmem>>, vector<1x8x16xf32>
    %45 = vector.shape_cast %44 : vector<1x8x16xf32> to vector<8x16xf32>
    %cst_26 = arith.constant dense<0.000000e+00> : vector<16x16xf32>
    %46 = tpu.matmul %43, %45, %cst_26 {dimension_numbers = #tpu.dot_dimension_numbers<[1], [0], [0], [1], [0, 0, 1, 1], [], []>} : vector<16x8xf32>, vector<8x16xf32>, vector<16x16xf32> -> vector<16x16xf32>
    %47 = arith.addf %40, %46 : vector<16x16xf32>
    %48 = vector.extract_strided_slice %4 {offsets = [3, 1, 0, 0], sizes = [1, 4, 4, 8], strides = [1, 1, 1, 1]} : vector<4x5x5x8xf32> to vector<1x4x4x8xf32>
    %49 = vector.shape_cast %48 : vector<1x4x4x8xf32> to vector<4x4x8xf32>
    %50 = vector.shape_cast %49 : vector<4x4x8xf32> to vector<16x8xf32>
    %c6 = arith.constant 6 : index
    %c0_27 = arith.constant 0 : index
    %c0_28 = arith.constant 0 : index
    %51 = vector.load %arg3[%c6, %c0_27, %c0_28] : memref<9x8x16xf32, #tpu.memory_space<vmem>>, vector<1x8x16xf32>
    %52 = vector.shape_cast %51 : vector<1x8x16xf32> to vector<8x16xf32>
    %cst_29 = arith.constant dense<0.000000e+00> : vector<16x16xf32>
    %53 = tpu.matmul %50, %52, %cst_29 {dimension_numbers = #tpu.dot_dimension_numbers<[1], [0], [0], [1], [0, 0, 1, 1], [], []>} : vector<16x8xf32>, vector<8x16xf32>, vector<16x16xf32> -> vector<16x16xf32>
    %54 = arith.addf %47, %53 : vector<16x16xf32>
    %55 = vector.extract_strided_slice %4 {offsets = [2, 1, 1, 0], sizes = [1, 4, 4, 8], strides = [1, 1, 1, 1]} : vector<4x5x5x8xf32> to vector<1x4x4x8xf32>
    %56 = vector.shape_cast %55 : vector<1x4x4x8xf32> to vector<4x4x8xf32>
    %57 = vector.shape_cast %56 : vector<4x4x8xf32> to vector<16x8xf32>
    %c7 = arith.constant 7 : index
    %c0_30 = arith.constant 0 : index
    %c0_31 = arith.constant 0 : index
    %58 = vector.load %arg3[%c7, %c0_30, %c0_31] : memref<9x8x16xf32, #tpu.memory_space<vmem>>, vector<1x8x16xf32>
    %59 = vector.shape_cast %58 : vector<1x8x16xf32> to vector<8x16xf32>
    %cst_32 = arith.constant dense<0.000000e+00> : vector<16x16xf32>
    %60 = tpu.matmul %57, %59, %cst_32 {dimension_numbers = #tpu.dot_dimension_numbers<[1], [0], [0], [1], [0, 0, 1, 1], [], []>} : vector<16x8xf32>, vector<8x16xf32>, vector<16x16xf32> -> vector<16x16xf32>
    %61 = arith.addf %54, %60 : vector<16x16xf32>
    %62 = vector.extract_strided_slice %4 {offsets = [3, 1, 1, 0], sizes = [1, 4, 4, 8], strides = [1, 1, 1, 1]} : vector<4x5x5x8xf32> to vector<1x4x4x8xf32>
    %63 = vector.shape_cast %62 : vector<1x4x4x8xf32> to vector<4x4x8xf32>
    %64 = vector.shape_cast %63 : vector<4x4x8xf32> to vector<16x8xf32>
    %c8 = arith.constant 8 : index
    %c0_33 = arith.constant 0 : index
    %c0_34 = arith.constant 0 : index
    %65 = vector.load %arg3[%c8, %c0_33, %c0_34] : memref<9x8x16xf32, #tpu.memory_space<vmem>>, vector<1x8x16xf32>
    %66 = vector.shape_cast %65 : vector<1x8x16xf32> to vector<8x16xf32>
    %cst_35 = arith.constant dense<0.000000e+00> : vector<16x16xf32>
    %67 = tpu.matmul %64, %66, %cst_35 {dimension_numbers = #tpu.dot_dimension_numbers<[1], [0], [0], [1], [0, 0, 1, 1], [], []>} : vector<16x8xf32>, vector<8x16xf32>, vector<16x16xf32> -> vector<16x16xf32>
    %68 = arith.addf %61, %67 : vector<16x16xf32>
    %cst_36 = arith.constant dense<0.000000e+00> : vector<16xf32>
    %69 = vector.multi_reduction <add>, %68, %cst_36 [0] : vector<16x16xf32> to vector<16xf32>
    %70 = vector.shape_cast %69 : vector<16xf32> to vector<1x16xf32>
    %71 = arith.addf %1, %70 : vector<1x16xf32>
    %72 = arith.mulf %68, %68 : vector<16x16xf32>
    %cst_37 = arith.constant dense<0.000000e+00> : vector<16xf32>
    %73 = vector.multi_reduction <add>, %72, %cst_37 [0] : vector<16x16xf32> to vector<16xf32>
    %74 = vector.shape_cast %73 : vector<16xf32> to vector<1x16xf32>
    %75 = arith.addf %2, %74 : vector<1x16xf32>
    %76 = vector.broadcast %0 : vector<1x16xf32> to vector<16x16xf32>
    %77 = arith.addf %68, %76 : vector<16x16xf32>
    %c0_38 = arith.constant 0 : index
    %c0_39 = arith.constant 0 : index
    %c0_40 = arith.constant 0 : index
    %78 = vector.load %arg4[%c0_38, %c0_39, %c0_40] : memref<1x16x16xf32, #tpu.memory_space<vmem>>, vector<1x16x16xf32>
    %79 = vector.shape_cast %78 : vector<1x16x16xf32> to vector<16x16xf32>
    %80 = vector.shape_cast %77 : vector<16x16xf32> to vector<1x16x16xf32>
    tpu.vector_store %arg4[%c0_38, %c0_39, %c0_40], %80 {strides = array<i32>} : memref<1x16x16xf32, #tpu.memory_space<vmem>>, vector<1x16x16xf32>,
    %81 = tpu.concatenate %71, %75 in 0 : vector<1x16xf32>, vector<1x16xf32> -> vector<2x16xf32>
    %c0_41 = arith.constant 0 : index
    %c0_42 = arith.constant 0 : index
    %c0_43 = arith.constant 0 : index
    %82 = vector.load %arg5[%c0_41, %c0_42, %c0_43] : memref<1x2x16xf32, #tpu.memory_space<vmem>>, vector<1x2x16xf32>
    %83 = vector.shape_cast %82 : vector<1x2x16xf32> to vector<2x16xf32>
    %84 = vector.shape_cast %81 : vector<2x16xf32> to vector<1x2x16xf32>
    tpu.vector_store %arg5[%c0_41, %c0_42, %c0_43], %84 {strides = array<i32>} : memref<1x2x16xf32, #tpu.memory_space<vmem>>, vector<1x2x16xf32>,
    return
  }
  func.func @transform_0(%arg0: i32) -> (i32, i32, i32, i32, i32) {
    %c0_i32 = arith.constant 0 : i32
    %c0_i32_0 = arith.constant 0 : i32
    %c0_i32_1 = arith.constant 0 : i32
    %c0_i32_2 = arith.constant 0 : i32
    %c0_i32_3 = arith.constant 0 : i32
    return %arg0, %c0_i32, %c0_i32_0, %c0_i32_1, %c0_i32_2 : i32, i32, i32, i32, i32
  }
  func.func @transform_1(%arg0: i32) -> (i32, i32) {
    %c0_i32 = arith.constant 0 : i32
    %c0_i32_0 = arith.constant 0 : i32
    %c0_i32_1 = arith.constant 0 : i32
    return %c0_i32, %c0_i32_0 : i32, i32
  }
  func.func @transform_2(%arg0: i32) -> (i32, i32, i32) {
    %c0_i32 = arith.constant 0 : i32
    %c0_i32_0 = arith.constant 0 : i32
    %c0_i32_1 = arith.constant 0 : i32
    %c0_i32_2 = arith.constant 0 : i32
    return %c0_i32, %c0_i32_0, %c0_i32_1 : i32, i32, i32
  }
  func.func @transform_3(%arg0: i32) -> (i32, i32, i32) {
    %c0_i32 = arith.constant 0 : i32
    %c0_i32_0 = arith.constant 0 : i32
    %c0_i32_1 = arith.constant 0 : i32
    return %arg0, %c0_i32, %c0_i32_0 : i32, i32, i32
  }
  func.func @transform_4(%arg0: i32) -> (i32, i32, i32) {
    %c0_i32 = arith.constant 0 : i32
    %c0_i32_0 = arith.constant 0 : i32
    %c0_i32_1 = arith.constant 0 : i32
    return %arg0, %c0_i32, %c0_i32_0 : i32, i32, i32
  }
}

module attributes {stable_mosaic.version = 11 : i64} {
  func.func @kernel(%arg0: i32, %arg1: memref<1x1x5x5x16xf32, #tpu.memory_space<vmem>>, %arg2: memref<1x32xf32, #tpu.memory_space<vmem>>, %arg3: memref<4x16x32xf32, #tpu.memory_space<vmem>>, %arg4: memref<1x16x32xf32, #tpu.memory_space<vmem>>, %arg5: memref<1x2x32xf32, #tpu.memory_space<vmem>>) attributes {dimension_semantics = [#tpu.dimension_semantics<parallel>], iteration_bounds = array<i64: 2>, scalar_prefetch = 0 : i64, scratch_operands = 0 : i64, tpu.core_type = #tpu.core_type<tc>, window_params = [{transform_indices = @transform_0, window_bounds = array<i64: 1, 1, 5, 5, 16>}, {pipeline_mode = #tpu.pipeline_mode<synchronous>, transform_indices = @transform_1, window_bounds = array<i64: 1, 32>}, {pipeline_mode = #tpu.pipeline_mode<synchronous>, transform_indices = @transform_2, window_bounds = array<i64: 4, 16, 32>}, {transform_indices = @transform_3, window_bounds = array<i64: 1, 16, 32>}, {transform_indices = @transform_4, window_bounds = array<i64: 1, 2, 32>}]} {
    %c0 = arith.constant 0 : index
    %c0_0 = arith.constant 0 : index
    %0 = vector.load %arg2[%c0, %c0_0] : memref<1x32xf32, #tpu.memory_space<vmem>>, vector<1x32xf32>
    %cst = arith.constant 0.000000e+00 : f32
    %1 = vector.broadcast %cst : f32 to vector<1x32xf32>
    %cst_1 = arith.constant 0.000000e+00 : f32
    %2 = vector.broadcast %cst_1 : f32 to vector<1x32xf32>
    %c0_2 = arith.constant 0 : index
    %c0_3 = arith.constant 0 : index
    %c0_4 = arith.constant 0 : index
    %c0_5 = arith.constant 0 : index
    %c0_6 = arith.constant 0 : index
    %3 = vector.load %arg1[%c0_2, %c0_3, %c0_4, %c0_5, %c0_6] : memref<1x1x5x5x16xf32, #tpu.memory_space<vmem>>, vector<1x1x5x5x16xf32>
    %4 = vector.shape_cast %3 : vector<1x1x5x5x16xf32> to vector<1x5x5x16xf32>
    %cst_7 = arith.constant 0.000000e+00 : f32
    %5 = vector.broadcast %cst_7 : f32 to vector<16x32xf32>
    %6 = vector.extract_strided_slice %4 {offsets = [0, 0, 0, 0], sizes = [1, 4, 4, 16], strides = [1, 1, 1, 1]} : vector<1x5x5x16xf32> to vector<1x4x4x16xf32>
    %7 = vector.shape_cast %6 : vector<1x4x4x16xf32> to vector<4x4x16xf32>
    %8 = vector.shape_cast %7 : vector<4x4x16xf32> to vector<16x16xf32>
    %c0_8 = arith.constant 0 : index
    %c0_9 = arith.constant 0 : index
    %c0_10 = arith.constant 0 : index
    %9 = vector.load %arg3[%c0_8, %c0_9, %c0_10] : memref<4x16x32xf32, #tpu.memory_space<vmem>>, vector<1x16x32xf32>
    %10 = vector.shape_cast %9 : vector<1x16x32xf32> to vector<16x32xf32>
    %cst_11 = arith.constant dense<0.000000e+00> : vector<16x32xf32>
    %11 = tpu.matmul %8, %10, %cst_11 {dimension_numbers = #tpu.dot_dimension_numbers<[1], [0], [0], [1], [0, 0, 1, 1], [], []>} : vector<16x16xf32>, vector<16x32xf32>, vector<16x32xf32> -> vector<16x32xf32>
    %12 = arith.addf %5, %11 : vector<16x32xf32>
    %13 = vector.extract_strided_slice %4 {offsets = [0, 0, 1, 0], sizes = [1, 4, 4, 16], strides = [1, 1, 1, 1]} : vector<1x5x5x16xf32> to vector<1x4x4x16xf32>
    %14 = vector.shape_cast %13 : vector<1x4x4x16xf32> to vector<4x4x16xf32>
    %15 = vector.shape_cast %14 : vector<4x4x16xf32> to vector<16x16xf32>
    %c1 = arith.constant 1 : index
    %c0_12 = arith.constant 0 : index
    %c0_13 = arith.constant 0 : index
    %16 = vector.load %arg3[%c1, %c0_12, %c0_13] : memref<4x16x32xf32, #tpu.memory_space<vmem>>, vector<1x16x32xf32>
    %17 = vector.shape_cast %16 : vector<1x16x32xf32> to vector<16x32xf32>
    %cst_14 = arith.constant dense<0.000000e+00> : vector<16x32xf32>
    %18 = tpu.matmul %15, %17, %cst_14 {dimension_numbers = #tpu.dot_dimension_numbers<[1], [0], [0], [1], [0, 0, 1, 1], [], []>} : vector<16x16xf32>, vector<16x32xf32>, vector<16x32xf32> -> vector<16x32xf32>
    %19 = arith.addf %12, %18 : vector<16x32xf32>
    %20 = vector.extract_strided_slice %4 {offsets = [0, 1, 0, 0], sizes = [1, 4, 4, 16], strides = [1, 1, 1, 1]} : vector<1x5x5x16xf32> to vector<1x4x4x16xf32>
    %21 = vector.shape_cast %20 : vector<1x4x4x16xf32> to vector<4x4x16xf32>
    %22 = vector.shape_cast %21 : vector<4x4x16xf32> to vector<16x16xf32>
    %c2 = arith.constant 2 : index
    %c0_15 = arith.constant 0 : index
    %c0_16 = arith.constant 0 : index
    %23 = vector.load %arg3[%c2, %c0_15, %c0_16] : memref<4x16x32xf32, #tpu.memory_space<vmem>>, vector<1x16x32xf32>
    %24 = vector.shape_cast %23 : vector<1x16x32xf32> to vector<16x32xf32>
    %cst_17 = arith.constant dense<0.000000e+00> : vector<16x32xf32>
    %25 = tpu.matmul %22, %24, %cst_17 {dimension_numbers = #tpu.dot_dimension_numbers<[1], [0], [0], [1], [0, 0, 1, 1], [], []>} : vector<16x16xf32>, vector<16x32xf32>, vector<16x32xf32> -> vector<16x32xf32>
    %26 = arith.addf %19, %25 : vector<16x32xf32>
    %27 = vector.extract_strided_slice %4 {offsets = [0, 1, 1, 0], sizes = [1, 4, 4, 16], strides = [1, 1, 1, 1]} : vector<1x5x5x16xf32> to vector<1x4x4x16xf32>
    %28 = vector.shape_cast %27 : vector<1x4x4x16xf32> to vector<4x4x16xf32>
    %29 = vector.shape_cast %28 : vector<4x4x16xf32> to vector<16x16xf32>
    %c3 = arith.constant 3 : index
    %c0_18 = arith.constant 0 : index
    %c0_19 = arith.constant 0 : index
    %30 = vector.load %arg3[%c3, %c0_18, %c0_19] : memref<4x16x32xf32, #tpu.memory_space<vmem>>, vector<1x16x32xf32>
    %31 = vector.shape_cast %30 : vector<1x16x32xf32> to vector<16x32xf32>
    %cst_20 = arith.constant dense<0.000000e+00> : vector<16x32xf32>
    %32 = tpu.matmul %29, %31, %cst_20 {dimension_numbers = #tpu.dot_dimension_numbers<[1], [0], [0], [1], [0, 0, 1, 1], [], []>} : vector<16x16xf32>, vector<16x32xf32>, vector<16x32xf32> -> vector<16x32xf32>
    %33 = arith.addf %26, %32 : vector<16x32xf32>
    %cst_21 = arith.constant dense<0.000000e+00> : vector<32xf32>
    %34 = vector.multi_reduction <add>, %33, %cst_21 [0] : vector<16x32xf32> to vector<32xf32>
    %35 = vector.shape_cast %34 : vector<32xf32> to vector<1x32xf32>
    %36 = arith.addf %1, %35 : vector<1x32xf32>
    %37 = arith.mulf %33, %33 : vector<16x32xf32>
    %cst_22 = arith.constant dense<0.000000e+00> : vector<32xf32>
    %38 = vector.multi_reduction <add>, %37, %cst_22 [0] : vector<16x32xf32> to vector<32xf32>
    %39 = vector.shape_cast %38 : vector<32xf32> to vector<1x32xf32>
    %40 = arith.addf %2, %39 : vector<1x32xf32>
    %41 = vector.broadcast %0 : vector<1x32xf32> to vector<16x32xf32>
    %42 = arith.addf %33, %41 : vector<16x32xf32>
    %c0_23 = arith.constant 0 : index
    %c0_24 = arith.constant 0 : index
    %c0_25 = arith.constant 0 : index
    %43 = vector.load %arg4[%c0_23, %c0_24, %c0_25] : memref<1x16x32xf32, #tpu.memory_space<vmem>>, vector<1x16x32xf32>
    %44 = vector.shape_cast %43 : vector<1x16x32xf32> to vector<16x32xf32>
    %45 = vector.shape_cast %42 : vector<16x32xf32> to vector<1x16x32xf32>
    tpu.vector_store %arg4[%c0_23, %c0_24, %c0_25], %45 {strides = array<i32>} : memref<1x16x32xf32, #tpu.memory_space<vmem>>, vector<1x16x32xf32>,
    %46 = tpu.concatenate %36, %40 in 0 : vector<1x32xf32>, vector<1x32xf32> -> vector<2x32xf32>
    %c0_26 = arith.constant 0 : index
    %c0_27 = arith.constant 0 : index
    %c0_28 = arith.constant 0 : index
    %47 = vector.load %arg5[%c0_26, %c0_27, %c0_28] : memref<1x2x32xf32, #tpu.memory_space<vmem>>, vector<1x2x32xf32>
    %48 = vector.shape_cast %47 : vector<1x2x32xf32> to vector<2x32xf32>
    %49 = vector.shape_cast %46 : vector<2x32xf32> to vector<1x2x32xf32>
    tpu.vector_store %arg5[%c0_26, %c0_27, %c0_28], %49 {strides = array<i32>} : memref<1x2x32xf32, #tpu.memory_space<vmem>>, vector<1x2x32xf32>,
    return
  }
  func.func @transform_0(%arg0: i32) -> (i32, i32, i32, i32, i32) {
    %c0_i32 = arith.constant 0 : i32
    %c0_i32_0 = arith.constant 0 : i32
    %c0_i32_1 = arith.constant 0 : i32
    %c0_i32_2 = arith.constant 0 : i32
    %c0_i32_3 = arith.constant 0 : i32
    return %arg0, %c0_i32, %c0_i32_0, %c0_i32_1, %c0_i32_2 : i32, i32, i32, i32, i32
  }
  func.func @transform_1(%arg0: i32) -> (i32, i32) {
    %c0_i32 = arith.constant 0 : i32
    %c0_i32_0 = arith.constant 0 : i32
    %c0_i32_1 = arith.constant 0 : i32
    return %c0_i32, %c0_i32_0 : i32, i32
  }
  func.func @transform_2(%arg0: i32) -> (i32, i32, i32) {
    %c0_i32 = arith.constant 0 : i32
    %c0_i32_0 = arith.constant 0 : i32
    %c0_i32_1 = arith.constant 0 : i32
    %c0_i32_2 = arith.constant 0 : i32
    return %c0_i32, %c0_i32_0, %c0_i32_1 : i32, i32, i32
  }
  func.func @transform_3(%arg0: i32) -> (i32, i32, i32) {
    %c0_i32 = arith.constant 0 : i32
    %c0_i32_0 = arith.constant 0 : i32
    %c0_i32_1 = arith.constant 0 : i32
    return %arg0, %c0_i32, %c0_i32_0 : i32, i32, i32
  }
  func.func @transform_4(%arg0: i32) -> (i32, i32, i32) {
    %c0_i32 = arith.constant 0 : i32
    %c0_i32_0 = arith.constant 0 : i32
    %c0_i32_1 = arith.constant 0 : i32
    return %arg0, %c0_i32, %c0_i32_0 : i32, i32, i32
  }
}

module attributes {stable_mosaic.version = 11 : i64} {
  func.func @kernel(%arg0: i32, %arg1: memref<1x1x9x9x8xf32, #tpu.memory_space<vmem>>, %arg2: memref<1x16xf32, #tpu.memory_space<vmem>>, %arg3: memref<4x8x16xf32, #tpu.memory_space<vmem>>, %arg4: memref<1x64x16xf32, #tpu.memory_space<vmem>>, %arg5: memref<1x2x16xf32, #tpu.memory_space<vmem>>) attributes {dimension_semantics = [#tpu.dimension_semantics<parallel>], iteration_bounds = array<i64: 2>, scalar_prefetch = 0 : i64, scratch_operands = 0 : i64, tpu.core_type = #tpu.core_type<tc>, window_params = [{transform_indices = @transform_0, window_bounds = array<i64: 1, 1, 9, 9, 8>}, {pipeline_mode = #tpu.pipeline_mode<synchronous>, transform_indices = @transform_1, window_bounds = array<i64: 1, 16>}, {pipeline_mode = #tpu.pipeline_mode<synchronous>, transform_indices = @transform_2, window_bounds = array<i64: 4, 8, 16>}, {transform_indices = @transform_3, window_bounds = array<i64: 1, 64, 16>}, {transform_indices = @transform_4, window_bounds = array<i64: 1, 2, 16>}]} {
    %c0 = arith.constant 0 : index
    %c0_0 = arith.constant 0 : index
    %0 = vector.load %arg2[%c0, %c0_0] : memref<1x16xf32, #tpu.memory_space<vmem>>, vector<1x16xf32>
    %cst = arith.constant 0.000000e+00 : f32
    %1 = vector.broadcast %cst : f32 to vector<1x16xf32>
    %cst_1 = arith.constant 0.000000e+00 : f32
    %2 = vector.broadcast %cst_1 : f32 to vector<1x16xf32>
    %c0_2 = arith.constant 0 : index
    %c0_3 = arith.constant 0 : index
    %c0_4 = arith.constant 0 : index
    %c0_5 = arith.constant 0 : index
    %c0_6 = arith.constant 0 : index
    %3 = vector.load %arg1[%c0_2, %c0_3, %c0_4, %c0_5, %c0_6] : memref<1x1x9x9x8xf32, #tpu.memory_space<vmem>>, vector<1x1x9x9x8xf32>
    %4 = vector.shape_cast %3 : vector<1x1x9x9x8xf32> to vector<1x9x9x8xf32>
    %cst_7 = arith.constant 0.000000e+00 : f32
    %5 = vector.broadcast %cst_7 : f32 to vector<64x16xf32>
    %6 = vector.extract_strided_slice %4 {offsets = [0, 0, 0, 0], sizes = [1, 8, 8, 8], strides = [1, 1, 1, 1]} : vector<1x9x9x8xf32> to vector<1x8x8x8xf32>
    %7 = vector.shape_cast %6 : vector<1x8x8x8xf32> to vector<8x8x8xf32>
    %8 = vector.shape_cast %7 : vector<8x8x8xf32> to vector<64x8xf32>
    %c0_8 = arith.constant 0 : index
    %c0_9 = arith.constant 0 : index
    %c0_10 = arith.constant 0 : index
    %9 = vector.load %arg3[%c0_8, %c0_9, %c0_10] : memref<4x8x16xf32, #tpu.memory_space<vmem>>, vector<1x8x16xf32>
    %10 = vector.shape_cast %9 : vector<1x8x16xf32> to vector<8x16xf32>
    %cst_11 = arith.constant dense<0.000000e+00> : vector<64x16xf32>
    %11 = tpu.matmul %8, %10, %cst_11 {dimension_numbers = #tpu.dot_dimension_numbers<[1], [0], [0], [1], [0, 0, 1, 1], [], []>} : vector<64x8xf32>, vector<8x16xf32>, vector<64x16xf32> -> vector<64x16xf32>
    %12 = arith.addf %5, %11 : vector<64x16xf32>
    %13 = vector.extract_strided_slice %4 {offsets = [0, 0, 1, 0], sizes = [1, 8, 8, 8], strides = [1, 1, 1, 1]} : vector<1x9x9x8xf32> to vector<1x8x8x8xf32>
    %14 = vector.shape_cast %13 : vector<1x8x8x8xf32> to vector<8x8x8xf32>
    %15 = vector.shape_cast %14 : vector<8x8x8xf32> to vector<64x8xf32>
    %c1 = arith.constant 1 : index
    %c0_12 = arith.constant 0 : index
    %c0_13 = arith.constant 0 : index
    %16 = vector.load %arg3[%c1, %c0_12, %c0_13] : memref<4x8x16xf32, #tpu.memory_space<vmem>>, vector<1x8x16xf32>
    %17 = vector.shape_cast %16 : vector<1x8x16xf32> to vector<8x16xf32>
    %cst_14 = arith.constant dense<0.000000e+00> : vector<64x16xf32>
    %18 = tpu.matmul %15, %17, %cst_14 {dimension_numbers = #tpu.dot_dimension_numbers<[1], [0], [0], [1], [0, 0, 1, 1], [], []>} : vector<64x8xf32>, vector<8x16xf32>, vector<64x16xf32> -> vector<64x16xf32>
    %19 = arith.addf %12, %18 : vector<64x16xf32>
    %20 = vector.extract_strided_slice %4 {offsets = [0, 1, 0, 0], sizes = [1, 8, 8, 8], strides = [1, 1, 1, 1]} : vector<1x9x9x8xf32> to vector<1x8x8x8xf32>
    %21 = vector.shape_cast %20 : vector<1x8x8x8xf32> to vector<8x8x8xf32>
    %22 = vector.shape_cast %21 : vector<8x8x8xf32> to vector<64x8xf32>
    %c2 = arith.constant 2 : index
    %c0_15 = arith.constant 0 : index
    %c0_16 = arith.constant 0 : index
    %23 = vector.load %arg3[%c2, %c0_15, %c0_16] : memref<4x8x16xf32, #tpu.memory_space<vmem>>, vector<1x8x16xf32>
    %24 = vector.shape_cast %23 : vector<1x8x16xf32> to vector<8x16xf32>
    %cst_17 = arith.constant dense<0.000000e+00> : vector<64x16xf32>
    %25 = tpu.matmul %22, %24, %cst_17 {dimension_numbers = #tpu.dot_dimension_numbers<[1], [0], [0], [1], [0, 0, 1, 1], [], []>} : vector<64x8xf32>, vector<8x16xf32>, vector<64x16xf32> -> vector<64x16xf32>
    %26 = arith.addf %19, %25 : vector<64x16xf32>
    %27 = vector.extract_strided_slice %4 {offsets = [0, 1, 1, 0], sizes = [1, 8, 8, 8], strides = [1, 1, 1, 1]} : vector<1x9x9x8xf32> to vector<1x8x8x8xf32>
    %28 = vector.shape_cast %27 : vector<1x8x8x8xf32> to vector<8x8x8xf32>
    %29 = vector.shape_cast %28 : vector<8x8x8xf32> to vector<64x8xf32>
    %c3 = arith.constant 3 : index
    %c0_18 = arith.constant 0 : index
    %c0_19 = arith.constant 0 : index
    %30 = vector.load %arg3[%c3, %c0_18, %c0_19] : memref<4x8x16xf32, #tpu.memory_space<vmem>>, vector<1x8x16xf32>
    %31 = vector.shape_cast %30 : vector<1x8x16xf32> to vector<8x16xf32>
    %cst_20 = arith.constant dense<0.000000e+00> : vector<64x16xf32>
    %32 = tpu.matmul %29, %31, %cst_20 {dimension_numbers = #tpu.dot_dimension_numbers<[1], [0], [0], [1], [0, 0, 1, 1], [], []>} : vector<64x8xf32>, vector<8x16xf32>, vector<64x16xf32> -> vector<64x16xf32>
    %33 = arith.addf %26, %32 : vector<64x16xf32>
    %cst_21 = arith.constant dense<0.000000e+00> : vector<16xf32>
    %34 = vector.multi_reduction <add>, %33, %cst_21 [0] : vector<64x16xf32> to vector<16xf32>
    %35 = vector.shape_cast %34 : vector<16xf32> to vector<1x16xf32>
    %36 = arith.addf %1, %35 : vector<1x16xf32>
    %37 = arith.mulf %33, %33 : vector<64x16xf32>
    %cst_22 = arith.constant dense<0.000000e+00> : vector<16xf32>
    %38 = vector.multi_reduction <add>, %37, %cst_22 [0] : vector<64x16xf32> to vector<16xf32>
    %39 = vector.shape_cast %38 : vector<16xf32> to vector<1x16xf32>
    %40 = arith.addf %2, %39 : vector<1x16xf32>
    %41 = vector.broadcast %0 : vector<1x16xf32> to vector<64x16xf32>
    %42 = arith.addf %33, %41 : vector<64x16xf32>
    %c0_23 = arith.constant 0 : index
    %c0_24 = arith.constant 0 : index
    %c0_25 = arith.constant 0 : index
    %43 = vector.load %arg4[%c0_23, %c0_24, %c0_25] : memref<1x64x16xf32, #tpu.memory_space<vmem>>, vector<1x64x16xf32>
    %44 = vector.shape_cast %43 : vector<1x64x16xf32> to vector<64x16xf32>
    %45 = vector.shape_cast %42 : vector<64x16xf32> to vector<1x64x16xf32>
    tpu.vector_store %arg4[%c0_23, %c0_24, %c0_25], %45 {strides = array<i32>} : memref<1x64x16xf32, #tpu.memory_space<vmem>>, vector<1x64x16xf32>,
    %46 = tpu.concatenate %36, %40 in 0 : vector<1x16xf32>, vector<1x16xf32> -> vector<2x16xf32>
    %c0_26 = arith.constant 0 : index
    %c0_27 = arith.constant 0 : index
    %c0_28 = arith.constant 0 : index
    %47 = vector.load %arg5[%c0_26, %c0_27, %c0_28] : memref<1x2x16xf32, #tpu.memory_space<vmem>>, vector<1x2x16xf32>
    %48 = vector.shape_cast %47 : vector<1x2x16xf32> to vector<2x16xf32>
    %49 = vector.shape_cast %46 : vector<2x16xf32> to vector<1x2x16xf32>
    tpu.vector_store %arg5[%c0_26, %c0_27, %c0_28], %49 {strides = array<i32>} : memref<1x2x16xf32, #tpu.memory_space<vmem>>, vector<1x2x16xf32>,
    return
  }
  func.func @transform_0(%arg0: i32) -> (i32, i32, i32, i32, i32) {
    %c0_i32 = arith.constant 0 : i32
    %c0_i32_0 = arith.constant 0 : i32
    %c0_i32_1 = arith.constant 0 : i32
    %c0_i32_2 = arith.constant 0 : i32
    %c0_i32_3 = arith.constant 0 : i32
    return %arg0, %c0_i32, %c0_i32_0, %c0_i32_1, %c0_i32_2 : i32, i32, i32, i32, i32
  }
  func.func @transform_1(%arg0: i32) -> (i32, i32) {
    %c0_i32 = arith.constant 0 : i32
    %c0_i32_0 = arith.constant 0 : i32
    %c0_i32_1 = arith.constant 0 : i32
    return %c0_i32, %c0_i32_0 : i32, i32
  }
  func.func @transform_2(%arg0: i32) -> (i32, i32, i32) {
    %c0_i32 = arith.constant 0 : i32
    %c0_i32_0 = arith.constant 0 : i32
    %c0_i32_1 = arith.constant 0 : i32
    %c0_i32_2 = arith.constant 0 : i32
    return %c0_i32, %c0_i32_0, %c0_i32_1 : i32, i32, i32
  }
  func.func @transform_3(%arg0: i32) -> (i32, i32, i32) {
    %c0_i32 = arith.constant 0 : i32
    %c0_i32_0 = arith.constant 0 : i32
    %c0_i32_1 = arith.constant 0 : i32
    return %arg0, %c0_i32, %c0_i32_0 : i32, i32, i32
  }
  func.func @transform_4(%arg0: i32) -> (i32, i32, i32) {
    %c0_i32 = arith.constant 0 : i32
    %c0_i32_0 = arith.constant 0 : i32
    %c0_i32_1 = arith.constant 0 : i32
    return %arg0, %c0_i32, %c0_i32_0 : i32, i32, i32
  }
}

</mosaic_0001>

<llo_original>
// kernel: tile.13
$region0: #{tile.13}
  #allocation0 [shape = 's32[1]{0}', space=sflag, size = 0x4, scoped, tag = 'scoped memory for tile.13']
  %s0 = inlined_call_operand.vmem [shape: f32[8], index: 0, kind: input, shape index: {}]
  %s1 = inlined_call_operand.vmem [shape: f32[4,8], index: 1, kind: output, shape index: {}]
  // Predicated region
  $region2: #{tile.13} parent=0 // pred_check
    _
  $region3: #{tile.13} parent=0 // pred_check_branch
    %3 = sbr.rel (0) target = $region5
  $region4: #{tile.13} parent=0 // pred_region
    _
  $region5: #{tile.13} parent=0 // pred_fallthru
    _
  %v4 = vld [vmem:[%s0] ss:$0 sm:$0xff]
  %5 = vst [vmem:[%s1] sm:$0xf] %v4

// kernel: tile.14
$region0: #{tile.14}
  %s0 = inlined_call_operand.vmem [shape: f32[4,8], index: 0, kind: input, shape index: {}]
  %s1 = inlined_call_operand.vmem [shape: f32[1,32], index: 1, kind: output, shape index: {}]
  $region1: #{tile.14} parent=0
    #allocation0 [shape = 'u8[4096]{0}', space=vmem, size = 0x1000, scoped, tag = 'scoped mem for output reshape']
    #allocation1 [shape = 'u8[4096]{0}', space=vmem, size = 0x1000, scoped, tag = 'scoped mem for input reshape']
    %s3 = sshllo.u32 0, 4
    %v4 = vld [vmem:[%s0] sm:%s3]
    %5 = vst [vmem:[#allocation1] sm:%s3] %v4
    %v6 = vld [vmem:[#allocation1] sm:$0x1]
    %vm7 = vcmask 64512
    %8 = vst.msk [vmem:[#allocation0] sm:$0x1] %vm7, %v6
    %s9 = scalar_lea.vmem [#allocation1], 3
    %v10 = vld [vmem:[%s9] sm:$0x1]
    %11 = vrot.lane.b32.xlu0 %v10, 24
    %v12 = vpop.permute.xlu0 %11
    %vm13 = vcmask 261312
    %14 = vst.msk [vmem:[#allocation0] sm:$0x1] %vm13, %v12
    %s15 = scalar_lea.vmem [#allocation1], 2
    %v16 = vld [vmem:[%s15] sm:$0x1]
    %17 = vrot.lane.b32.xlu0 %v16, 16
    %v18 = vpop.permute.xlu0 %17
    %vm19 = vcmask 195712
    %20 = vst.msk [vmem:[#allocation0] sm:$0x1] %vm19, %v18
    %s21 = scalar_lea.vmem [#allocation1], 1
    %v22 = vld [vmem:[%s21] sm:$0x1]
    %23 = vrot.lane.b32.xlu0 %v22, 8
    %v24 = vpop.permute.xlu0 %23
    %vm25 = vcmask 130112
    %26 = vst.msk [vmem:[#allocation0] sm:$0x1] %vm25, %v24
    %s28 = sshllo.u32 0, 1
    %v30 = vld [vmem:[#allocation0] sm:%s28]
    %s31 = sshllo.u32 0, 1
    %32 = vst [vmem:[%s1] sm:%s31] %v30

// kernel: tile.18
$region0: #{tile.18}
  #allocation0 [shape = 's32[1]{0}', space=sflag, size = 0x4, scoped, tag = 'scoped memory for tile.18']
  %s0 = inlined_call_operand.vmem [shape: f32[4], index: 0, kind: input, shape index: {}]
  %s1 = inlined_call_operand.vmem [shape: f32[4,4], index: 1, kind: output, shape index: {}]
  // Predicated region
  $region2: #{tile.18} parent=0 // pred_check
    _
  $region3: #{tile.18} parent=0 // pred_check_branch
    %3 = sbr.rel (0) target = $region5
  $region4: #{tile.18} parent=0 // pred_region
    _
  $region5: #{tile.18} parent=0 // pred_fallthru
    _
  %v4 = vld [vmem:[%s0] ss:$0 sm:$0xff]
  %5 = vst [vmem:[%s1] sm:$0xf] %v4

// kernel: tile.19
$region0: #{tile.19}
  %s0 = inlined_call_operand.vmem [shape: f32[4,4], index: 0, kind: input, shape index: {}]
  %s1 = inlined_call_operand.vmem [shape: f32[1,16], index: 1, kind: output, shape index: {}]
  $region1: #{tile.19} parent=0
    #allocation0 [shape = 'u8[4096]{0}', space=vmem, size = 0x1000, scoped, tag = 'scoped mem for output reshape']
    #allocation1 [shape = 'u8[4096]{0}', space=vmem, size = 0x1000, scoped, tag = 'scoped mem for input reshape']
    %s3 = sshllo.u32 0, 4
    %v4 = vld [vmem:[%s0] sm:%s3]
    %5 = vst [vmem:[#allocation1] sm:%s3] %v4
    %v6 = vld [vmem:[#allocation1] sm:$0x1]
    %vm7 = vcmask 31744
    %8 = vst.msk [vmem:[#allocation0] sm:$0x1] %vm7, %v6
    %s9 = scalar_lea.vmem [#allocation1], 3
    %v10 = vld [vmem:[%s9] sm:$0x1]
    %11 = vrot.lane.b32.xlu0 %v10, 12
    %v12 = vpop.permute.xlu0 %11
    %vm13 = vcmask 130144
    %14 = vst.msk [vmem:[#allocation0] sm:$0x1] %vm13, %v12
    %s15 = scalar_lea.vmem [#allocation1], 2
    %v16 = vld [vmem:[%s15] sm:$0x1]
    %17 = vrot.lane.b32.xlu0 %v16, 8
    %v18 = vpop.permute.xlu0 %17
    %vm19 = vcmask 97344
    %20 = vst.msk [vmem:[#allocation0] sm:$0x1] %vm19, %v18
    %s21 = scalar_lea.vmem [#allocation1], 1
    %v22 = vld [vmem:[%s21] sm:$0x1]
    %23 = vrot.lane.b32.xlu0 %v22, 4
    %v24 = vpop.permute.xlu0 %23
    %vm25 = vcmask 64544
    %26 = vst.msk [vmem:[#allocation0] sm:$0x1] %vm25, %v24
    %s28 = sshllo.u32 0, 1
    %v30 = vld [vmem:[#allocation0] sm:%s28]
    %s31 = sshllo.u32 0, 1
    %32 = vst [vmem:[%s1] sm:%s31] %v30

// kernel: forward.6
$region0: #{forward.6}
  #allocation0 [shape = 'u32[]', space=smem, size = 0x4, offset = 0x4, fixed_abs, tag = 'smem constant byte address 0x4 - core index']
  #allocation1 [shape = 'u32[144,128]{1,0:T(1,128)}', space=vmem, size = 0x12000, scoped, tag = 'internal scratch']
  %s0 = inlined_call_operand.vmem [shape: f32[2,1,5,5,16], index: 0, kind: input, shape index: {}]
  %s1 = inlined_call_operand.vmem [shape: f32[1,32], index: 1, kind: input, shape index: {}]
  %s2 = inlined_call_operand.vmem [shape: f32[4,16,32], index: 2, kind: input, shape index: {}]
  %s3 = inlined_call_operand.vmem [shape: f32[2,16,32], index: 3, kind: output, shape index: {0}]
  %s4 = inlined_call_operand.vmem [shape: f32[2,2,32], index: 4, kind: output, shape index: {1}]
  %5 = xla_tuple %s3, %s4
  %s6 = sld [smem:[#allocation0]]
  $region53: #{forward.6} parent=0
    _
  %s8 = ssub.s32 1, %s6
  %s9 = scalar_select 0, %s8, %s6
  loop: start=0, step=1, limit=4
  $region2: #{forward.6} parent=0 // loop_pre_header
    _
  $region3: #{forward.6} parent=0 // loop_header
    %s11 = sphi 0, %s15
    %p12 = scmp.ge.s32.totalorder %s11, 4
    %s21 = sphi 0, %s23
    %s24 = sphi 0, %s21
    %s25 = sphi 0, %s24
    %s41 = sphi 0, %s25
    %s45 = sphi 0, %s45
    %s47 = sphi 0, %s45
    %s48 = sphi 0, %s47
    %s62 = sphi 0, %s48
    %s66 = sphi 0, %s66
    %s68 = sphi 0, %s66
    %s69 = sphi 0, %s68
    %s83 = sphi 0, %s69
    %s89 = sphi 0, %s91
    %s92 = sphi 0, %s89
    %s93 = sphi 0, %s92
    %s109 = sphi 0, %s93
    %s115 = sphi 0, %s117
    %s118 = sphi 0, %s115
    %s119 = sphi 0, %s118
    %s135 = sphi 0, %s119
  $region4: #{forward.6} parent=0 // loop_header_branch
    %14 = sbr.rel (%p12) target = $region8
  $region5: #{forward.6} parent=0 // loop_body
    %s16 = ssub.s32 %s11, 1
    %s17 = ssub.s32 %s11, 2
    %s18 = sadd.s32 %s11, 1
    %s19 = ssub.s32 %s11, %s18
    %p20 = scmp.eq.s32.totalorder %s19, 0
    %s22 = sadd.s32 %s21, 1
    %s23 = scalar_select %p20, %s21, %s22
    %p26 = pneg %p20
    %p27 = scmp.eq.s32.totalorder %s11, 1
    %p28 = por %p26, %p27
    %p29 = scmp.ne.s32.totalorder %s21, %s24
    %p30 = scmp.eq.s32.totalorder %s11, 0
    %p31 = por %p29, %p30
    %p32 = scmp.ne.s32.totalorder %s21, %s24
    %p33 = scmp.eq.s32.totalorder %s16, 1
    %p34 = por %p32, %p33
    %p35 = scmp.ne.s32.totalorder %s24, %s25
    %p36 = scmp.eq.s32.totalorder %s16, 0
    %p37 = por %p35, %p36
    %p38 = scmp.ne.s32.totalorder %s24, %s25
    %p39 = scmp.eq.s32.totalorder %s17, 1
    %p40 = por %p38, %p39
    %p42 = scmp.ne.s32.totalorder %s25, %s41
    %p43 = scmp.eq.s32.totalorder %s17, 0
    %p44 = por %p42, %p43
    %s46 = sadd.s32 %s45, 1
    %p49 = scmp.eq.s32.totalorder %s11, 1
    %p50 = scmp.ne.s32.totalorder %s45, %s47
    %p51 = scmp.eq.s32.totalorder %s11, 0
    %p52 = por %p50, %p51
    %p53 = scmp.ne.s32.totalorder %s45, %s47
    %p54 = scmp.eq.s32.totalorder %s16, 1
    %p55 = por %p53, %p54
    %p56 = scmp.ne.s32.totalorder %s47, %s48
    %p57 = scmp.eq.s32.totalorder %s16, 0
    %p58 = por %p56, %p57
    %p59 = scmp.ne.s32.totalorder %s47, %s48
    %p60 = scmp.eq.s32.totalorder %s17, 1
    %p61 = por %p59, %p60
    %p63 = scmp.ne.s32.totalorder %s48, %s62
    %p64 = scmp.eq.s32.totalorder %s17, 0
    %p65 = por %p63, %p64
    %s67 = sadd.s32 %s66, 1
    %p70 = scmp.eq.s32.totalorder %s11, 1
    %p71 = scmp.ne.s32.totalorder %s66, %s68
    %p72 = scmp.eq.s32.totalorder %s11, 0
    %p73 = por %p71, %p72
    %p74 = scmp.ne.s32.totalorder %s66, %s68
    %p75 = scmp.eq.s32.totalorder %s16, 1
    %p76 = por %p74, %p75
    %p77 = scmp.ne.s32.totalorder %s68, %s69
    %p78 = scmp.eq.s32.totalorder %s16, 0
    %p79 = por %p77, %p78
    %p80 = scmp.ne.s32.totalorder %s68, %s69
    %p81 = scmp.eq.s32.totalorder %s17, 1
    %p82 = por %p80, %p81
    %p84 = scmp.ne.s32.totalorder %s69, %s83
    %p85 = scmp.eq.s32.totalorder %s17, 0
    %p86 = por %p84, %p85
    %s87 = ssub.s32 %s11, %s18
    %p88 = scmp.eq.s32.totalorder %s87, 0
    %s90 = sadd.s32 %s89, 1
    %s91 = scalar_select %p88, %s89, %s90
    %p94 = pneg %p88
    %p95 = scmp.eq.s32.totalorder %s11, 1
    %p96 = por %p94, %p95
    %p97 = scmp.ne.s32.totalorder %s89, %s92
    %p98 = scmp.eq.s32.totalorder %s11, 0
    %p99 = por %p97, %p98
    %p100 = scmp.ne.s32.totalorder %s89, %s92
    %p101 = scmp.eq.s32.totalorder %s16, 1
    %p102 = por %p100, %p101
    %p103 = scmp.ne.s32.totalorder %s92, %s93
    %p104 = scmp.eq.s32.totalorder %s16, 0
    %p105 = por %p103, %p104
    %p106 = scmp.ne.s32.totalorder %s92, %s93
    %p107 = scmp.eq.s32.totalorder %s17, 1
    %p108 = por %p106, %p107
    %p110 = scmp.ne.s32.totalorder %s93, %s109
    %p111 = scmp.eq.s32.totalorder %s17, 0
    %p112 = por %p110, %p111
    %s113 = ssub.s32 %s11, %s18
    %p114 = scmp.eq.s32.totalorder %s113, 0
    %s116 = sadd.s32 %s115, 1
    %s117 = scalar_select %p114, %s115, %s116
    %p120 = pneg %p114
    %p121 = scmp.eq.s32.totalorder %s11, 1
    %p122 = por %p120, %p121
    %p123 = scmp.ne.s32.totalorder %s115, %s118
    %p124 = scmp.eq.s32.totalorder %s11, 0
    %p125 = por %p123, %p124
    %p126 = scmp.ne.s32.totalorder %s115, %s118
    %p127 = scmp.eq.s32.totalorder %s16, 1
    %p128 = por %p126, %p127
    %p129 = scmp.ne.s32.totalorder %s118, %s119
    %p130 = scmp.eq.s32.totalorder %s16, 0
    %p131 = por %p129, %p130
    %p132 = scmp.ne.s32.totalorder %s118, %s119
    %p133 = scmp.eq.s32.totalorder %s17, 1
    %p134 = por %p132, %p133
    %p136 = scmp.ne.s32.totalorder %s119, %s135
    %p137 = scmp.eq.s32.totalorder %s17, 0
    %p138 = por %p136, %p137
    %p139 = scmp.le.s32.totalorder 1, %s11
    %p140 = scmp.lt.s32.totalorder %s11, 3
    %p141 = pnand %p139, %p140
    %p142 = pneg %p141
    // Predicated region
    $region9: #{forward.6} parent=5 // pred_check
      _
    $region10: #{forward.6} parent=5 // pred_check_branch
      %144 = sbr.rel (%p141) target = $region12
    $region11: #{forward.6} parent=5 // pred_region
      %s145 = ssub.s32 %s11, 1
      // Predicated region
      $region13: #{forward.6} parent=11 // pred_check
        %p146 = pneg %p58
      $region14: #{forward.6} parent=11 // pred_check_branch
        %148 = sbr.rel (%p146) target = $region16
      $region15: #{forward.6} parent=11 // pred_region
        _
      $region16: #{forward.6} parent=11 // pred_fallthru
        _
      // Predicated region
      $region17: #{forward.6} parent=11 // pred_check
        %p149 = pneg %p79
      $region18: #{forward.6} parent=11 // pred_check_branch
        %151 = sbr.rel (%p149) target = $region20
      $region19: #{forward.6} parent=11 // pred_region
        _
      $region20: #{forward.6} parent=11 // pred_fallthru
        _
    $region12: #{forward.6} parent=5 // pred_fallthru
      _
    %p152 = scmp.lt.s32.totalorder %s11, 2
    // Predicated region
    $region21: #{forward.6} parent=5 // pred_check
      %p153 = pneg %p152
    $region22: #{forward.6} parent=5 // pred_check_branch
      %155 = sbr.rel (%p153) target = $region24
    $region23: #{forward.6} parent=5 // pred_region
      // Predicated region
      $region25: #{forward.6} parent=23 // pred_check
        %p156 = pneg %p31
      $region26: #{forward.6} parent=23 // pred_check_branch
        %158 = sbr.rel (%p156) target = $region28
      $region27: #{forward.6} parent=23 // pred_region
        %p159 = scmp.lt.s32.totalorder %s11, 1
        %s160 = scalar_select %p159, %s11, 1
        %s161 = smul.addr %s160, 5
        %s162 = smul.addr %s161, 8
        %s163 = scalar_lea.vmem %s0, %s162
      $region28: #{forward.6} parent=23 // pred_fallthru
        _
    $region24: #{forward.6} parent=5 // pred_fallthru
      _
    %p164 = scmp.le.s32.totalorder 1, %s11
    %p165 = scmp.lt.s32.totalorder %s11, 3
    %p166 = pnand %p164, %p165
    %p167 = pneg %p166
    // Predicated region
    $region29: #{forward.6} parent=5 // pred_check
      _
    $region30: #{forward.6} parent=5 // pred_check_branch
      %169 = sbr.rel (%p166) target = $region32
    $region31: #{forward.6} parent=5 // pred_region
      %s170 = ssub.s32 %s11, 1
      %p171 = scmp.lt.s32.totalorder %s16, 1
      %s172 = scalar_select %p171, %s16, 1
      %s173 = smul.addr %s172, 5
      %s174 = smul.addr %s173, 8
      %s175 = scalar_lea.vmem %s0, %s174
      %p176 = pneg %p37
      %p177 = pneg %p34
      %p178 = pneg %p58
      %p179 = pneg %p55
      %p180 = pneg %p79
      %p181 = pneg %p76
      %p182 = pneg %p105
      %p183 = pneg %p102
      %p184 = scmp.lt.s32.totalorder %s16, 1
      %s185 = scalar_select %p184, %s16, 1
      %s186 = smul.addr %s185, 2
      %s187 = smul.addr %s186, 8
      %s188 = scalar_lea.vmem %s3, %s187
      %p189 = pneg %p131
      %p190 = pneg %p128
      %p191 = scmp.lt.s32.totalorder %s16, 1
      %s192 = scalar_select %p191, %s16, 1
      %s193 = smul.addr %s192, 2
      %s194 = scalar_lea.vmem %s4, %s193
      %p195 = scmp.lt.s32.totalorder %s16, 1
      %s196 = scalar_select %p195, %s16, 1
      %s197 = smul.addr %s196, 5
      %s198 = smul.addr %s197, 8
      %s199 = scalar_lea.vmem %s0, %s198
      %p200 = scmp.lt.s32.totalorder %s16, 1
      %s201 = scalar_select %p200, %s16, 1
      %s202 = smul.addr %s201, 2
      %s203 = smul.addr %s202, 8
      %s204 = scalar_lea.vmem %s3, %s203
      %p205 = scmp.lt.s32.totalorder %s16, 1
      %s206 = scalar_select %p205, %s16, 1
      %s207 = smul.addr %s206, 2
      %s208 = scalar_lea.vmem %s4, %s207
      %v209 = vld [vmem:[%s1] sm:$0x1]
      %v210 = vld [vmem:[%s199] sm:$0x1f]
      %v211 = vld [vmem:[%s199 + $0x8] sm:$0x1f]
      %v212 = vld [vmem:[%s199 + $0x10] sm:$0x1f]
      %v213 = vld [vmem:[%s199 + $0x18] sm:$0x1f]
      %v214 = vld [vmem:[%s199 + $0x20] sm:$0x1f]
      %v215 = vld [vmem:[%s2] sm:$0xff]
      %v216 = vld [vmem:[%s2 + $0x8] sm:$0xff]
      %v221 = vcombine.high %v210, %v210
      %v222 = vcombine.high %v211, %v211
      %v223 = vcombine.high %v212, %v212
      %v224 = vcombine.high %v213, %v213
      %vm225 = vcmask 1042432
      %vm226 = vcmask 1046532
      %vm227 = vmor %vm225, %vm226
      %v228 = vrot.slane %v210, 5
      %v229 = vrot.slane %v228, 4
      %v230 = vrot.slane %v221, 5
      %v231 = vsel %vm227, %v229, %v230
      %v232 = vrot.slane %v211, 5
      %v233 = vrot.slane %v232, 4
      %v234 = vrot.slane %v222, 5
      %v235 = vsel %vm227, %v233, %v234
      %v236 = vrot.slane %v212, 5
      %v237 = vrot.slane %v236, 4
      %v238 = vrot.slane %v223, 5
      %v239 = vsel %vm227, %v237, %v238
      %v240 = vrot.slane %v213, 5
      %v241 = vrot.slane %v240, 4
      %v242 = vrot.slane %v224, 5
      %v243 = vsel %vm227, %v241, %v242
      %s244 = scalar_lea.vmem %s2, 16
      %v245 = vld [vmem:[%s244] sm:$0xff]
      %v246 = vld [vmem:[%s244 + $0x8] sm:$0xff]
      %v247 = vcombine.low %v231, %v235
      %v248 = vcombine.low %v239, %v243
      %vm249 = vcmask 130048
      %v250 = vsel %vm249, %v247, 0
      %v252 = vsel %vm249, %v248, 0
      %254 = vmatprep.subr.mxu0 0.0
      %255 = vmatpush1.msra.mxu0 %v245
      %256 = vmatprep.subr.mxu0 0.0
      %257 = vmatpush1.msra.mxu0 %v246
      %258 = vmatprep.subr.mxu0 0.0
      %259 = vmatpush1.msra.mxu0 0.0
      %260 = vmatprep.subr.mxu0 0.0
      %261 = vmatpush1.msra.mxu0 0.0
      %262 = vmatprep.subr.mxu0 0.0
      %263 = vmatpush1.msra.mxu0 0.0
      %264 = vmatprep.subr.mxu0 0.0
      %265 = vmatpush1.msra.mxu0 0.0
      %266 = vmatprep.subr.mxu0 0.0
      %267 = vmatpush1.msra.mxu0 0.0
      %268 = vmatprep.subr.mxu0 0.0
      %269 = vmatpush1.msra.mxu0 0.0
      %270 = vmatprep.subr.mxu0 0.0
      %271 = vmatpush1.msra.mxu0 0.0
      %272 = vmatprep.subr.mxu0 0.0
      %273 = vmatpush1.msra.mxu0 0.0
      %274 = vmatprep.subr.mxu0 0.0
      %275 = vmatpush1.msra.mxu0 0.0
      %276 = vmatprep.subr.mxu0 0.0
      %277 = vmatpush1.msra.mxu0 0.0
      %278 = vmatprep.subr.mxu0 0.0
      %279 = vmatpush1.msra.mxu0 0.0
      %280 = vmatprep.subr.mxu0 0.0
      %281 = vmatpush1.msra.mxu0 0.0
      %282 = vmatprep.subr.mxu0 0.0
      %283 = vmatpush1.msra.mxu0 0.0
      %284 = vmatprep.subr.mxu0 0.0
      %285 = vmatpush1.msra.mxu0 0.0
      %286 = vmatprep.subr.mxu0 0.0
      %287 = vmatpush1.msra.mxu0 0.0
      %288 = vmatprep.subr.mxu0 0.0
      %289 = vmatpush1.msra.mxu0 0.0
      %290 = vmatprep.subr.mxu0 0.0
      %291 = vmatpush1.msra.mxu0 0.0
      %292 = vmatprep.subr.mxu0 0.0
      %293 = vmatpush1.msra.mxu0 0.0
      %294 = vmatprep.subr.mxu0 0.0
      %295 = vmatpush1.msra.mxu0 0.0
      %296 = vmatprep.subr.mxu0 0.0
      %297 = vmatpush1.msra.mxu0 0.0
      %298 = vmatprep.subr.mxu0 0.0
      %299 = vmatpush1.msra.mxu0 0.0
      %300 = vmatprep.subr.mxu0 0.0
      %301 = vmatpush1.msra.mxu0 0.0
      %302 = vmatprep.subr.mxu0 0.0
      %303 = vmatpush1.msra.mxu0 0.0
      %304 = vmatprep.subr.mxu0 0.0
      %305 = vmatpush1.msra.mxu0 0.0
      %306 = vmatprep.subr.mxu0 0.0
      %307 = vmatpush1.msra.mxu0 0.0
      %308 = vmatprep.subr.mxu0 0.0
      %309 = vmatpush1.msra.mxu0 0.0
      %310 = vmatprep.subr.mxu0 0.0
      %311 = vmatpush1.msra.mxu0 0.0
      %312 = vmatprep.subr.mxu0 0.0
      %313 = vmatpush1.msra.mxu0 0.0
      %314 = vmatprep.subr.mxu0 0.0
      %315 = vmatpush1.msra.mxu0 0.0
      %316 = vmatprep.subr.mxu0 0.0
      %317 = vmatpush1.msra.mxu0 0.0
      %318 = vmatprep.mubr.f32.mxu0 0.0
      %319 = vmatmul.mubr.f32.gmra.mrb[0].mxu0 %v250
      %v320 = vpop.f32.mrb[0].mxu0
      %v321 = vadd.f32 0.0, %v320
      %v322 = vpop.f32.mrb[0].mxu0
      %323 = vmatprep.mubr.f32.mxu0 0.0
      %324 = vmatmul.mubr.f32.gmra.mrb[0].mxu0 %v252
      %v325 = vpop.f32.mrb[0].mxu0
      %v326 = vadd.f32 0.0, %v325
      %v327 = vpop.f32.mrb[0].mxu0
      %328 = vdwg.mxu0
      %v329 = vcombine.low %v210, %v211
      %v330 = vcombine.low %v212, %v213
      %v331 = vsel %vm249, %v329, 0
      %v333 = vsel %vm249, %v330, 0
      %335 = vmatprep.subr.mxu0 0.0
      %336 = vmatpush1.msra.mxu0 %v215
      %337 = vmatprep.subr.mxu0 0.0
      %338 = vmatpush1.msra.mxu0 %v216
      %339 = vmatprep.subr.mxu0 0.0
      %340 = vmatpush1.msra.mxu0 0.0
      %341 = vmatprep.subr.mxu0 0.0
      %342 = vmatpush1.msra.mxu0 0.0
      %343 = vmatprep.subr.mxu0 0.0
      %344 = vmatpush1.msra.mxu0 0.0
      %345 = vmatprep.subr.mxu0 0.0
      %346 = vmatpush1.msra.mxu0 0.0
      %347 = vmatprep.subr.mxu0 0.0
      %348 = vmatpush1.msra.mxu0 0.0
      %349 = vmatprep.subr.mxu0 0.0
      %350 = vmatpush1.msra.mxu0 0.0
      %351 = vmatprep.subr.mxu0 0.0
      %352 = vmatpush1.msra.mxu0 0.0
      %353 = vmatprep.subr.mxu0 0.0
      %354 = vmatpush1.msra.mxu0 0.0
      %355 = vmatprep.subr.mxu0 0.0
      %356 = vmatpush1.msra.mxu0 0.0
      %357 = vmatprep.subr.mxu0 0.0
      %358 = vmatpush1.msra.mxu0 0.0
      %359 = vmatprep.subr.mxu0 0.0
      %360 = vmatpush1.msra.mxu0 0.0
      %361 = vmatprep.subr.mxu0 0.0
      %362 = vmatpush1.msra.mxu0 0.0
      %363 = vmatprep.subr.mxu0 0.0
      %364 = vmatpush1.msra.mxu0 0.0
      %365 = vmatprep.subr.mxu0 0.0
      %366 = vmatpush1.msra.mxu0 0.0
      %367 = vmatprep.subr.mxu0 0.0
      %368 = vmatpush1.msra.mxu0 0.0
      %369 = vmatprep.subr.mxu0 0.0
      %370 = vmatpush1.msra.mxu0 0.0
      %371 = vmatprep.subr.mxu0 0.0
      %372 = vmatpush1.msra.mxu0 0.0
      %373 = vmatprep.subr.mxu0 0.0
      %374 = vmatpush1.msra.mxu0 0.0
      %375 = vmatprep.subr.mxu0 0.0
      %376 = vmatpush1.msra.mxu0 0.0
      %377 = vmatprep.subr.mxu0 0.0
      %378 = vmatpush1.msra.mxu0 0.0
      %379 = vmatprep.subr.mxu0 0.0
      %380 = vmatpush1.msra.mxu0 0.0
      %381 = vmatprep.subr.mxu0 0.0
      %382 = vmatpush1.msra.mxu0 0.0
      %383 = vmatprep.subr.mxu0 0.0
      %384 = vmatpush1.msra.mxu0 0.0
      %385 = vmatprep.subr.mxu0 0.0
      %386 = vmatpush1.msra.mxu0 0.0
      %387 = vmatprep.subr.mxu0 0.0
      %388 = vmatpush1.msra.mxu0 0.0
      %389 = vmatprep.subr.mxu0 0.0
      %390 = vmatpush1.msra.mxu0 0.0
      %391 = vmatprep.subr.mxu0 0.0
      %392 = vmatpush1.msra.mxu0 0.0
      %393 = vmatprep.subr.mxu0 0.0
      %394 = vmatpush1.msra.mxu0 0.0
      %395 = vmatprep.subr.mxu0 0.0
      %396 = vmatpush1.msra.mxu0 0.0
      %397 = vmatprep.subr.mxu0 0.0
      %398 = vmatpush1.msra.mxu0 0.0
      %399 = vmatprep.mubr.f32.mxu0 0.0
      %400 = vmatmul.mubr.f32.gmra.mrb[0].mxu0 %v331
      %v401 = vpop.f32.mrb[0].mxu0
      %v402 = vadd.f32 %v321, %v401
      %v403 = vpop.f32.mrb[0].mxu0
      %404 = vmatprep.mubr.f32.mxu0 0.0
      %405 = vmatmul.mubr.f32.gmra.mrb[0].mxu0 %v333
      %v406 = vpop.f32.mrb[0].mxu0
      %v407 = vadd.f32 %v326, %v406
      %v408 = vpop.f32.mrb[0].mxu0
      %409 = vdwg.mxu0
      %s410 = scalar_lea.vmem %s2, 32
      %v411 = vld [vmem:[%s410] sm:$0xff]
      %v412 = vld [vmem:[%s410 + $0x8] sm:$0xff]
      %v414 = vcombine.low %v211, %v212
      %v415 = vcombine.low %v213, %v214
      %v416 = vsel %vm249, %v414, 0
      %v418 = vsel %vm249, %v415, 0
      %420 = vmatprep.subr.mxu0 0.0
      %421 = vmatpush1.msra.mxu0 %v411
      %422 = vmatprep.subr.mxu0 0.0
      %423 = vmatpush1.msra.mxu0 %v412
      %424 = vmatprep.subr.mxu0 0.0
      %425 = vmatpush1.msra.mxu0 0.0
      %426 = vmatprep.subr.mxu0 0.0
      %427 = vmatpush1.msra.mxu0 0.0
      %428 = vmatprep.subr.mxu0 0.0
      %429 = vmatpush1.msra.mxu0 0.0
      %430 = vmatprep.subr.mxu0 0.0
      %431 = vmatpush1.msra.mxu0 0.0
      %432 = vmatprep.subr.mxu0 0.0
      %433 = vmatpush1.msra.mxu0 0.0
      %434 = vmatprep.subr.mxu0 0.0
      %435 = vmatpush1.msra.mxu0 0.0
      %436 = vmatprep.subr.mxu0 0.0
      %437 = vmatpush1.msra.mxu0 0.0
      %438 = vmatprep.subr.mxu0 0.0
      %439 = vmatpush1.msra.mxu0 0.0
      %440 = vmatprep.subr.mxu0 0.0
      %441 = vmatpush1.msra.mxu0 0.0
      %442 = vmatprep.subr.mxu0 0.0
      %443 = vmatpush1.msra.mxu0 0.0
      %444 = vmatprep.subr.mxu0 0.0
      %445 = vmatpush1.msra.mxu0 0.0
      %446 = vmatprep.subr.mxu0 0.0
      %447 = vmatpush1.msra.mxu0 0.0
      %448 = vmatprep.subr.mxu0 0.0
      %449 = vmatpush1.msra.mxu0 0.0
      %450 = vmatprep.subr.mxu0 0.0
      %451 = vmatpush1.msra.mxu0 0.0
      %452 = vmatprep.subr.mxu0 0.0
      %453 = vmatpush1.msra.mxu0 0.0
      %454 = vmatprep.subr.mxu0 0.0
      %455 = vmatpush1.msra.mxu0 0.0
      %456 = vmatprep.subr.mxu0 0.0
      %457 = vmatpush1.msra.mxu0 0.0
      %458 = vmatprep.subr.mxu0 0.0
      %459 = vmatpush1.msra.mxu0 0.0
      %460 = vmatprep.subr.mxu0 0.0
      %461 = vmatpush1.msra.mxu0 0.0
      %462 = vmatprep.subr.mxu0 0.0
      %463 = vmatpush1.msra.mxu0 0.0
      %464 = vmatprep.subr.mxu0 0.0
      %465 = vmatpush1.msra.mxu0 0.0
      %466 = vmatprep.subr.mxu0 0.0
      %467 = vmatpush1.msra.mxu0 0.0
      %468 = vmatprep.subr.mxu0 0.0
      %469 = vmatpush1.msra.mxu0 0.0
      %470 = vmatprep.subr.mxu0 0.0
      %471 = vmatpush1.msra.mxu0 0.0
      %472 = vmatprep.subr.mxu0 0.0
      %473 = vmatpush1.msra.mxu0 0.0
      %474 = vmatprep.subr.mxu0 0.0
      %475 = vmatpush1.msra.mxu0 0.0
      %476 = vmatprep.subr.mxu0 0.0
      %477 = vmatpush1.msra.mxu0 0.0
      %478 = vmatprep.subr.mxu0 0.0
      %479 = vmatpush1.msra.mxu0 0.0
      %480 = vmatprep.subr.mxu0 0.0
      %481 = vmatpush1.msra.mxu0 0.0
      %482 = vmatprep.subr.mxu0 0.0
      %483 = vmatpush1.msra.mxu0 0.0
      %484 = vmatprep.mubr.f32.mxu0 0.0
      %485 = vmatmul.mubr.f32.gmra.mrb[0].mxu0 %v416
      %v486 = vpop.f32.mrb[0].mxu0
      %v487 = vadd.f32 0.0, %v486
      %v488 = vpop.f32.mrb[0].mxu0
      %489 = vmatprep.mubr.f32.mxu0 0.0
      %490 = vmatmul.mubr.f32.gmra.mrb[0].mxu0 %v418
      %v491 = vpop.f32.mrb[0].mxu0
      %v492 = vadd.f32 0.0, %v491
      %v493 = vpop.f32.mrb[0].mxu0
      %494 = vdwg.mxu0
      %v495 = vadd.f32 %v402, %v487
      %v496 = vadd.f32 %v407, %v492
      %v497 = vcombine.high %v214, %v214
      %v498 = vrot.slane %v214, 5
      %v499 = vrot.slane %v498, 4
      %v500 = vrot.slane %v497, 5
      %v501 = vsel %vm227, %v499, %v500
      %s502 = scalar_lea.vmem %s2, 48
      %v503 = vld [vmem:[%s502] sm:$0xff]
      %v504 = vld [vmem:[%s502 + $0x8] sm:$0xff]
      %v505 = vcombine.low %v235, %v239
      %v506 = vcombine.low %v243, %v501
      %v507 = vsel %vm249, %v505, 0
      %v509 = vsel %vm249, %v506, 0
      %511 = vmatprep.subr.mxu0 0.0
      %512 = vmatpush1.msra.mxu0 %v503
      %513 = vmatprep.subr.mxu0 0.0
      %514 = vmatpush1.msra.mxu0 %v504
      %515 = vmatprep.subr.mxu0 0.0
      %516 = vmatpush1.msra.mxu0 0.0
      %517 = vmatprep.subr.mxu0 0.0
      %518 = vmatpush1.msra.mxu0 0.0
      %519 = vmatprep.subr.mxu0 0.0
      %520 = vmatpush1.msra.mxu0 0.0
      %521 = vmatprep.subr.mxu0 0.0
      %522 = vmatpush1.msra.mxu0 0.0
      %523 = vmatprep.subr.mxu0 0.0
      %524 = vmatpush1.msra.mxu0 0.0
      %525 = vmatprep.subr.mxu0 0.0
      %526 = vmatpush1.msra.mxu0 0.0
      %527 = vmatprep.subr.mxu0 0.0
      %528 = vmatpush1.msra.mxu0 0.0
      %529 = vmatprep.subr.mxu0 0.0
      %530 = vmatpush1.msra.mxu0 0.0
      %531 = vmatprep.subr.mxu0 0.0
      %532 = vmatpush1.msra.mxu0 0.0
      %533 = vmatprep.subr.mxu0 0.0
      %534 = vmatpush1.msra.mxu0 0.0
      %535 = vmatprep.subr.mxu0 0.0
      %536 = vmatpush1.msra.mxu0 0.0
      %537 = vmatprep.subr.mxu0 0.0
      %538 = vmatpush1.msra.mxu0 0.0
      %539 = vmatprep.subr.mxu0 0.0
      %540 = vmatpush1.msra.mxu0 0.0
      %541 = vmatprep.subr.mxu0 0.0
      %542 = vmatpush1.msra.mxu0 0.0
      %543 = vmatprep.subr.mxu0 0.0
      %544 = vmatpush1.msra.mxu0 0.0
      %545 = vmatprep.subr.mxu0 0.0
      %546 = vmatpush1.msra.mxu0 0.0
      %547 = vmatprep.subr.mxu0 0.0
      %548 = vmatpush1.msra.mxu0 0.0
      %549 = vmatprep.subr.mxu0 0.0
      %550 = vmatpush1.msra.mxu0 0.0
      %551 = vmatprep.subr.mxu0 0.0
      %552 = vmatpush1.msra.mxu0 0.0
      %553 = vmatprep.subr.mxu0 0.0
      %554 = vmatpush1.msra.mxu0 0.0
      %555 = vmatprep.subr.mxu0 0.0
      %556 = vmatpush1.msra.mxu0 0.0
      %557 = vmatprep.subr.mxu0 0.0
      %558 = vmatpush1.msra.mxu0 0.0
      %559 = vmatprep.subr.mxu0 0.0
      %560 = vmatpush1.msra.mxu0 0.0
      %561 = vmatprep.subr.mxu0 0.0
      %562 = vmatpush1.msra.mxu0 0.0
      %563 = vmatprep.subr.mxu0 0.0
      %564 = vmatpush1.msra.mxu0 0.0
      %565 = vmatprep.subr.mxu0 0.0
      %566 = vmatpush1.msra.mxu0 0.0
      %567 = vmatprep.subr.mxu0 0.0
      %568 = vmatpush1.msra.mxu0 0.0
      %569 = vmatprep.subr.mxu0 0.0
      %570 = vmatpush1.msra.mxu0 0.0
      %571 = vmatprep.subr.mxu0 0.0
      %572 = vmatpush1.msra.mxu0 0.0
      %573 = vmatprep.subr.mxu0 0.0
      %574 = vmatpush1.msra.mxu0 0.0
      %575 = vmatprep.mubr.f32.mxu0 0.0
      %576 = vmatmul.mubr.f32.gmra.mrb[0].mxu0 %v507
      %v577 = vpop.f32.mrb[0].mxu0
      %v578 = vadd.f32 0.0, %v577
      %v579 = vpop.f32.mrb[0].mxu0
      %580 = vmatprep.mubr.f32.mxu0 0.0
      %581 = vmatmul.mubr.f32.gmra.mrb[0].mxu0 %v509
      %v582 = vpop.f32.mrb[0].mxu0
      %v583 = vadd.f32 0.0, %v582
      %v584 = vpop.f32.mrb[0].mxu0
      %585 = vdwg.mxu0
      %v586 = vadd.f32 %v495, %v578
      %v587 = vadd.f32 %v496, %v583
      %vm588 = vcmask 261120
      %v589 = vsel %vm588, %v586, 0.0
      %v590 = vsel %vm588, %v587, 0.0
      %v591 = vadd.f32 %v589, %v590
      %v592 = vrot.slane %v591, 4
      %v593 = vadd.f32 %v591, %v592
      %v594 = vrot.slane %v593, 2
      %v595 = vadd.f32 %v593, %v594
      %v596 = vrot.slane %v595, 1
      %v597 = vadd.f32 %v595, %v596
      %v598 = vadd.f32 %v597, 0.0
      %v599 = vmul.f32 %v586, %v586
      %v600 = vmul.f32 %v587, %v587
      %v601 = vsel %vm588, %v599, 0.0
      %v602 = vsel %vm588, %v600, 0.0
      %v603 = vadd.f32 %v601, %v602
      %v604 = vrot.slane %v603, 4
      %v605 = vadd.f32 %v603, %v604
      %v606 = vrot.slane %v605, 2
      %v607 = vadd.f32 %v605, %v606
      %v608 = vrot.slane %v607, 1
      %v609 = vadd.f32 %v607, %v608
      %v610 = vadd.f32 %v609, 0.0
      %v612 = vlaneseq
      %v613 = vshrl.u32 %v612, 7
      %v614 = vsub.s32 0, %v613
      %v615 = vrot.slane %v209, %v614
      %v617 = vadd.f32 %v586, %v615
      %v618 = vadd.f32 %v587, %v615
      %619 = vst.msk [vmem:[%s204] sm:$0xff] %vm588, %v617
      %620 = vst.msk [vmem:[%s204 + $0x8] sm:$0xff] %vm588, %v618
      %vm621 = vcmask 1040384
      %v622 = vsel %vm621, %v598, %v610
      %vm623 = vcmask 254976
      %624 = vst.msk [vmem:[%s208] sm:$0x3] %vm623, %v622
      %p625 = scmp.lt.s32.totalorder %s16, 1
      %s626 = scalar_select %p625, %s16, 1
      %s627 = smul.addr %s626, 2
      %s628 = smul.addr %s627, 8
      %s629 = scalar_lea.vmem %s3, %s628
      %p630 = scmp.lt.s32.totalorder %s16, 1
      %s631 = scalar_select %p630, %s16, 1
      %s632 = smul.addr %s631, 2
      %s633 = scalar_lea.vmem %s4, %s632
      // Predicated region
      $region33: #{forward.6} parent=31 // pred_check
        %p634 = pneg %p102
      $region34: #{forward.6} parent=31 // pred_check_branch
        %636 = sbr.rel (%p634) target = $region36
      $region35: #{forward.6} parent=31 // pred_region
        _
      $region36: #{forward.6} parent=31 // pred_fallthru
        _
      // Predicated region
      $region37: #{forward.6} parent=31 // pred_check
        %p637 = pneg %p128
      $region38: #{forward.6} parent=31 // pred_check_branch
        %639 = sbr.rel (%p637) target = $region40
      $region39: #{forward.6} parent=31 // pred_region
        _
      $region40: #{forward.6} parent=31 // pred_fallthru
        _
    $region32: #{forward.6} parent=5 // pred_fallthru
      _
    %p640 = scmp.le.s32.totalorder 2, %s11
    // Predicated region
    $region41: #{forward.6} parent=5 // pred_check
      %p641 = pneg %p640
    $region42: #{forward.6} parent=5 // pred_check_branch
      %643 = sbr.rel (%p641) target = $region44
    $region43: #{forward.6} parent=5 // pred_region
      %s644 = ssub.s32 %s11, 2
      // Predicated region
      $region45: #{forward.6} parent=43 // pred_check
        %p645 = pneg %p108
      $region46: #{forward.6} parent=43 // pred_check_branch
        %647 = sbr.rel (%p645) target = $region48
      $region47: #{forward.6} parent=43 // pred_region
        %p648 = scmp.lt.s32.totalorder %s17, 1
        %s649 = scalar_select %p648, %s17, 1
        %s650 = smul.addr %s649, 2
        %s651 = smul.addr %s650, 8
        %s652 = scalar_lea.vmem %s3, %s651
      $region48: #{forward.6} parent=43 // pred_fallthru
        _
      // Predicated region
      $region49: #{forward.6} parent=43 // pred_check
        %p653 = pneg %p134
      $region50: #{forward.6} parent=43 // pred_check_branch
        %655 = sbr.rel (%p653) target = $region52
      $region51: #{forward.6} parent=43 // pred_region
        %p656 = scmp.lt.s32.totalorder %s17, 1
        %s657 = scalar_select %p656, %s17, 1
        %s658 = smul.addr %s657, 2
        %s659 = scalar_lea.vmem %s4, %s658
      $region52: #{forward.6} parent=43 // pred_fallthru
        _
    $region44: #{forward.6} parent=5 // pred_fallthru
      _
  $region6: #{forward.6} parent=0 // loop_footer
    %s15 = sadd.s32 1, %s11
  $region7: #{forward.6} parent=0 // loop_footer_branch
    %10 = sbr.rel target = $region3
  $region8: #{forward.6} parent=0 // loop_exit
    _

// kernel: forward.5
$region0: #{forward.5}
  #allocation0 [shape = 'u32[]', space=smem, size = 0x4, offset = 0x4, fixed_abs, tag = 'smem constant byte address 0x4 - core index']
  #allocation1 [shape = 'u32[144,128]{1,0:T(1,128)}', space=vmem, size = 0x12000, scoped, tag = 'internal scratch']
  %s0 = inlined_call_operand.vmem [shape: f32[2,4,5,5,8], index: 0, kind: input, shape index: {}]
  %s1 = inlined_call_operand.vmem [shape: f32[1,16], index: 1, kind: input, shape index: {}]
  %s2 = inlined_call_operand.vmem [shape: f32[9,8,16], index: 2, kind: input, shape index: {}]
  %s3 = inlined_call_operand.vmem [shape: f32[2,16,16], index: 3, kind: output, shape index: {0}]
  %s4 = inlined_call_operand.hbm [shape: f32[2,2,16], index: 4, kind: output, shape index: {1}]
  %5 = xla_tuple %s3, %s4
  %s6 = sld [smem:[#allocation0]]
  $region53: #{forward.5} parent=0
    _
  %s8 = ssub.s32 1, %s6
  %s9 = scalar_select 0, %s8, %s6
  $region1: #{forward.5} parent=0
    #allocation2 [shape = 'u8[2048]{0}', space=vmem, size = 0x800, scoped, tag = 'output window, operand 1']
    #allocation3 [shape = 's32[2]{0}', space=sflag, size = 0x8, scoped, tag = 'scoped memory for forward.5']
    %10 = vsyncpa [#allocation3], 0
    %s11 = scalar_lea.sflag [#allocation3], 1
    %12 = vsyncpa %s11, 0
    loop: start=0, step=1, limit=4
    $region2: #{forward.5} parent=1 // loop_pre_header
      _
    $region3: #{forward.5} parent=1 // loop_header
      %s14 = sphi 0, %s18
      %p15 = scmp.ge.s32.totalorder %s14, 4
      %s24 = sphi 0, %s26
      %s27 = sphi 0, %s24
      %s28 = sphi 0, %s27
      %s44 = sphi 0, %s28
      %s48 = sphi 0, %s48
      %s50 = sphi 0, %s48
      %s51 = sphi 0, %s50
      %s65 = sphi 0, %s51
      %s69 = sphi 0, %s69
      %s71 = sphi 0, %s69
      %s72 = sphi 0, %s71
      %s86 = sphi 0, %s72
      %s92 = sphi 0, %s94
      %s95 = sphi 0, %s92
      %s96 = sphi 0, %s95
      %s112 = sphi 0, %s96
      %s118 = sphi 0, %s120
      %s121 = sphi 0, %s118
      %s122 = sphi 0, %s121
      %s138 = sphi 0, %s122
    $region4: #{forward.5} parent=1 // loop_header_branch
      %17 = sbr.rel (%p15) target = $region8
    $region5: #{forward.5} parent=1 // loop_body
      %s19 = ssub.s32 %s14, 1
      %s20 = ssub.s32 %s14, 2
      %s21 = sadd.s32 %s14, 1
      %s22 = ssub.s32 %s14, %s21
      %p23 = scmp.eq.s32.totalorder %s22, 0
      %s25 = sadd.s32 %s24, 1
      %s26 = scalar_select %p23, %s24, %s25
      %p29 = pneg %p23
      %p30 = scmp.eq.s32.totalorder %s14, 1
      %p31 = por %p29, %p30
      %p32 = scmp.ne.s32.totalorder %s24, %s27
      %p33 = scmp.eq.s32.totalorder %s14, 0
      %p34 = por %p32, %p33
      %p35 = scmp.ne.s32.totalorder %s24, %s27
      %p36 = scmp.eq.s32.totalorder %s19, 1
      %p37 = por %p35, %p36
      %p38 = scmp.ne.s32.totalorder %s27, %s28
      %p39 = scmp.eq.s32.totalorder %s19, 0
      %p40 = por %p38, %p39
      %p41 = scmp.ne.s32.totalorder %s27, %s28
      %p42 = scmp.eq.s32.totalorder %s20, 1
      %p43 = por %p41, %p42
      %p45 = scmp.ne.s32.totalorder %s28, %s44
      %p46 = scmp.eq.s32.totalorder %s20, 0
      %p47 = por %p45, %p46
      %s49 = sadd.s32 %s48, 1
      %p52 = scmp.eq.s32.totalorder %s14, 1
      %p53 = scmp.ne.s32.totalorder %s48, %s50
      %p54 = scmp.eq.s32.totalorder %s14, 0
      %p55 = por %p53, %p54
      %p56 = scmp.ne.s32.totalorder %s48, %s50
      %p57 = scmp.eq.s32.totalorder %s19, 1
      %p58 = por %p56, %p57
      %p59 = scmp.ne.s32.totalorder %s50, %s51
      %p60 = scmp.eq.s32.totalorder %s19, 0
      %p61 = por %p59, %p60
      %p62 = scmp.ne.s32.totalorder %s50, %s51
      %p63 = scmp.eq.s32.totalorder %s20, 1
      %p64 = por %p62, %p63
      %p66 = scmp.ne.s32.totalorder %s51, %s65
      %p67 = scmp.eq.s32.totalorder %s20, 0
      %p68 = por %p66, %p67
      %s70 = sadd.s32 %s69, 1
      %p73 = scmp.eq.s32.totalorder %s14, 1
      %p74 = scmp.ne.s32.totalorder %s69, %s71
      %p75 = scmp.eq.s32.totalorder %s14, 0
      %p76 = por %p74, %p75
      %p77 = scmp.ne.s32.totalorder %s69, %s71
      %p78 = scmp.eq.s32.totalorder %s19, 1
      %p79 = por %p77, %p78
      %p80 = scmp.ne.s32.totalorder %s71, %s72
      %p81 = scmp.eq.s32.totalorder %s19, 0
      %p82 = por %p80, %p81
      %p83 = scmp.ne.s32.totalorder %s71, %s72
      %p84 = scmp.eq.s32.totalorder %s20, 1
      %p85 = por %p83, %p84
      %p87 = scmp.ne.s32.totalorder %s72, %s86
      %p88 = scmp.eq.s32.totalorder %s20, 0
      %p89 = por %p87, %p88
      %s90 = ssub.s32 %s14, %s21
      %p91 = scmp.eq.s32.totalorder %s90, 0
      %s93 = sadd.s32 %s92, 1
      %s94 = scalar_select %p91, %s92, %s93
      %p97 = pneg %p91
      %p98 = scmp.eq.s32.totalorder %s14, 1
      %p99 = por %p97, %p98
      %p100 = scmp.ne.s32.totalorder %s92, %s95
      %p101 = scmp.eq.s32.totalorder %s14, 0
      %p102 = por %p100, %p101
      %p103 = scmp.ne.s32.totalorder %s92, %s95
      %p104 = scmp.eq.s32.totalorder %s19, 1
      %p105 = por %p103, %p104
      %p106 = scmp.ne.s32.totalorder %s95, %s96
      %p107 = scmp.eq.s32.totalorder %s19, 0
      %p108 = por %p106, %p107
      %p109 = scmp.ne.s32.totalorder %s95, %s96
      %p110 = scmp.eq.s32.totalorder %s20, 1
      %p111 = por %p109, %p110
      %p113 = scmp.ne.s32.totalorder %s96, %s112
      %p114 = scmp.eq.s32.totalorder %s20, 0
      %p115 = por %p113, %p114
      %s116 = ssub.s32 %s14, %s21
      %p117 = scmp.eq.s32.totalorder %s116, 0
      %s119 = sadd.s32 %s118, 1
      %s120 = scalar_select %p117, %s118, %s119
      %p123 = pneg %p117
      %p124 = scmp.eq.s32.totalorder %s14, 1
      %p125 = por %p123, %p124
      %p126 = scmp.ne.s32.totalorder %s118, %s121
      %p127 = scmp.eq.s32.totalorder %s14, 0
      %p128 = por %p126, %p127
      %p129 = scmp.ne.s32.totalorder %s118, %s121
      %p130 = scmp.eq.s32.totalorder %s19, 1
      %p131 = por %p129, %p130
      %p132 = scmp.ne.s32.totalorder %s121, %s122
      %p133 = scmp.eq.s32.totalorder %s19, 0
      %p134 = por %p132, %p133
      %p135 = scmp.ne.s32.totalorder %s121, %s122
      %p136 = scmp.eq.s32.totalorder %s20, 1
      %p137 = por %p135, %p136
      %p139 = scmp.ne.s32.totalorder %s122, %s138
      %p140 = scmp.eq.s32.totalorder %s20, 0
      %p141 = por %p139, %p140
      %p142 = scmp.le.s32.totalorder 1, %s14
      %p143 = scmp.lt.s32.totalorder %s14, 3
      %p144 = pnand %p142, %p143
      %p145 = pneg %p144
      // Predicated region
      $region9: #{forward.5} parent=5 // pred_check
        _
      $region10: #{forward.5} parent=5 // pred_check_branch
        %147 = sbr.rel (%p144) target = $region12
      $region11: #{forward.5} parent=5 // pred_region
        %s148 = ssub.s32 %s14, 1
        // Predicated region
        $region13: #{forward.5} parent=11 // pred_check
          %p149 = pneg %p61
        $region14: #{forward.5} parent=11 // pred_check_branch
          %151 = sbr.rel (%p149) target = $region16
        $region15: #{forward.5} parent=11 // pred_region
          _
        $region16: #{forward.5} parent=11 // pred_fallthru
          _
        // Predicated region
        $region17: #{forward.5} parent=11 // pred_check
          %p152 = pneg %p82
        $region18: #{forward.5} parent=11 // pred_check_branch
          %154 = sbr.rel (%p152) target = $region20
        $region19: #{forward.5} parent=11 // pred_region
          _
        $region20: #{forward.5} parent=11 // pred_fallthru
          _
      $region12: #{forward.5} parent=5 // pred_fallthru
        _
      %p155 = scmp.lt.s32.totalorder %s14, 2
      // Predicated region
      $region21: #{forward.5} parent=5 // pred_check
        %p156 = pneg %p155
      $region22: #{forward.5} parent=5 // pred_check_branch
        %158 = sbr.rel (%p156) target = $region24
      $region23: #{forward.5} parent=5 // pred_region
        // Predicated region
        $region25: #{forward.5} parent=23 // pred_check
          %p159 = pneg %p34
        $region26: #{forward.5} parent=23 // pred_check_branch
          %161 = sbr.rel (%p159) target = $region28
        $region27: #{forward.5} parent=23 // pred_region
          %p162 = scmp.lt.s32.totalorder %s14, 1
          %s163 = scalar_select %p162, %s14, 1
          %s164 = smul.addr %s163, 20
          %s165 = smul.addr %s164, 8
          %s166 = scalar_lea.vmem %s0, %s165
        $region28: #{forward.5} parent=23 // pred_fallthru
          _
      $region24: #{forward.5} parent=5 // pred_fallthru
        _
      %p167 = scmp.le.s32.totalorder 1, %s14
      %p168 = scmp.lt.s32.totalorder %s14, 3
      %p169 = pnand %p167, %p168
      %p170 = pneg %p169
      // Predicated region
      $region29: #{forward.5} parent=5 // pred_check
        _
      $region30: #{forward.5} parent=5 // pred_check_branch
        %172 = sbr.rel (%p169) target = $region32
      $region31: #{forward.5} parent=5 // pred_region
        %s173 = ssub.s32 %s14, 1
        %p174 = scmp.lt.s32.totalorder %s19, 1
        %s175 = scalar_select %p174, %s19, 1
        %s176 = smul.addr %s175, 20
        %s177 = smul.addr %s176, 8
        %s178 = scalar_lea.vmem %s0, %s177
        %p179 = pneg %p40
        %p180 = pneg %p37
        %p181 = pneg %p61
        %p182 = pneg %p58
        %p183 = pneg %p82
        %p184 = pneg %p79
        %p185 = pneg %p108
        %p186 = pneg %p105
        %p187 = scmp.lt.s32.totalorder %s19, 1
        %s188 = scalar_select %p187, %s19, 1
        %s189 = smul.addr %s188, 2
        %s190 = smul.addr %s189, 8
        %s191 = scalar_lea.vmem %s3, %s190
        %p192 = pneg %p134
        %p193 = pneg %p131
        %s194 = sand.u32 %s121, 1
        %s195 = scalar_lea.sflag [#allocation3], %s194
        %s196 = sand.u32 %s121, 1
        %s197 = smul.addr %s196, 2
        %s198 = scalar_lea.vmem [#allocation2], %s197
        %p199 = scmp.lt.s32.totalorder %s19, 1
        %s200 = scalar_select %p199, %s19, 1
        %s201 = smul.addr %s200, 20
        %s202 = smul.addr %s201, 8
        %s203 = scalar_lea.vmem %s0, %s202
        %p204 = scmp.lt.s32.totalorder %s19, 1
        %s205 = scalar_select %p204, %s19, 1
        %s206 = smul.addr %s205, 2
        %s207 = smul.addr %s206, 8
        %s208 = scalar_lea.vmem %s3, %s207
        %v209 = vld [vmem:[%s1] sm:$0x1]
        %v210 = vld [vmem:[%s203 + $0x8] sm:$0x1f]
        %v211 = vld [vmem:[%s203 + $0x10] sm:$0x1f]
        %v212 = vld [vmem:[%s203 + $0x18] sm:$0x1f]
        %v213 = vld [vmem:[%s203 + $0x20] sm:$0x1f]
        %v214 = vld [vmem:[%s203 + $0x30] sm:$0x1f]
        %v215 = vld [vmem:[%s203 + $0x38] sm:$0x1f]
        %v216 = vld [vmem:[%s203 + $0x40] sm:$0x1f]
        %v217 = vld [vmem:[%s203 + $0x48] sm:$0x1f]
        %v218 = vld [vmem:[%s203 + $0x50] sm:$0x1f]
        %v219 = vld [vmem:[%s203 + $0x58] sm:$0x1f]
        %v220 = vld [vmem:[%s203 + $0x60] sm:$0x1f]
        %v221 = vld [vmem:[%s203 + $0x68] sm:$0x1f]
        %v222 = vld [vmem:[%s203 + $0x70] sm:$0x1f]
        %v223 = vld [vmem:[%s203 + $0x78] sm:$0x1f]
        %v224 = vld [vmem:[%s203 + $0x80] sm:$0x1f]
        %v225 = vld [vmem:[%s203 + $0x88] sm:$0x1f]
        %v226 = vld [vmem:[%s203 + $0x90] sm:$0x1f]
        %v227 = vld [vmem:[%s203 + $0x98] sm:$0x1f]
        %v228 = vld [vmem:[%s2] sm:$0xff]
        %v233 = vcombine.high %v218, %v218
        %v234 = vcombine.high %v219, %v219
        %v235 = vcombine.high %v220, %v220
        %v236 = vcombine.high %v221, %v221
        %vm237 = vcmask 1042432
        %vm238 = vcmask 1046532
        %vm239 = vmor %vm237, %vm238
        %v240 = vrot.slane %v218, 5
        %v241 = vrot.slane %v240, 4
        %v242 = vrot.slane %v233, 5
        %v243 = vsel %vm239, %v241, %v242
        %v244 = vrot.slane %v219, 5
        %v245 = vrot.slane %v244, 4
        %v246 = vrot.slane %v234, 5
        %v247 = vsel %vm239, %v245, %v246
        %v248 = vrot.slane %v220, 5
        %v249 = vrot.slane %v248, 4
        %v250 = vrot.slane %v235, 5
        %v251 = vsel %vm239, %v249, %v250
        %v252 = vrot.slane %v221, 5
        %v253 = vrot.slane %v252, 4
        %v254 = vrot.slane %v236, 5
        %v255 = vsel %vm239, %v253, %v254
        %s256 = scalar_lea.vmem %s2, 8
        %v257 = vld [vmem:[%s256] sm:$0xff]
        %v258 = vcombine.low %v243, %v247
        %v259 = vcombine.low %v251, %v255
        %vm260 = vcmask 64512
        %v261 = vsel %vm260, %v258, 0
        %v263 = vsel %vm260, %v259, 0
        %265 = vmatprep.subr.mxu0 0.0
        %266 = vmatpush1.msra.mxu0 %v257
        %267 = vmatprep.subr.mxu0 0.0
        %268 = vmatpush1.msra.mxu0 0.0
        %269 = vmatprep.subr.mxu0 0.0
        %270 = vmatpush1.msra.mxu0 0.0
        %271 = vmatprep.subr.mxu0 0.0
        %272 = vmatpush1.msra.mxu0 0.0
        %273 = vmatprep.subr.mxu0 0.0
        %274 = vmatpush1.msra.mxu0 0.0
        %275 = vmatprep.subr.mxu0 0.0
        %276 = vmatpush1.msra.mxu0 0.0
        %277 = vmatprep.subr.mxu0 0.0
        %278 = vmatpush1.msra.mxu0 0.0
        %279 = vmatprep.subr.mxu0 0.0
        %280 = vmatpush1.msra.mxu0 0.0
        %281 = vmatprep.subr.mxu0 0.0
        %282 = vmatpush1.msra.mxu0 0.0
        %283 = vmatprep.subr.mxu0 0.0
        %284 = vmatpush1.msra.mxu0 0.0
        %285 = vmatprep.subr.mxu0 0.0
        %286 = vmatpush1.msra.mxu0 0.0
        %287 = vmatprep.subr.mxu0 0.0
        %288 = vmatpush1.msra.mxu0 0.0
        %289 = vmatprep.subr.mxu0 0.0
        %290 = vmatpush1.msra.mxu0 0.0
        %291 = vmatprep.subr.mxu0 0.0
        %292 = vmatpush1.msra.mxu0 0.0
        %293 = vmatprep.subr.mxu0 0.0
        %294 = vmatpush1.msra.mxu0 0.0
        %295 = vmatprep.subr.mxu0 0.0
        %296 = vmatpush1.msra.mxu0 0.0
        %297 = vmatprep.subr.mxu0 0.0
        %298 = vmatpush1.msra.mxu0 0.0
        %299 = vmatprep.subr.mxu0 0.0
        %300 = vmatpush1.msra.mxu0 0.0
        %301 = vmatprep.subr.mxu0 0.0
        %302 = vmatpush1.msra.mxu0 0.0
        %303 = vmatprep.subr.mxu0 0.0
        %304 = vmatpush1.msra.mxu0 0.0
        %305 = vmatprep.subr.mxu0 0.0
        %306 = vmatpush1.msra.mxu0 0.0
        %307 = vmatprep.subr.mxu0 0.0
        %308 = vmatpush1.msra.mxu0 0.0
        %309 = vmatprep.subr.mxu0 0.0
        %310 = vmatpush1.msra.mxu0 0.0
        %311 = vmatprep.subr.mxu0 0.0
        %312 = vmatpush1.msra.mxu0 0.0
        %313 = vmatprep.subr.mxu0 0.0
        %314 = vmatpush1.msra.mxu0 0.0
        %315 = vmatprep.subr.mxu0 0.0
        %316 = vmatpush1.msra.mxu0 0.0
        %317 = vmatprep.subr.mxu0 0.0
        %318 = vmatpush1.msra.mxu0 0.0
        %319 = vmatprep.subr.mxu0 0.0
        %320 = vmatpush1.msra.mxu0 0.0
        %321 = vmatprep.subr.mxu0 0.0
        %322 = vmatpush1.msra.mxu0 0.0
        %323 = vmatprep.subr.mxu0 0.0
        %324 = vmatpush1.msra.mxu0 0.0
        %325 = vmatprep.subr.mxu0 0.0
        %326 = vmatpush1.msra.mxu0 0.0
        %327 = vmatprep.subr.mxu0 0.0
        %328 = vmatpush1.msra.mxu0 0.0
        %329 = vmatprep.mubr.f32.mxu0 0.0
        %330 = vmatmul.mubr.f32.gmra.mrb[0].mxu0 %v261
        %v331 = vpop.f32.mrb[0].mxu0
        %v332 = vadd.f32 0.0, %v331
        %v333 = vpop.f32.mrb[0].mxu0
        %334 = vmatprep.mubr.f32.mxu0 0.0
        %335 = vmatmul.mubr.f32.gmra.mrb[0].mxu0 %v263
        %v336 = vpop.f32.mrb[0].mxu0
        %v337 = vadd.f32 0.0, %v336
        %v338 = vpop.f32.mrb[0].mxu0
        %339 = vdwg.mxu0
        %v344 = vcombine.low %v223, %v224
        %v345 = vcombine.low %v225, %v226
        %v346 = vsel %vm260, %v344, 0
        %v348 = vsel %vm260, %v345, 0
        %350 = vmatprep.subr.mxu0 0.0
        %351 = vmatpush1.msra.mxu0 %v228
        %352 = vmatprep.subr.mxu0 0.0
        %353 = vmatpush1.msra.mxu0 0.0
        %354 = vmatprep.subr.mxu0 0.0
        %355 = vmatpush1.msra.mxu0 0.0
        %356 = vmatprep.subr.mxu0 0.0
        %357 = vmatpush1.msra.mxu0 0.0
        %358 = vmatprep.subr.mxu0 0.0
        %359 = vmatpush1.msra.mxu0 0.0
        %360 = vmatprep.subr.mxu0 0.0
        %361 = vmatpush1.msra.mxu0 0.0
        %362 = vmatprep.subr.mxu0 0.0
        %363 = vmatpush1.msra.mxu0 0.0
        %364 = vmatprep.subr.mxu0 0.0
        %365 = vmatpush1.msra.mxu0 0.0
        %366 = vmatprep.subr.mxu0 0.0
        %367 = vmatpush1.msra.mxu0 0.0
        %368 = vmatprep.subr.mxu0 0.0
        %369 = vmatpush1.msra.mxu0 0.0
        %370 = vmatprep.subr.mxu0 0.0
        %371 = vmatpush1.msra.mxu0 0.0
        %372 = vmatprep.subr.mxu0 0.0
        %373 = vmatpush1.msra.mxu0 0.0
        %374 = vmatprep.subr.mxu0 0.0
        %375 = vmatpush1.msra.mxu0 0.0
        %376 = vmatprep.subr.mxu0 0.0
        %377 = vmatpush1.msra.mxu0 0.0
        %378 = vmatprep.subr.mxu0 0.0
        %379 = vmatpush1.msra.mxu0 0.0
        %380 = vmatprep.subr.mxu0 0.0
        %381 = vmatpush1.msra.mxu0 0.0
        %382 = vmatprep.subr.mxu0 0.0
        %383 = vmatpush1.msra.mxu0 0.0
        %384 = vmatprep.subr.mxu0 0.0
        %385 = vmatpush1.msra.mxu0 0.0
        %386 = vmatprep.subr.mxu0 0.0
        %387 = vmatpush1.msra.mxu0 0.0
        %388 = vmatprep.subr.mxu0 0.0
        %389 = vmatpush1.msra.mxu0 0.0
        %390 = vmatprep.subr.mxu0 0.0
        %391 = vmatpush1.msra.mxu0 0.0
        %392 = vmatprep.subr.mxu0 0.0
        %393 = vmatpush1.msra.mxu0 0.0
        %394 = vmatprep.subr.mxu0 0.0
        %395 = vmatpush1.msra.mxu0 0.0
        %396 = vmatprep.subr.mxu0 0.0
        %397 = vmatpush1.msra.mxu0 0.0
        %398 = vmatprep.subr.mxu0 0.0
        %399 = vmatpush1.msra.mxu0 0.0
        %400 = vmatprep.subr.mxu0 0.0
        %401 = vmatpush1.msra.mxu0 0.0
        %402 = vmatprep.subr.mxu0 0.0
        %403 = vmatpush1.msra.mxu0 0.0
        %404 = vmatprep.subr.mxu0 0.0
        %405 = vmatpush1.msra.mxu0 0.0
        %406 = vmatprep.subr.mxu0 0.0
        %407 = vmatpush1.msra.mxu0 0.0
        %408 = vmatprep.subr.mxu0 0.0
        %409 = vmatpush1.msra.mxu0 0.0
        %410 = vmatprep.subr.mxu0 0.0
        %411 = vmatpush1.msra.mxu0 0.0
        %412 = vmatprep.subr.mxu0 0.0
        %413 = vmatpush1.msra.mxu0 0.0
        %414 = vmatprep.mubr.f32.mxu0 0.0
        %415 = vmatmul.mubr.f32.gmra.mrb[0].mxu0 %v346
        %v416 = vpop.f32.mrb[0].mxu0
        %v417 = vadd.f32 %v332, %v416
        %v418 = vpop.f32.mrb[0].mxu0
        %419 = vmatprep.mubr.f32.mxu0 0.0
        %420 = vmatmul.mubr.f32.gmra.mrb[0].mxu0 %v348
        %v421 = vpop.f32.mrb[0].mxu0
        %v422 = vadd.f32 %v337, %v421
        %v423 = vpop.f32.mrb[0].mxu0
        %424 = vdwg.mxu0
        %v425 = vcombine.high %v223, %v223
        %v426 = vcombine.high %v224, %v224
        %v427 = vcombine.high %v225, %v225
        %v428 = vcombine.high %v226, %v226
        %v429 = vrot.slane %v223, 5
        %v430 = vrot.slane %v429, 4
        %v431 = vrot.slane %v425, 5
        %v432 = vsel %vm239, %v430, %v431
        %v433 = vrot.slane %v224, 5
        %v434 = vrot.slane %v433, 4
        %v435 = vrot.slane %v426, 5
        %v436 = vsel %vm239, %v434, %v435
        %v437 = vrot.slane %v225, 5
        %v438 = vrot.slane %v437, 4
        %v439 = vrot.slane %v427, 5
        %v440 = vsel %vm239, %v438, %v439
        %v441 = vrot.slane %v226, 5
        %v442 = vrot.slane %v441, 4
        %v443 = vrot.slane %v428, 5
        %v444 = vsel %vm239, %v442, %v443
        %s445 = scalar_lea.vmem %s2, 16
        %v446 = vld [vmem:[%s445] sm:$0xff]
        %v447 = vcombine.low %v432, %v436
        %v448 = vcombine.low %v440, %v444
        %v449 = vsel %vm260, %v447, 0
        %v451 = vsel %vm260, %v448, 0
        %453 = vmatprep.subr.mxu0 0.0
        %454 = vmatpush1.msra.mxu0 %v446
        %455 = vmatprep.subr.mxu0 0.0
        %456 = vmatpush1.msra.mxu0 0.0
        %457 = vmatprep.subr.mxu0 0.0
        %458 = vmatpush1.msra.mxu0 0.0
        %459 = vmatprep.subr.mxu0 0.0
        %460 = vmatpush1.msra.mxu0 0.0
        %461 = vmatprep.subr.mxu0 0.0
        %462 = vmatpush1.msra.mxu0 0.0
        %463 = vmatprep.subr.mxu0 0.0
        %464 = vmatpush1.msra.mxu0 0.0
        %465 = vmatprep.subr.mxu0 0.0
        %466 = vmatpush1.msra.mxu0 0.0
        %467 = vmatprep.subr.mxu0 0.0
        %468 = vmatpush1.msra.mxu0 0.0
        %469 = vmatprep.subr.mxu0 0.0
        %470 = vmatpush1.msra.mxu0 0.0
        %471 = vmatprep.subr.mxu0 0.0
        %472 = vmatpush1.msra.mxu0 0.0
        %473 = vmatprep.subr.mxu0 0.0
        %474 = vmatpush1.msra.mxu0 0.0
        %475 = vmatprep.subr.mxu0 0.0
        %476 = vmatpush1.msra.mxu0 0.0
        %477 = vmatprep.subr.mxu0 0.0
        %478 = vmatpush1.msra.mxu0 0.0
        %479 = vmatprep.subr.mxu0 0.0
        %480 = vmatpush1.msra.mxu0 0.0
        %481 = vmatprep.subr.mxu0 0.0
        %482 = vmatpush1.msra.mxu0 0.0
        %483 = vmatprep.subr.mxu0 0.0
        %484 = vmatpush1.msra.mxu0 0.0
        %485 = vmatprep.subr.mxu0 0.0
        %486 = vmatpush1.msra.mxu0 0.0
        %487 = vmatprep.subr.mxu0 0.0
        %488 = vmatpush1.msra.mxu0 0.0
        %489 = vmatprep.subr.mxu0 0.0
        %490 = vmatpush1.msra.mxu0 0.0
        %491 = vmatprep.subr.mxu0 0.0
        %492 = vmatpush1.msra.mxu0 0.0
        %493 = vmatprep.subr.mxu0 0.0
        %494 = vmatpush1.msra.mxu0 0.0
        %495 = vmatprep.subr.mxu0 0.0
        %496 = vmatpush1.msra.mxu0 0.0
        %497 = vmatprep.subr.mxu0 0.0
        %498 = vmatpush1.msra.mxu0 0.0
        %499 = vmatprep.subr.mxu0 0.0
        %500 = vmatpush1.msra.mxu0 0.0
        %501 = vmatprep.subr.mxu0 0.0
        %502 = vmatpush1.msra.mxu0 0.0
        %503 = vmatprep.subr.mxu0 0.0
        %504 = vmatpush1.msra.mxu0 0.0
        %505 = vmatprep.subr.mxu0 0.0
        %506 = vmatpush1.msra.mxu0 0.0
        %507 = vmatprep.subr.mxu0 0.0
        %508 = vmatpush1.msra.mxu0 0.0
        %509 = vmatprep.subr.mxu0 0.0
        %510 = vmatpush1.msra.mxu0 0.0
        %511 = vmatprep.subr.mxu0 0.0
        %512 = vmatpush1.msra.mxu0 0.0
        %513 = vmatprep.subr.mxu0 0.0
        %514 = vmatpush1.msra.mxu0 0.0
        %515 = vmatprep.subr.mxu0 0.0
        %516 = vmatpush1.msra.mxu0 0.0
        %517 = vmatprep.mubr.f32.mxu0 0.0
        %518 = vmatmul.mubr.f32.gmra.mrb[0].mxu0 %v449
        %v519 = vpop.f32.mrb[0].mxu0
        %v520 = vadd.f32 0.0, %v519
        %v521 = vpop.f32.mrb[0].mxu0
        %522 = vmatprep.mubr.f32.mxu0 0.0
        %523 = vmatmul.mubr.f32.gmra.mrb[0].mxu0 %v451
        %v524 = vpop.f32.mrb[0].mxu0
        %v525 = vadd.f32 0.0, %v524
        %v526 = vpop.f32.mrb[0].mxu0
        %527 = vdwg.mxu0
        %v528 = vadd.f32 %v417, %v520
        %v529 = vadd.f32 %v422, %v525
        %s530 = scalar_lea.vmem %s2, 24
        %v531 = vld [vmem:[%s530] sm:$0xff]
        %v536 = vcombine.low %v214, %v215
        %v537 = vcombine.low %v216, %v217
        %v538 = vsel %vm260, %v536, 0
        %v540 = vsel %vm260, %v537, 0
        %542 = vmatprep.subr.mxu0 0.0
        %543 = vmatpush1.msra.mxu0 %v531
        %544 = vmatprep.subr.mxu0 0.0
        %545 = vmatpush1.msra.mxu0 0.0
        %546 = vmatprep.subr.mxu0 0.0
        %547 = vmatpush1.msra.mxu0 0.0
        %548 = vmatprep.subr.mxu0 0.0
        %549 = vmatpush1.msra.mxu0 0.0
        %550 = vmatprep.subr.mxu0 0.0
        %551 = vmatpush1.msra.mxu0 0.0
        %552 = vmatprep.subr.mxu0 0.0
        %553 = vmatpush1.msra.mxu0 0.0
        %554 = vmatprep.subr.mxu0 0.0
        %555 = vmatpush1.msra.mxu0 0.0
        %556 = vmatprep.subr.mxu0 0.0
        %557 = vmatpush1.msra.mxu0 0.0
        %558 = vmatprep.subr.mxu0 0.0
        %559 = vmatpush1.msra.mxu0 0.0
        %560 = vmatprep.subr.mxu0 0.0
        %561 = vmatpush1.msra.mxu0 0.0
        %562 = vmatprep.subr.mxu0 0.0
        %563 = vmatpush1.msra.mxu0 0.0
        %564 = vmatprep.subr.mxu0 0.0
        %565 = vmatpush1.msra.mxu0 0.0
        %566 = vmatprep.subr.mxu0 0.0
        %567 = vmatpush1.msra.mxu0 0.0
        %568 = vmatprep.subr.mxu0 0.0
        %569 = vmatpush1.msra.mxu0 0.0
        %570 = vmatprep.subr.mxu0 0.0
        %571 = vmatpush1.msra.mxu0 0.0
        %572 = vmatprep.subr.mxu0 0.0
        %573 = vmatpush1.msra.mxu0 0.0
        %574 = vmatprep.subr.mxu0 0.0
        %575 = vmatpush1.msra.mxu0 0.0
        %576 = vmatprep.subr.mxu0 0.0
        %577 = vmatpush1.msra.mxu0 0.0
        %578 = vmatprep.subr.mxu0 0.0
        %579 = vmatpush1.msra.mxu0 0.0
        %580 = vmatprep.subr.mxu0 0.0
        %581 = vmatpush1.msra.mxu0 0.0
        %582 = vmatprep.subr.mxu0 0.0
        %583 = vmatpush1.msra.mxu0 0.0
        %584 = vmatprep.subr.mxu0 0.0
        %585 = vmatpush1.msra.mxu0 0.0
        %586 = vmatprep.subr.mxu0 0.0
        %587 = vmatpush1.msra.mxu0 0.0
        %588 = vmatprep.subr.mxu0 0.0
        %589 = vmatpush1.msra.mxu0 0.0
        %590 = vmatprep.subr.mxu0 0.0
        %591 = vmatpush1.msra.mxu0 0.0
        %592 = vmatprep.subr.mxu0 0.0
        %593 = vmatpush1.msra.mxu0 0.0
        %594 = vmatprep.subr.mxu0 0.0
        %595 = vmatpush1.msra.mxu0 0.0
        %596 = vmatprep.subr.mxu0 0.0
        %597 = vmatpush1.msra.mxu0 0.0
        %598 = vmatprep.subr.mxu0 0.0
        %599 = vmatpush1.msra.mxu0 0.0
        %600 = vmatprep.subr.mxu0 0.0
        %601 = vmatpush1.msra.mxu0 0.0
        %602 = vmatprep.subr.mxu0 0.0
        %603 = vmatpush1.msra.mxu0 0.0
        %604 = vmatprep.subr.mxu0 0.0
        %605 = vmatpush1.msra.mxu0 0.0
        %606 = vmatprep.mubr.f32.mxu0 0.0
        %607 = vmatmul.mubr.f32.gmra.mrb[0].mxu0 %v538
        %v608 = vpop.f32.mrb[0].mxu0
        %v609 = vadd.f32 0.0, %v608
        %v610 = vpop.f32.mrb[0].mxu0
        %611 = vmatprep.mubr.f32.mxu0 0.0
        %612 = vmatmul.mubr.f32.gmra.mrb[0].mxu0 %v540
        %v613 = vpop.f32.mrb[0].mxu0
        %v614 = vadd.f32 0.0, %v613
        %v615 = vpop.f32.mrb[0].mxu0
        %616 = vdwg.mxu0
        %v617 = vadd.f32 %v528, %v609
        %v618 = vadd.f32 %v529, %v614
        %v623 = vcombine.high %v210, %v210
        %v624 = vcombine.high %v211, %v211
        %v625 = vcombine.high %v212, %v212
        %v626 = vcombine.high %v213, %v213
        %v627 = vrot.slane %v210, 5
        %v628 = vrot.slane %v627, 4
        %v629 = vrot.slane %v623, 5
        %v630 = vsel %vm239, %v628, %v629
        %v631 = vrot.slane %v211, 5
        %v632 = vrot.slane %v631, 4
        %v633 = vrot.slane %v624, 5
        %v634 = vsel %vm239, %v632, %v633
        %v635 = vrot.slane %v212, 5
        %v636 = vrot.slane %v635, 4
        %v637 = vrot.slane %v625, 5
        %v638 = vsel %vm239, %v636, %v637
        %v639 = vrot.slane %v213, 5
        %v640 = vrot.slane %v639, 4
        %v641 = vrot.slane %v626, 5
        %v642 = vsel %vm239, %v640, %v641
        %s643 = scalar_lea.vmem %s2, 32
        %v644 = vld [vmem:[%s643] sm:$0xff]
        %v645 = vcombine.low %v630, %v634
        %v646 = vcombine.low %v638, %v642
        %v647 = vsel %vm260, %v645, 0
        %v649 = vsel %vm260, %v646, 0
        %651 = vmatprep.subr.mxu0 0.0
        %652 = vmatpush1.msra.mxu0 %v644
        %653 = vmatprep.subr.mxu0 0.0
        %654 = vmatpush1.msra.mxu0 0.0
        %655 = vmatprep.subr.mxu0 0.0
        %656 = vmatpush1.msra.mxu0 0.0
        %657 = vmatprep.subr.mxu0 0.0
        %658 = vmatpush1.msra.mxu0 0.0
        %659 = vmatprep.subr.mxu0 0.0
        %660 = vmatpush1.msra.mxu0 0.0
        %661 = vmatprep.subr.mxu0 0.0
        %662 = vmatpush1.msra.mxu0 0.0
        %663 = vmatprep.subr.mxu0 0.0
        %664 = vmatpush1.msra.mxu0 0.0
        %665 = vmatprep.subr.mxu0 0.0
        %666 = vmatpush1.msra.mxu0 0.0
        %667 = vmatprep.subr.mxu0 0.0
        %668 = vmatpush1.msra.mxu0 0.0
        %669 = vmatprep.subr.mxu0 0.0
        %670 = vmatpush1.msra.mxu0 0.0
        %671 = vmatprep.subr.mxu0 0.0
        %672 = vmatpush1.msra.mxu0 0.0
        %673 = vmatprep.subr.mxu0 0.0
        %674 = vmatpush1.msra.mxu0 0.0
        %675 = vmatprep.subr.mxu0 0.0
        %676 = vmatpush1.msra.mxu0 0.0
        %677 = vmatprep.subr.mxu0 0.0
        %678 = vmatpush1.msra.mxu0 0.0
        %679 = vmatprep.subr.mxu0 0.0
        %680 = vmatpush1.msra.mxu0 0.0
        %681 = vmatprep.subr.mxu0 0.0
        %682 = vmatpush1.msra.mxu0 0.0
        %683 = vmatprep.subr.mxu0 0.0
        %684 = vmatpush1.msra.mxu0 0.0
        %685 = vmatprep.subr.mxu0 0.0
        %686 = vmatpush1.msra.mxu0 0.0
        %687 = vmatprep.subr.mxu0 0.0
        %688 = vmatpush1.msra.mxu0 0.0
        %689 = vmatprep.subr.mxu0 0.0
        %690 = vmatpush1.msra.mxu0 0.0
        %691 = vmatprep.subr.mxu0 0.0
        %692 = vmatpush1.msra.mxu0 0.0
        %693 = vmatprep.subr.mxu0 0.0
        %694 = vmatpush1.msra.mxu0 0.0
        %695 = vmatprep.subr.mxu0 0.0
        %696 = vmatpush1.msra.mxu0 0.0
        %697 = vmatprep.subr.mxu0 0.0
        %698 = vmatpush1.msra.mxu0 0.0
        %699 = vmatprep.subr.mxu0 0.0
        %700 = vmatpush1.msra.mxu0 0.0
        %701 = vmatprep.subr.mxu0 0.0
        %702 = vmatpush1.msra.mxu0 0.0
        %703 = vmatprep.subr.mxu0 0.0
        %704 = vmatpush1.msra.mxu0 0.0
        %705 = vmatprep.subr.mxu0 0.0
        %706 = vmatpush1.msra.mxu0 0.0
        %707 = vmatprep.subr.mxu0 0.0
        %708 = vmatpush1.msra.mxu0 0.0
        %709 = vmatprep.subr.mxu0 0.0
        %710 = vmatpush1.msra.mxu0 0.0
        %711 = vmatprep.subr.mxu0 0.0
        %712 = vmatpush1.msra.mxu0 0.0
        %713 = vmatprep.subr.mxu0 0.0
        %714 = vmatpush1.msra.mxu0 0.0
        %715 = vmatprep.mubr.f32.mxu0 0.0
        %716 = vmatmul.mubr.f32.gmra.mrb[0].mxu0 %v647
        %v717 = vpop.f32.mrb[0].mxu0
        %v718 = vadd.f32 0.0, %v717
        %v719 = vpop.f32.mrb[0].mxu0
        %720 = vmatprep.mubr.f32.mxu0 0.0
        %721 = vmatmul.mubr.f32.gmra.mrb[0].mxu0 %v649
        %v722 = vpop.f32.mrb[0].mxu0
        %v723 = vadd.f32 0.0, %v722
        %v724 = vpop.f32.mrb[0].mxu0
        %725 = vdwg.mxu0
        %v726 = vadd.f32 %v617, %v718
        %v727 = vadd.f32 %v618, %v723
        %v728 = vcombine.high %v214, %v214
        %v729 = vcombine.high %v215, %v215
        %v730 = vcombine.high %v216, %v216
        %v731 = vcombine.high %v217, %v217
        %v732 = vrot.slane %v214, 5
        %v733 = vrot.slane %v732, 4
        %v734 = vrot.slane %v728, 5
        %v735 = vsel %vm239, %v733, %v734
        %v736 = vrot.slane %v215, 5
        %v737 = vrot.slane %v736, 4
        %v738 = vrot.slane %v729, 5
        %v739 = vsel %vm239, %v737, %v738
        %v740 = vrot.slane %v216, 5
        %v741 = vrot.slane %v740, 4
        %v742 = vrot.slane %v730, 5
        %v743 = vsel %vm239, %v741, %v742
        %v744 = vrot.slane %v217, 5
        %v745 = vrot.slane %v744, 4
        %v746 = vrot.slane %v731, 5
        %v747 = vsel %vm239, %v745, %v746
        %s748 = scalar_lea.vmem %s2, 40
        %v749 = vld [vmem:[%s748] sm:$0xff]
        %v750 = vcombine.low %v735, %v739
        %v751 = vcombine.low %v743, %v747
        %v752 = vsel %vm260, %v750, 0
        %v754 = vsel %vm260, %v751, 0
        %756 = vmatprep.subr.mxu0 0.0
        %757 = vmatpush1.msra.mxu0 %v749
        %758 = vmatprep.subr.mxu0 0.0
        %759 = vmatpush1.msra.mxu0 0.0
        %760 = vmatprep.subr.mxu0 0.0
        %761 = vmatpush1.msra.mxu0 0.0
        %762 = vmatprep.subr.mxu0 0.0
        %763 = vmatpush1.msra.mxu0 0.0
        %764 = vmatprep.subr.mxu0 0.0
        %765 = vmatpush1.msra.mxu0 0.0
        %766 = vmatprep.subr.mxu0 0.0
        %767 = vmatpush1.msra.mxu0 0.0
        %768 = vmatprep.subr.mxu0 0.0
        %769 = vmatpush1.msra.mxu0 0.0
        %770 = vmatprep.subr.mxu0 0.0
        %771 = vmatpush1.msra.mxu0 0.0
        %772 = vmatprep.subr.mxu0 0.0
        %773 = vmatpush1.msra.mxu0 0.0
        %774 = vmatprep.subr.mxu0 0.0
        %775 = vmatpush1.msra.mxu0 0.0
        %776 = vmatprep.subr.mxu0 0.0
        %777 = vmatpush1.msra.mxu0 0.0
        %778 = vmatprep.subr.mxu0 0.0
        %779 = vmatpush1.msra.mxu0 0.0
        %780 = vmatprep.subr.mxu0 0.0
        %781 = vmatpush1.msra.mxu0 0.0
        %782 = vmatprep.subr.mxu0 0.0
        %783 = vmatpush1.msra.mxu0 0.0
        %784 = vmatprep.subr.mxu0 0.0
        %785 = vmatpush1.msra.mxu0 0.0
        %786 = vmatprep.subr.mxu0 0.0
        %787 = vmatpush1.msra.mxu0 0.0
        %788 = vmatprep.subr.mxu0 0.0
        %789 = vmatpush1.msra.mxu0 0.0
        %790 = vmatprep.subr.mxu0 0.0
        %791 = vmatpush1.msra.mxu0 0.0
        %792 = vmatprep.subr.mxu0 0.0
        %793 = vmatpush1.msra.mxu0 0.0
        %794 = vmatprep.subr.mxu0 0.0
        %795 = vmatpush1.msra.mxu0 0.0
        %796 = vmatprep.subr.mxu0 0.0
        %797 = vmatpush1.msra.mxu0 0.0
        %798 = vmatprep.subr.mxu0 0.0
        %799 = vmatpush1.msra.mxu0 0.0
        %800 = vmatprep.subr.mxu0 0.0
        %801 = vmatpush1.msra.mxu0 0.0
        %802 = vmatprep.subr.mxu0 0.0
        %803 = vmatpush1.msra.mxu0 0.0
        %804 = vmatprep.subr.mxu0 0.0
        %805 = vmatpush1.msra.mxu0 0.0
        %806 = vmatprep.subr.mxu0 0.0
        %807 = vmatpush1.msra.mxu0 0.0
        %808 = vmatprep.subr.mxu0 0.0
        %809 = vmatpush1.msra.mxu0 0.0
        %810 = vmatprep.subr.mxu0 0.0
        %811 = vmatpush1.msra.mxu0 0.0
        %812 = vmatprep.subr.mxu0 0.0
        %813 = vmatpush1.msra.mxu0 0.0
        %814 = vmatprep.subr.mxu0 0.0
        %815 = vmatpush1.msra.mxu0 0.0
        %816 = vmatprep.subr.mxu0 0.0
        %817 = vmatpush1.msra.mxu0 0.0
        %818 = vmatprep.subr.mxu0 0.0
        %819 = vmatpush1.msra.mxu0 0.0
        %820 = vmatprep.mubr.f32.mxu0 0.0
        %821 = vmatmul.mubr.f32.gmra.mrb[0].mxu0 %v752
        %v822 = vpop.f32.mrb[0].mxu0
        %v823 = vadd.f32 0.0, %v822
        %v824 = vpop.f32.mrb[0].mxu0
        %825 = vmatprep.mubr.f32.mxu0 0.0
        %826 = vmatmul.mubr.f32.gmra.mrb[0].mxu0 %v754
        %v827 = vpop.f32.mrb[0].mxu0
        %v828 = vadd.f32 0.0, %v827
        %v829 = vpop.f32.mrb[0].mxu0
        %830 = vdwg.mxu0
        %v831 = vadd.f32 %v726, %v823
        %v832 = vadd.f32 %v727, %v828
        %s833 = scalar_lea.vmem %s2, 48
        %v834 = vld [vmem:[%s833] sm:$0xff]
        %v836 = vcombine.low %v224, %v225
        %v837 = vcombine.low %v226, %v227
        %v838 = vsel %vm260, %v836, 0
        %v840 = vsel %vm260, %v837, 0
        %842 = vmatprep.subr.mxu0 0.0
        %843 = vmatpush1.msra.mxu0 %v834
        %844 = vmatprep.subr.mxu0 0.0
        %845 = vmatpush1.msra.mxu0 0.0
        %846 = vmatprep.subr.mxu0 0.0
        %847 = vmatpush1.msra.mxu0 0.0
        %848 = vmatprep.subr.mxu0 0.0
        %849 = vmatpush1.msra.mxu0 0.0
        %850 = vmatprep.subr.mxu0 0.0
        %851 = vmatpush1.msra.mxu0 0.0
        %852 = vmatprep.subr.mxu0 0.0
        %853 = vmatpush1.msra.mxu0 0.0
        %854 = vmatprep.subr.mxu0 0.0
        %855 = vmatpush1.msra.mxu0 0.0
        %856 = vmatprep.subr.mxu0 0.0
        %857 = vmatpush1.msra.mxu0 0.0
        %858 = vmatprep.subr.mxu0 0.0
        %859 = vmatpush1.msra.mxu0 0.0
        %860 = vmatprep.subr.mxu0 0.0
        %861 = vmatpush1.msra.mxu0 0.0
        %862 = vmatprep.subr.mxu0 0.0
        %863 = vmatpush1.msra.mxu0 0.0
        %864 = vmatprep.subr.mxu0 0.0
        %865 = vmatpush1.msra.mxu0 0.0
        %866 = vmatprep.subr.mxu0 0.0
        %867 = vmatpush1.msra.mxu0 0.0
        %868 = vmatprep.subr.mxu0 0.0
        %869 = vmatpush1.msra.mxu0 0.0
        %870 = vmatprep.subr.mxu0 0.0
        %871 = vmatpush1.msra.mxu0 0.0
        %872 = vmatprep.subr.mxu0 0.0
        %873 = vmatpush1.msra.mxu0 0.0
        %874 = vmatprep.subr.mxu0 0.0
        %875 = vmatpush1.msra.mxu0 0.0
        %876 = vmatprep.subr.mxu0 0.0
        %877 = vmatpush1.msra.mxu0 0.0
        %878 = vmatprep.subr.mxu0 0.0
        %879 = vmatpush1.msra.mxu0 0.0
        %880 = vmatprep.subr.mxu0 0.0
        %881 = vmatpush1.msra.mxu0 0.0
        %882 = vmatprep.subr.mxu0 0.0
        %883 = vmatpush1.msra.mxu0 0.0
        %884 = vmatprep.subr.mxu0 0.0
        %885 = vmatpush1.msra.mxu0 0.0
        %886 = vmatprep.subr.mxu0 0.0
        %887 = vmatpush1.msra.mxu0 0.0
        %888 = vmatprep.subr.mxu0 0.0
        %889 = vmatpush1.msra.mxu0 0.0
        %890 = vmatprep.subr.mxu0 0.0
        %891 = vmatpush1.msra.mxu0 0.0
        %892 = vmatprep.subr.mxu0 0.0
        %893 = vmatpush1.msra.mxu0 0.0
        %894 = vmatprep.subr.mxu0 0.0
        %895 = vmatpush1.msra.mxu0 0.0
        %896 = vmatprep.subr.mxu0 0.0
        %897 = vmatpush1.msra.mxu0 0.0
        %898 = vmatprep.subr.mxu0 0.0
        %899 = vmatpush1.msra.mxu0 0.0
        %900 = vmatprep.subr.mxu0 0.0
        %901 = vmatpush1.msra.mxu0 0.0
        %902 = vmatprep.subr.mxu0 0.0
        %903 = vmatpush1.msra.mxu0 0.0
        %904 = vmatprep.subr.mxu0 0.0
        %905 = vmatpush1.msra.mxu0 0.0
        %906 = vmatprep.mubr.f32.mxu0 0.0
        %907 = vmatmul.mubr.f32.gmra.mrb[0].mxu0 %v838
        %v908 = vpop.f32.mrb[0].mxu0
        %v909 = vadd.f32 0.0, %v908
        %v910 = vpop.f32.mrb[0].mxu0
        %911 = vmatprep.mubr.f32.mxu0 0.0
        %912 = vmatmul.mubr.f32.gmra.mrb[0].mxu0 %v840
        %v913 = vpop.f32.mrb[0].mxu0
        %v914 = vadd.f32 0.0, %v913
        %v915 = vpop.f32.mrb[0].mxu0
        %916 = vdwg.mxu0
        %v917 = vadd.f32 %v831, %v909
        %v918 = vadd.f32 %v832, %v914
        %v920 = vcombine.high %v222, %v222
        %v921 = vrot.slane %v222, 5
        %v922 = vrot.slane %v921, 4
        %v923 = vrot.slane %v920, 5
        %v924 = vsel %vm239, %v922, %v923
        %s925 = scalar_lea.vmem %s2, 56
        %v926 = vld [vmem:[%s925] sm:$0xff]
        %v927 = vcombine.low %v247, %v251
        %v928 = vcombine.low %v255, %v924
        %v929 = vsel %vm260, %v927, 0
        %v931 = vsel %vm260, %v928, 0
        %933 = vmatprep.subr.mxu0 0.0
        %934 = vmatpush1.msra.mxu0 %v926
        %935 = vmatprep.subr.mxu0 0.0
        %936 = vmatpush1.msra.mxu0 0.0
        %937 = vmatprep.subr.mxu0 0.0
        %938 = vmatpush1.msra.mxu0 0.0
        %939 = vmatprep.subr.mxu0 0.0
        %940 = vmatpush1.msra.mxu0 0.0
        %941 = vmatprep.subr.mxu0 0.0
        %942 = vmatpush1.msra.mxu0 0.0
        %943 = vmatprep.subr.mxu0 0.0
        %944 = vmatpush1.msra.mxu0 0.0
        %945 = vmatprep.subr.mxu0 0.0
        %946 = vmatpush1.msra.mxu0 0.0
        %947 = vmatprep.subr.mxu0 0.0
        %948 = vmatpush1.msra.mxu0 0.0
        %949 = vmatprep.subr.mxu0 0.0
        %950 = vmatpush1.msra.mxu0 0.0
        %951 = vmatprep.subr.mxu0 0.0
        %952 = vmatpush1.msra.mxu0 0.0
        %953 = vmatprep.subr.mxu0 0.0
        %954 = vmatpush1.msra.mxu0 0.0
        %955 = vmatprep.subr.mxu0 0.0
        %956 = vmatpush1.msra.mxu0 0.0
        %957 = vmatprep.subr.mxu0 0.0
        %958 = vmatpush1.msra.mxu0 0.0
        %959 = vmatprep.subr.mxu0 0.0
        %960 = vmatpush1.msra.mxu0 0.0
        %961 = vmatprep.subr.mxu0 0.0
        %962 = vmatpush1.msra.mxu0 0.0
        %963 = vmatprep.subr.mxu0 0.0
        %964 = vmatpush1.msra.mxu0 0.0
        %965 = vmatprep.subr.mxu0 0.0
        %966 = vmatpush1.msra.mxu0 0.0
        %967 = vmatprep.subr.mxu0 0.0
        %968 = vmatpush1.msra.mxu0 0.0
        %969 = vmatprep.subr.mxu0 0.0
        %970 = vmatpush1.msra.mxu0 0.0
        %971 = vmatprep.subr.mxu0 0.0
        %972 = vmatpush1.msra.mxu0 0.0
        %973 = vmatprep.subr.mxu0 0.0
        %974 = vmatpush1.msra.mxu0 0.0
        %975 = vmatprep.subr.mxu0 0.0
        %976 = vmatpush1.msra.mxu0 0.0
        %977 = vmatprep.subr.mxu0 0.0
        %978 = vmatpush1.msra.mxu0 0.0
        %979 = vmatprep.subr.mxu0 0.0
        %980 = vmatpush1.msra.mxu0 0.0
        %981 = vmatprep.subr.mxu0 0.0
        %982 = vmatpush1.msra.mxu0 0.0
        %983 = vmatprep.subr.mxu0 0.0
        %984 = vmatpush1.msra.mxu0 0.0
        %985 = vmatprep.subr.mxu0 0.0
        %986 = vmatpush1.msra.mxu0 0.0
        %987 = vmatprep.subr.mxu0 0.0
        %988 = vmatpush1.msra.mxu0 0.0
        %989 = vmatprep.subr.mxu0 0.0
        %990 = vmatpush1.msra.mxu0 0.0
        %991 = vmatprep.subr.mxu0 0.0
        %992 = vmatpush1.msra.mxu0 0.0
        %993 = vmatprep.subr.mxu0 0.0
        %994 = vmatpush1.msra.mxu0 0.0
        %995 = vmatprep.subr.mxu0 0.0
        %996 = vmatpush1.msra.mxu0 0.0
        %997 = vmatprep.mubr.f32.mxu0 0.0
        %998 = vmatmul.mubr.f32.gmra.mrb[0].mxu0 %v929
        %v999 = vpop.f32.mrb[0].mxu0
        %v1000 = vadd.f32 0.0, %v999
        %v1001 = vpop.f32.mrb[0].mxu0
        %1002 = vmatprep.mubr.f32.mxu0 0.0
        %1003 = vmatmul.mubr.f32.gmra.mrb[0].mxu0 %v931
        %v1004 = vpop.f32.mrb[0].mxu0
        %v1005 = vadd.f32 0.0, %v1004
        %v1006 = vpop.f32.mrb[0].mxu0
        %1007 = vdwg.mxu0
        %v1008 = vadd.f32 %v917, %v1000
        %v1009 = vadd.f32 %v918, %v1005
        %v1010 = vcombine.high %v227, %v227
        %v1011 = vrot.slane %v227, 5
        %v1012 = vrot.slane %v1011, 4
        %v1013 = vrot.slane %v1010, 5
        %v1014 = vsel %vm239, %v1012, %v1013
        %s1015 = scalar_lea.vmem %s2, 64
        %v1016 = vld [vmem:[%s1015] sm:$0xff]
        %v1017 = vcombine.low %v436, %v440
        %v1018 = vcombine.low %v444, %v1014
        %v1019 = vsel %vm260, %v1017, 0
        %v1021 = vsel %vm260, %v1018, 0
        %1023 = vmatprep.subr.mxu0 0.0
        %1024 = vmatpush1.msra.mxu0 %v1016
        %1025 = vmatprep.subr.mxu0 0.0
        %1026 = vmatpush1.msra.mxu0 0.0
        %1027 = vmatprep.subr.mxu0 0.0
        %1028 = vmatpush1.msra.mxu0 0.0
        %1029 = vmatprep.subr.mxu0 0.0
        %1030 = vmatpush1.msra.mxu0 0.0
        %1031 = vmatprep.subr.mxu0 0.0
        %1032 = vmatpush1.msra.mxu0 0.0
        %1033 = vmatprep.subr.mxu0 0.0
        %1034 = vmatpush1.msra.mxu0 0.0
        %1035 = vmatprep.subr.mxu0 0.0
        %1036 = vmatpush1.msra.mxu0 0.0
        %1037 = vmatprep.subr.mxu0 0.0
        %1038 = vmatpush1.msra.mxu0 0.0
        %1039 = vmatprep.subr.mxu0 0.0
        %1040 = vmatpush1.msra.mxu0 0.0
        %1041 = vmatprep.subr.mxu0 0.0
        %1042 = vmatpush1.msra.mxu0 0.0
        %1043 = vmatprep.subr.mxu0 0.0
        %1044 = vmatpush1.msra.mxu0 0.0
        %1045 = vmatprep.subr.mxu0 0.0
        %1046 = vmatpush1.msra.mxu0 0.0
        %1047 = vmatprep.subr.mxu0 0.0
        %1048 = vmatpush1.msra.mxu0 0.0
        %1049 = vmatprep.subr.mxu0 0.0
        %1050 = vmatpush1.msra.mxu0 0.0
        %1051 = vmatprep.subr.mxu0 0.0
        %1052 = vmatpush1.msra.mxu0 0.0
        %1053 = vmatprep.subr.mxu0 0.0
        %1054 = vmatpush1.msra.mxu0 0.0
        %1055 = vmatprep.subr.mxu0 0.0
        %1056 = vmatpush1.msra.mxu0 0.0
        %1057 = vmatprep.subr.mxu0 0.0
        %1058 = vmatpush1.msra.mxu0 0.0
        %1059 = vmatprep.subr.mxu0 0.0
        %1060 = vmatpush1.msra.mxu0 0.0
        %1061 = vmatprep.subr.mxu0 0.0
        %1062 = vmatpush1.msra.mxu0 0.0
        %1063 = vmatprep.subr.mxu0 0.0
        %1064 = vmatpush1.msra.mxu0 0.0
        %1065 = vmatprep.subr.mxu0 0.0
        %1066 = vmatpush1.msra.mxu0 0.0
        %1067 = vmatprep.subr.mxu0 0.0
        %1068 = vmatpush1.msra.mxu0 0.0
        %1069 = vmatprep.subr.mxu0 0.0
        %1070 = vmatpush1.msra.mxu0 0.0
        %1071 = vmatprep.subr.mxu0 0.0
        %1072 = vmatpush1.msra.mxu0 0.0
        %1073 = vmatprep.subr.mxu0 0.0
        %1074 = vmatpush1.msra.mxu0 0.0
        %1075 = vmatprep.subr.mxu0 0.0
        %1076 = vmatpush1.msra.mxu0 0.0
        %1077 = vmatprep.subr.mxu0 0.0
        %1078 = vmatpush1.msra.mxu0 0.0
        %1079 = vmatprep.subr.mxu0 0.0
        %1080 = vmatpush1.msra.mxu0 0.0
        %1081 = vmatprep.subr.mxu0 0.0
        %1082 = vmatpush1.msra.mxu0 0.0
        %1083 = vmatprep.subr.mxu0 0.0
        %1084 = vmatpush1.msra.mxu0 0.0
        %1085 = vmatprep.subr.mxu0 0.0
        %1086 = vmatpush1.msra.mxu0 0.0
        %1087 = vmatprep.mubr.f32.mxu0 0.0
        %1088 = vmatmul.mubr.f32.gmra.mrb[0].mxu0 %v1019
        %v1089 = vpop.f32.mrb[0].mxu0
        %v1090 = vadd.f32 0.0, %v1089
        %v1091 = vpop.f32.mrb[0].mxu0
        %1092 = vmatprep.mubr.f32.mxu0 0.0
        %1093 = vmatmul.mubr.f32.gmra.mrb[0].mxu0 %v1021
        %v1094 = vpop.f32.mrb[0].mxu0
        %v1095 = vadd.f32 0.0, %v1094
        %v1096 = vpop.f32.mrb[0].mxu0
        %1097 = vdwg.mxu0
        %v1098 = vadd.f32 %v1008, %v1090
        %v1099 = vadd.f32 %v1009, %v1095
        %vm1100 = vcmask 130048
        %v1101 = vsel %vm1100, %v1098, 0.0
        %v1102 = vsel %vm1100, %v1099, 0.0
        %v1103 = vadd.f32 %v1101, %v1102
        %v1104 = vrot.slane %v1103, 4
        %v1105 = vadd.f32 %v1103, %v1104
        %v1106 = vrot.slane %v1105, 2
        %v1107 = vadd.f32 %v1105, %v1106
        %v1108 = vrot.slane %v1107, 1
        %v1109 = vadd.f32 %v1107, %v1108
        %v1110 = vadd.f32 %v1109, 0.0
        %v1111 = vmul.f32 %v1098, %v1098
        %v1112 = vmul.f32 %v1099, %v1099
        %v1113 = vsel %vm1100, %v1111, 0.0
        %v1114 = vsel %vm1100, %v1112, 0.0
        %v1115 = vadd.f32 %v1113, %v1114
        %v1116 = vrot.slane %v1115, 4
        %v1117 = vadd.f32 %v1115, %v1116
        %v1118 = vrot.slane %v1117, 2
        %v1119 = vadd.f32 %v1117, %v1118
        %v1120 = vrot.slane %v1119, 1
        %v1121 = vadd.f32 %v1119, %v1120
        %v1122 = vadd.f32 %v1121, 0.0
        %v1124 = vlaneseq
        %v1125 = vshrl.u32 %v1124, 7
        %v1126 = vsub.s32 0, %v1125
        %v1127 = vrot.slane %v209, %v1126
        %v1129 = vadd.f32 %v1098, %v1127
        %v1130 = vadd.f32 %v1099, %v1127
        %1131 = vst.msk [vmem:[%s208] sm:$0xff] %vm1100, %v1129
        %1132 = vst.msk [vmem:[%s208 + $0x8] sm:$0xff] %vm1100, %v1130
        %vm1133 = vcmask 1040384
        %v1134 = vsel %vm1133, %v1110, %v1122
        %vm1135 = vcmask 123904
        %1136 = vst.msk [vmem:[%s198] sm:$0x3] %vm1135, %v1134
        %p1137 = scmp.lt.s32.totalorder %s19, 1
        %s1138 = scalar_select %p1137, %s19, 1
        %s1139 = smul.addr %s1138, 2
        %s1140 = smul.addr %s1139, 8
        %s1141 = scalar_lea.vmem %s3, %s1140
        %s1142 = sand.u32 %s121, 1
        %s1143 = scalar_lea.sflag [#allocation3], %s1142
        %s1144 = sand.u32 %s121, 1
        %s1145 = smul.addr %s1144, 2
        %s1146 = scalar_lea.vmem [#allocation2], %s1145
        // Predicated region
        $region33: #{forward.5} parent=31 // pred_check
          %p1147 = pneg %p105
        $region34: #{forward.5} parent=31 // pred_check_branch
          %1149 = sbr.rel (%p1147) target = $region36
        $region35: #{forward.5} parent=31 // pred_region
          _
        $region36: #{forward.5} parent=31 // pred_fallthru
          _
        // Predicated region
        $region37: #{forward.5} parent=31 // pred_check
          %p1150 = pneg %p131
        $region38: #{forward.5} parent=31 // pred_check_branch
          %1152 = sbr.rel (%p1150) target = $region40
        $region39: #{forward.5} parent=31 // pred_region
          %s1154 = ssub.s32 32, 32
          %1155 = vsyncadd %s1143, %s1154
          %s1156 = smul.addr %s19, 32
          %s1157 = scalar_lea.hbm %s4, %s1156
          %s1159 = sshll.u32 %s1146, 4
          %s1160 = int_to_ptr.vmem [resolvable:$true] %s1159
          %1162 = dma.vmem_to_hbm [thread:$0]  %s1160, 32, %s1157, %s1143
        $region40: #{forward.5} parent=31 // pred_fallthru
          _
      $region32: #{forward.5} parent=5 // pred_fallthru
        _
      %p1163 = scmp.le.s32.totalorder 2, %s14
      // Predicated region
      $region41: #{forward.5} parent=5 // pred_check
        %p1164 = pneg %p1163
      $region42: #{forward.5} parent=5 // pred_check_branch
        %1166 = sbr.rel (%p1164) target = $region44
      $region43: #{forward.5} parent=5 // pred_region
        %s1167 = ssub.s32 %s14, 2
        // Predicated region
        $region45: #{forward.5} parent=43 // pred_check
          %p1168 = pneg %p111
        $region46: #{forward.5} parent=43 // pred_check_branch
          %1170 = sbr.rel (%p1168) target = $region48
        $region47: #{forward.5} parent=43 // pred_region
          %p1171 = scmp.lt.s32.totalorder %s20, 1
          %s1172 = scalar_select %p1171, %s20, 1
          %s1173 = smul.addr %s1172, 2
          %s1174 = smul.addr %s1173, 8
          %s1175 = scalar_lea.vmem %s3, %s1174
        $region48: #{forward.5} parent=43 // pred_fallthru
          _
        // Predicated region
        $region49: #{forward.5} parent=43 // pred_check
          %p1176 = pneg %p137
        $region50: #{forward.5} parent=43 // pred_check_branch
          %1178 = sbr.rel (%p1176) target = $region52
        $region51: #{forward.5} parent=43 // pred_region
          %s1179 = sand.u32 %s122, 1
          %s1180 = scalar_lea.sflag [#allocation3], %s1179
          %s1181 = sand.u32 %s122, 1
          %s1182 = smul.addr %s1181, 2
          %s1183 = scalar_lea.vmem [#allocation2], %s1182
          %1184 = dma.done %s1180, 32
        $region52: #{forward.5} parent=43 // pred_fallthru
          _
      $region44: #{forward.5} parent=5 // pred_fallthru
        _
    $region6: #{forward.5} parent=1 // loop_footer
      %s18 = sadd.s32 1, %s14
    $region7: #{forward.5} parent=1 // loop_footer_branch
      %13 = sbr.rel target = $region3
    $region8: #{forward.5} parent=1 // loop_exit
      _
    %1185 = vsyncpa [#allocation3], 1
    %s1186 = scalar_lea.sflag [#allocation3], 1
    %1187 = vsyncpa %s1186, 1

// kernel: forward.4
$region0: #{forward.4}
  #allocation0 [shape = 'u32[]', space=smem, size = 0x4, offset = 0x4, fixed_abs, tag = 'smem constant byte address 0x4 - core index']
  #allocation1 [shape = 'u32[144,128]{1,0:T(1,128)}', space=vmem, size = 0x12000, scoped, tag = 'internal scratch']
  %s0 = inlined_call_operand.vmem [shape: f32[2,4,9,9,4], index: 0, kind: input, shape index: {}]
  %s1 = inlined_call_operand.vmem [shape: f32[1,8], index: 1, kind: input, shape index: {}]
  %s2 = inlined_call_operand.vmem [shape: f32[9,4,8], index: 2, kind: input, shape index: {}]
  %s3 = inlined_call_operand.vmem [shape: f32[2,64,8], index: 3, kind: output, shape index: {0}]
  %s4 = inlined_call_operand.vmem [shape: f32[2,2,8], index: 4, kind: output, shape index: {1}]
  %5 = xla_tuple %s3, %s4
  %s6 = sld [smem:[#allocation0]]
  $region53: #{forward.4} parent=0
    _
  %s8 = ssub.s32 1, %s6
  %s9 = scalar_select 0, %s8, %s6
  loop: start=0, step=1, limit=4
  $region2: #{forward.4} parent=0 // loop_pre_header
    _
  $region3: #{forward.4} parent=0 // loop_header
    %s11 = sphi 0, %s15
    %p12 = scmp.ge.s32.totalorder %s11, 4
    %s21 = sphi 0, %s23
    %s24 = sphi 0, %s21
    %s25 = sphi 0, %s24
    %s41 = sphi 0, %s25
    %s45 = sphi 0, %s45
    %s47 = sphi 0, %s45
    %s48 = sphi 0, %s47
    %s62 = sphi 0, %s48
    %s66 = sphi 0, %s66
    %s68 = sphi 0, %s66
    %s69 = sphi 0, %s68
    %s83 = sphi 0, %s69
    %s89 = sphi 0, %s91
    %s92 = sphi 0, %s89
    %s93 = sphi 0, %s92
    %s109 = sphi 0, %s93
    %s115 = sphi 0, %s117
    %s118 = sphi 0, %s115
    %s119 = sphi 0, %s118
    %s135 = sphi 0, %s119
  $region4: #{forward.4} parent=0 // loop_header_branch
    %14 = sbr.rel (%p12) target = $region8
  $region5: #{forward.4} parent=0 // loop_body
    %s16 = ssub.s32 %s11, 1
    %s17 = ssub.s32 %s11, 2
    %s18 = sadd.s32 %s11, 1
    %s19 = ssub.s32 %s11, %s18
    %p20 = scmp.eq.s32.totalorder %s19, 0
    %s22 = sadd.s32 %s21, 1
    %s23 = scalar_select %p20, %s21, %s22
    %p26 = pneg %p20
    %p27 = scmp.eq.s32.totalorder %s11, 1
    %p28 = por %p26, %p27
    %p29 = scmp.ne.s32.totalorder %s21, %s24
    %p30 = scmp.eq.s32.totalorder %s11, 0
    %p31 = por %p29, %p30
    %p32 = scmp.ne.s32.totalorder %s21, %s24
    %p33 = scmp.eq.s32.totalorder %s16, 1
    %p34 = por %p32, %p33
    %p35 = scmp.ne.s32.totalorder %s24, %s25
    %p36 = scmp.eq.s32.totalorder %s16, 0
    %p37 = por %p35, %p36
    %p38 = scmp.ne.s32.totalorder %s24, %s25
    %p39 = scmp.eq.s32.totalorder %s17, 1
    %p40 = por %p38, %p39
    %p42 = scmp.ne.s32.totalorder %s25, %s41
    %p43 = scmp.eq.s32.totalorder %s17, 0
    %p44 = por %p42, %p43
    %s46 = sadd.s32 %s45, 1
    %p49 = scmp.eq.s32.totalorder %s11, 1
    %p50 = scmp.ne.s32.totalorder %s45, %s47
    %p51 = scmp.eq.s32.totalorder %s11, 0
    %p52 = por %p50, %p51
    %p53 = scmp.ne.s32.totalorder %s45, %s47
    %p54 = scmp.eq.s32.totalorder %s16, 1
    %p55 = por %p53, %p54
    %p56 = scmp.ne.s32.totalorder %s47, %s48
    %p57 = scmp.eq.s32.totalorder %s16, 0
    %p58 = por %p56, %p57
    %p59 = scmp.ne.s32.totalorder %s47, %s48
    %p60 = scmp.eq.s32.totalorder %s17, 1
    %p61 = por %p59, %p60
    %p63 = scmp.ne.s32.totalorder %s48, %s62
    %p64 = scmp.eq.s32.totalorder %s17, 0
    %p65 = por %p63, %p64
    %s67 = sadd.s32 %s66, 1
    %p70 = scmp.eq.s32.totalorder %s11, 1
    %p71 = scmp.ne.s32.totalorder %s66, %s68
    %p72 = scmp.eq.s32.totalorder %s11, 0
    %p73 = por %p71, %p72
    %p74 = scmp.ne.s32.totalorder %s66, %s68
    %p75 = scmp.eq.s32.totalorder %s16, 1
    %p76 = por %p74, %p75
    %p77 = scmp.ne.s32.totalorder %s68, %s69
    %p78 = scmp.eq.s32.totalorder %s16, 0
    %p79 = por %p77, %p78
    %p80 = scmp.ne.s32.totalorder %s68, %s69
    %p81 = scmp.eq.s32.totalorder %s17, 1
    %p82 = por %p80, %p81
    %p84 = scmp.ne.s32.totalorder %s69, %s83
    %p85 = scmp.eq.s32.totalorder %s17, 0
    %p86 = por %p84, %p85
    %s87 = ssub.s32 %s11, %s18
    %p88 = scmp.eq.s32.totalorder %s87, 0
    %s90 = sadd.s32 %s89, 1
    %s91 = scalar_select %p88, %s89, %s90
    %p94 = pneg %p88
    %p95 = scmp.eq.s32.totalorder %s11, 1
    %p96 = por %p94, %p95
    %p97 = scmp.ne.s32.totalorder %s89, %s92
    %p98 = scmp.eq.s32.totalorder %s11, 0
    %p99 = por %p97, %p98
    %p100 = scmp.ne.s32.totalorder %s89, %s92
    %p101 = scmp.eq.s32.totalorder %s16, 1
    %p102 = por %p100, %p101
    %p103 = scmp.ne.s32.totalorder %s92, %s93
    %p104 = scmp.eq.s32.totalorder %s16, 0
    %p105 = por %p103, %p104
    %p106 = scmp.ne.s32.totalorder %s92, %s93
    %p107 = scmp.eq.s32.totalorder %s17, 1
    %p108 = por %p106, %p107
    %p110 = scmp.ne.s32.totalorder %s93, %s109
    %p111 = scmp.eq.s32.totalorder %s17, 0
    %p112 = por %p110, %p111
    %s113 = ssub.s32 %s11, %s18
    %p114 = scmp.eq.s32.totalorder %s113, 0
    %s116 = sadd.s32 %s115, 1
    %s117 = scalar_select %p114, %s115, %s116
    %p120 = pneg %p114
    %p121 = scmp.eq.s32.totalorder %s11, 1
    %p122 = por %p120, %p121
    %p123 = scmp.ne.s32.totalorder %s115, %s118
    %p124 = scmp.eq.s32.totalorder %s11, 0
    %p125 = por %p123, %p124
    %p126 = scmp.ne.s32.totalorder %s115, %s118
    %p127 = scmp.eq.s32.totalorder %s16, 1
    %p128 = por %p126, %p127
    %p129 = scmp.ne.s32.totalorder %s118, %s119
    %p130 = scmp.eq.s32.totalorder %s16, 0
    %p131 = por %p129, %p130
    %p132 = scmp.ne.s32.totalorder %s118, %s119
    %p133 = scmp.eq.s32.totalorder %s17, 1
    %p134 = por %p132, %p133
    %p136 = scmp.ne.s32.totalorder %s119, %s135
    %p137 = scmp.eq.s32.totalorder %s17, 0
    %p138 = por %p136, %p137
    %p139 = scmp.le.s32.totalorder 1, %s11
    %p140 = scmp.lt.s32.totalorder %s11, 3
    %p141 = pnand %p139, %p140
    %p142 = pneg %p141
    // Predicated region
    $region9: #{forward.4} parent=5 // pred_check
      _
    $region10: #{forward.4} parent=5 // pred_check_branch
      %144 = sbr.rel (%p141) target = $region12
    $region11: #{forward.4} parent=5 // pred_region
      %s145 = ssub.s32 %s11, 1
      // Predicated region
      $region13: #{forward.4} parent=11 // pred_check
        %p146 = pneg %p58
      $region14: #{forward.4} parent=11 // pred_check_branch
        %148 = sbr.rel (%p146) target = $region16
      $region15: #{forward.4} parent=11 // pred_region
        _
      $region16: #{forward.4} parent=11 // pred_fallthru
        _
      // Predicated region
      $region17: #{forward.4} parent=11 // pred_check
        %p149 = pneg %p79
      $region18: #{forward.4} parent=11 // pred_check_branch
        %151 = sbr.rel (%p149) target = $region20
      $region19: #{forward.4} parent=11 // pred_region
        _
      $region20: #{forward.4} parent=11 // pred_fallthru
        _
    $region12: #{forward.4} parent=5 // pred_fallthru
      _
    %p152 = scmp.lt.s32.totalorder %s11, 2
    // Predicated region
    $region21: #{forward.4} parent=5 // pred_check
      %p153 = pneg %p152
    $region22: #{forward.4} parent=5 // pred_check_branch
      %155 = sbr.rel (%p153) target = $region24
    $region23: #{forward.4} parent=5 // pred_region
      // Predicated region
      $region25: #{forward.4} parent=23 // pred_check
        %p156 = pneg %p31
      $region26: #{forward.4} parent=23 // pred_check_branch
        %158 = sbr.rel (%p156) target = $region28
      $region27: #{forward.4} parent=23 // pred_region
        %p159 = scmp.lt.s32.totalorder %s11, 1
        %s160 = scalar_select %p159, %s11, 1
        %s161 = smul.addr %s160, 72
        %s162 = smul.addr %s161, 8
        %s163 = scalar_lea.vmem %s0, %s162
      $region28: #{forward.4} parent=23 // pred_fallthru
        _
    $region24: #{forward.4} parent=5 // pred_fallthru
      _
    %p164 = scmp.le.s32.totalorder 1, %s11
    %p165 = scmp.lt.s32.totalorder %s11, 3
    %p166 = pnand %p164, %p165
    %p167 = pneg %p166
    // Predicated region
    $region29: #{forward.4} parent=5 // pred_check
      _
    $region30: #{forward.4} parent=5 // pred_check_branch
      %169 = sbr.rel (%p166) target = $region32
    $region31: #{forward.4} parent=5 // pred_region
      %s170 = ssub.s32 %s11, 1
      %p171 = scmp.lt.s32.totalorder %s16, 1
      %s172 = scalar_select %p171, %s16, 1
      %s173 = smul.addr %s172, 72
      %s174 = smul.addr %s173, 8
      %s175 = scalar_lea.vmem %s0, %s174
      %p176 = pneg %p37
      %p177 = pneg %p34
      %p178 = pneg %p58
      %p179 = pneg %p55
      %p180 = pneg %p79
      %p181 = pneg %p76
      %p182 = pneg %p105
      %p183 = pneg %p102
      %p184 = scmp.lt.s32.totalorder %s16, 1
      %s185 = scalar_select %p184, %s16, 1
      %s186 = smul.addr %s185, 8
      %s187 = smul.addr %s186, 8
      %s188 = scalar_lea.vmem %s3, %s187
      %p189 = pneg %p131
      %p190 = pneg %p128
      %p191 = scmp.lt.s32.totalorder %s16, 1
      %s192 = scalar_select %p191, %s16, 1
      %s193 = smul.addr %s192, 2
      %s194 = scalar_lea.vmem %s4, %s193
      %p195 = scmp.lt.s32.totalorder %s16, 1
      %s196 = scalar_select %p195, %s16, 1
      %s197 = smul.addr %s196, 72
      %s198 = smul.addr %s197, 8
      %s199 = scalar_lea.vmem %s0, %s198
      %p200 = scmp.lt.s32.totalorder %s16, 1
      %s201 = scalar_select %p200, %s16, 1
      %s202 = smul.addr %s201, 8
      %s203 = smul.addr %s202, 8
      %s204 = scalar_lea.vmem %s3, %s203
      %p205 = scmp.lt.s32.totalorder %s16, 1
      %s206 = scalar_select %p205, %s16, 1
      %s207 = smul.addr %s206, 2
      %s208 = scalar_lea.vmem %s4, %s207
      %v209 = vld [vmem:[%s1] sm:$0x1]
      %v210 = vld [vmem:[%s199 + $0x10] sm:$0xff]
      %v211 = vld [vmem:[%s199 + $0x18] sm:$0x1]
      %v212 = vld [vmem:[%s199 + $0x20] sm:$0xff]
      %v213 = vld [vmem:[%s199 + $0x28] sm:$0x1]
      %v214 = vld [vmem:[%s199 + $0x30] sm:$0xff]
      %v215 = vld [vmem:[%s199 + $0x38] sm:$0x1]
      %v216 = vld [vmem:[%s199 + $0x40] sm:$0xff]
      %v217 = vld [vmem:[%s199 + $0x48] sm:$0x1]
      %v218 = vld [vmem:[%s199 + $0x50] sm:$0xff]
      %v219 = vld [vmem:[%s199 + $0x58] sm:$0x1]
      %v220 = vld [vmem:[%s199 + $0x60] sm:$0xff]
      %v221 = vld [vmem:[%s199 + $0x68] sm:$0x1]
      %v222 = vld [vmem:[%s199 + $0x70] sm:$0xff]
      %v223 = vld [vmem:[%s199 + $0x78] sm:$0x1]
      %v224 = vld [vmem:[%s199 + $0x80] sm:$0xff]
      %v225 = vld [vmem:[%s199 + $0x88] sm:$0x1]
      %v226 = vld [vmem:[%s199 + $0xa0] sm:$0xff]
      %v227 = vld [vmem:[%s199 + $0xa8] sm:$0x1]
      %v228 = vld [vmem:[%s199 + $0xb0] sm:$0xff]
      %v229 = vld [vmem:[%s199 + $0xb8] sm:$0x1]
      %v230 = vld [vmem:[%s199 + $0xc0] sm:$0xff]
      %v231 = vld [vmem:[%s199 + $0xc8] sm:$0x1]
      %v232 = vld [vmem:[%s199 + $0xd0] sm:$0xff]
      %v233 = vld [vmem:[%s199 + $0xd8] sm:$0x1]
      %v234 = vld [vmem:[%s199 + $0xe0] sm:$0xff]
      %v235 = vld [vmem:[%s199 + $0xe8] sm:$0x1]
      %v236 = vld [vmem:[%s199 + $0xf0] sm:$0xff]
      %v237 = vld [vmem:[%s199 + $0xf8] sm:$0x1]
      %v238 = vld [vmem:[%s199 + $0x100] sm:$0xff]
      %v239 = vld [vmem:[%s199 + $0x108] sm:$0x1]
      %v240 = vld [vmem:[%s199 + $0x110] sm:$0xff]
      %v241 = vld [vmem:[%s199 + $0x118] sm:$0x1]
      %v242 = vld [vmem:[%s199 + $0x120] sm:$0xff]
      %v243 = vld [vmem:[%s199 + $0x128] sm:$0x1]
      %v244 = vld [vmem:[%s199 + $0x130] sm:$0xff]
      %v245 = vld [vmem:[%s199 + $0x138] sm:$0x1]
      %v246 = vld [vmem:[%s199 + $0x140] sm:$0xff]
      %v247 = vld [vmem:[%s199 + $0x148] sm:$0x1]
      %v248 = vld [vmem:[%s199 + $0x150] sm:$0xff]
      %v249 = vld [vmem:[%s199 + $0x158] sm:$0x1]
      %v250 = vld [vmem:[%s199 + $0x160] sm:$0xff]
      %v251 = vld [vmem:[%s199 + $0x168] sm:$0x1]
      %v252 = vld [vmem:[%s199 + $0x170] sm:$0xff]
      %v253 = vld [vmem:[%s199 + $0x178] sm:$0x1]
      %v254 = vld [vmem:[%s199 + $0x180] sm:$0xff]
      %v255 = vld [vmem:[%s199 + $0x188] sm:$0x1]
      %v256 = vld [vmem:[%s199 + $0x190] sm:$0xff]
      %v257 = vld [vmem:[%s199 + $0x198] sm:$0x1]
      %v258 = vld [vmem:[%s199 + $0x1a0] sm:$0xff]
      %v259 = vld [vmem:[%s199 + $0x1a8] sm:$0x1]
      %v260 = vld [vmem:[%s199 + $0x1b0] sm:$0xff]
      %v261 = vld [vmem:[%s199 + $0x1b8] sm:$0x1]
      %v262 = vld [vmem:[%s199 + $0x1c0] sm:$0xff]
      %v263 = vld [vmem:[%s199 + $0x1c8] sm:$0x1]
      %v264 = vld [vmem:[%s199 + $0x1d0] sm:$0xff]
      %v265 = vld [vmem:[%s199 + $0x1d8] sm:$0x1]
      %v266 = vld [vmem:[%s199 + $0x1e0] sm:$0xff]
      %v267 = vld [vmem:[%s199 + $0x1e8] sm:$0x1]
      %v268 = vld [vmem:[%s199 + $0x1f0] sm:$0xff]
      %v269 = vld [vmem:[%s199 + $0x1f8] sm:$0x1]
      %v270 = vld [vmem:[%s199 + $0x200] sm:$0xff]
      %v271 = vld [vmem:[%s199 + $0x208] sm:$0x1]
      %v272 = vld [vmem:[%s199 + $0x210] sm:$0xff]
      %v273 = vld [vmem:[%s199 + $0x218] sm:$0x1]
      %v274 = vld [vmem:[%s199 + $0x220] sm:$0xff]
      %v275 = vld [vmem:[%s199 + $0x228] sm:$0x1]
      %v276 = vld [vmem:[%s199 + $0x230] sm:$0xff]
      %v277 = vld [vmem:[%s199 + $0x238] sm:$0x1]
      %v278 = vld [vmem:[%s2] sm:$0xf]
      %vm295 = vcmask 1046528
      %v296 = vrot.slane %v242, 1
      %v297 = vrot.slane %v243, 1
      %v298 = vsel %vm295, %v296, %v297
      %v299 = vrot.slane %v244, 1
      %v300 = vrot.slane %v245, 1
      %v301 = vsel %vm295, %v299, %v300
      %v302 = vrot.slane %v246, 1
      %v303 = vrot.slane %v247, 1
      %v304 = vsel %vm295, %v302, %v303
      %v305 = vrot.slane %v248, 1
      %v306 = vrot.slane %v249, 1
      %v307 = vsel %vm295, %v305, %v306
      %v308 = vrot.slane %v250, 1
      %v309 = vrot.slane %v251, 1
      %v310 = vsel %vm295, %v308, %v309
      %v311 = vrot.slane %v252, 1
      %v312 = vrot.slane %v253, 1
      %v313 = vsel %vm295, %v311, %v312
      %v314 = vrot.slane %v254, 1
      %v315 = vrot.slane %v255, 1
      %v316 = vsel %vm295, %v314, %v315
      %v317 = vrot.slane %v256, 1
      %v318 = vrot.slane %v257, 1
      %v319 = vsel %vm295, %v317, %v318
      %s320 = scalar_lea.vmem %s2, 4
      %v321 = vld [vmem:[%s320] sm:$0xf]
      %vm322 = vcmask 31744
      %v323 = vsel %vm322, %v298, 0
      %v325 = vsel %vm322, %v301, 0
      %v327 = vsel %vm322, %v304, 0
      %v329 = vsel %vm322, %v307, 0
      %v331 = vsel %vm322, %v310, 0
      %v333 = vsel %vm322, %v313, 0
      %v335 = vsel %vm322, %v316, 0
      %v337 = vsel %vm322, %v319, 0
      %vm339 = vcmask 1043456
      %v341 = vsel %vm339, %v321, 0
      %343 = vmatprep.subr.mxu0 0.0
      %344 = vmatpush1.msra.mxu0 %v341
      %345 = vmatprep.subr.mxu0 0.0
      %346 = vmatpush1.msra.mxu0 0.0
      %347 = vmatprep.subr.mxu0 0.0
      %348 = vmatpush1.msra.mxu0 0.0
      %349 = vmatprep.subr.mxu0 0.0
      %350 = vmatpush1.msra.mxu0 0.0
      %351 = vmatprep.subr.mxu0 0.0
      %352 = vmatpush1.msra.mxu0 0.0
      %353 = vmatprep.subr.mxu0 0.0
      %354 = vmatpush1.msra.mxu0 0.0
      %355 = vmatprep.subr.mxu0 0.0
      %356 = vmatpush1.msra.mxu0 0.0
      %357 = vmatprep.subr.mxu0 0.0
      %358 = vmatpush1.msra.mxu0 0.0
      %359 = vmatprep.subr.mxu0 0.0
      %360 = vmatpush1.msra.mxu0 0.0
      %361 = vmatprep.subr.mxu0 0.0
      %362 = vmatpush1.msra.mxu0 0.0
      %363 = vmatprep.subr.mxu0 0.0
      %364 = vmatpush1.msra.mxu0 0.0
      %365 = vmatprep.subr.mxu0 0.0
      %366 = vmatpush1.msra.mxu0 0.0
      %367 = vmatprep.subr.mxu0 0.0
      %368 = vmatpush1.msra.mxu0 0.0
      %369 = vmatprep.subr.mxu0 0.0
      %370 = vmatpush1.msra.mxu0 0.0
      %371 = vmatprep.subr.mxu0 0.0
      %372 = vmatpush1.msra.mxu0 0.0
      %373 = vmatprep.subr.mxu0 0.0
      %374 = vmatpush1.msra.mxu0 0.0
      %375 = vmatprep.subr.mxu0 0.0
      %376 = vmatpush1.msra.mxu0 0.0
      %377 = vmatprep.subr.mxu0 0.0
      %378 = vmatpush1.msra.mxu0 0.0
      %379 = vmatprep.subr.mxu0 0.0
      %380 = vmatpush1.msra.mxu0 0.0
      %381 = vmatprep.subr.mxu0 0.0
      %382 = vmatpush1.msra.mxu0 0.0
      %383 = vmatprep.subr.mxu0 0.0
      %384 = vmatpush1.msra.mxu0 0.0
      %385 = vmatprep.subr.mxu0 0.0
      %386 = vmatpush1.msra.mxu0 0.0
      %387 = vmatprep.subr.mxu0 0.0
      %388 = vmatpush1.msra.mxu0 0.0
      %389 = vmatprep.subr.mxu0 0.0
      %390 = vmatpush1.msra.mxu0 0.0
      %391 = vmatprep.subr.mxu0 0.0
      %392 = vmatpush1.msra.mxu0 0.0
      %393 = vmatprep.subr.mxu0 0.0
      %394 = vmatpush1.msra.mxu0 0.0
      %395 = vmatprep.subr.mxu0 0.0
      %396 = vmatpush1.msra.mxu0 0.0
      %397 = vmatprep.subr.mxu0 0.0
      %398 = vmatpush1.msra.mxu0 0.0
      %399 = vmatprep.subr.mxu0 0.0
      %400 = vmatpush1.msra.mxu0 0.0
      %401 = vmatprep.subr.mxu0 0.0
      %402 = vmatpush1.msra.mxu0 0.0
      %403 = vmatprep.subr.mxu0 0.0
      %404 = vmatpush1.msra.mxu0 0.0
      %405 = vmatprep.subr.mxu0 0.0
      %406 = vmatpush1.msra.mxu0 0.0
      %407 = vmatprep.mubr.f32.mxu0 0.0
      %408 = vmatmul.mubr.f32.gmra.mrb[0].mxu0 %v323
      %v409 = vpop.f32.mrb[0].mxu0
      %v410 = vadd.f32 0.0, %v409
      %v411 = vpop.f32.mrb[0].mxu0
      %412 = vmatprep.mubr.f32.mxu0 0.0
      %413 = vmatmul.mubr.f32.gmra.mrb[0].mxu0 %v325
      %v414 = vpop.f32.mrb[0].mxu0
      %v415 = vadd.f32 0.0, %v414
      %v416 = vpop.f32.mrb[0].mxu0
      %417 = vmatprep.mubr.f32.mxu0 0.0
      %418 = vmatmul.mubr.f32.gmra.mrb[0].mxu0 %v327
      %v419 = vpop.f32.mrb[0].mxu0
      %v420 = vadd.f32 0.0, %v419
      %v421 = vpop.f32.mrb[0].mxu0
      %422 = vmatprep.mubr.f32.mxu0 0.0
      %423 = vmatmul.mubr.f32.gmra.mrb[0].mxu0 %v329
      %v424 = vpop.f32.mrb[0].mxu0
      %v425 = vadd.f32 0.0, %v424
      %v426 = vpop.f32.mrb[0].mxu0
      %427 = vmatprep.mubr.f32.mxu0 0.0
      %428 = vmatmul.mubr.f32.gmra.mrb[0].mxu0 %v331
      %v429 = vpop.f32.mrb[0].mxu0
      %v430 = vadd.f32 0.0, %v429
      %v431 = vpop.f32.mrb[0].mxu0
      %432 = vmatprep.mubr.f32.mxu0 0.0
      %433 = vmatmul.mubr.f32.gmra.mrb[0].mxu0 %v333
      %v434 = vpop.f32.mrb[0].mxu0
      %v435 = vadd.f32 0.0, %v434
      %v436 = vpop.f32.mrb[0].mxu0
      %437 = vmatprep.mubr.f32.mxu0 0.0
      %438 = vmatmul.mubr.f32.gmra.mrb[0].mxu0 %v335
      %v439 = vpop.f32.mrb[0].mxu0
      %v440 = vadd.f32 0.0, %v439
      %v441 = vpop.f32.mrb[0].mxu0
      %442 = vmatprep.mubr.f32.mxu0 0.0
      %443 = vmatmul.mubr.f32.gmra.mrb[0].mxu0 %v337
      %v444 = vpop.f32.mrb[0].mxu0
      %v445 = vadd.f32 0.0, %v444
      %v446 = vpop.f32.mrb[0].mxu0
      %447 = vdwg.mxu0
      %v449 = vsel %vm322, %v260, 0
      %v452 = vsel %vm322, %v262, 0
      %v455 = vsel %vm322, %v264, 0
      %v458 = vsel %vm322, %v266, 0
      %v461 = vsel %vm322, %v268, 0
      %v464 = vsel %vm322, %v270, 0
      %v467 = vsel %vm322, %v272, 0
      %v470 = vsel %vm322, %v274, 0
      %v473 = vsel %vm339, %v278, 0
      %475 = vmatprep.subr.mxu0 0.0
      %476 = vmatpush1.msra.mxu0 %v473
      %477 = vmatprep.subr.mxu0 0.0
      %478 = vmatpush1.msra.mxu0 0.0
      %479 = vmatprep.subr.mxu0 0.0
      %480 = vmatpush1.msra.mxu0 0.0
      %481 = vmatprep.subr.mxu0 0.0
      %482 = vmatpush1.msra.mxu0 0.0
      %483 = vmatprep.subr.mxu0 0.0
      %484 = vmatpush1.msra.mxu0 0.0
      %485 = vmatprep.subr.mxu0 0.0
      %486 = vmatpush1.msra.mxu0 0.0
      %487 = vmatprep.subr.mxu0 0.0
      %488 = vmatpush1.msra.mxu0 0.0
      %489 = vmatprep.subr.mxu0 0.0
      %490 = vmatpush1.msra.mxu0 0.0
      %491 = vmatprep.subr.mxu0 0.0
      %492 = vmatpush1.msra.mxu0 0.0
      %493 = vmatprep.subr.mxu0 0.0
      %494 = vmatpush1.msra.mxu0 0.0
      %495 = vmatprep.subr.mxu0 0.0
      %496 = vmatpush1.msra.mxu0 0.0
      %497 = vmatprep.subr.mxu0 0.0
      %498 = vmatpush1.msra.mxu0 0.0
      %499 = vmatprep.subr.mxu0 0.0
      %500 = vmatpush1.msra.mxu0 0.0
      %501 = vmatprep.subr.mxu0 0.0
      %502 = vmatpush1.msra.mxu0 0.0
      %503 = vmatprep.subr.mxu0 0.0
      %504 = vmatpush1.msra.mxu0 0.0
      %505 = vmatprep.subr.mxu0 0.0
      %506 = vmatpush1.msra.mxu0 0.0
      %507 = vmatprep.subr.mxu0 0.0
      %508 = vmatpush1.msra.mxu0 0.0
      %509 = vmatprep.subr.mxu0 0.0
      %510 = vmatpush1.msra.mxu0 0.0
      %511 = vmatprep.subr.mxu0 0.0
      %512 = vmatpush1.msra.mxu0 0.0
      %513 = vmatprep.subr.mxu0 0.0
      %514 = vmatpush1.msra.mxu0 0.0
      %515 = vmatprep.subr.mxu0 0.0
      %516 = vmatpush1.msra.mxu0 0.0
      %517 = vmatprep.subr.mxu0 0.0
      %518 = vmatpush1.msra.mxu0 0.0
      %519 = vmatprep.subr.mxu0 0.0
      %520 = vmatpush1.msra.mxu0 0.0
      %521 = vmatprep.subr.mxu0 0.0
      %522 = vmatpush1.msra.mxu0 0.0
      %523 = vmatprep.subr.mxu0 0.0
      %524 = vmatpush1.msra.mxu0 0.0
      %525 = vmatprep.subr.mxu0 0.0
      %526 = vmatpush1.msra.mxu0 0.0
      %527 = vmatprep.subr.mxu0 0.0
      %528 = vmatpush1.msra.mxu0 0.0
      %529 = vmatprep.subr.mxu0 0.0
      %530 = vmatpush1.msra.mxu0 0.0
      %531 = vmatprep.subr.mxu0 0.0
      %532 = vmatpush1.msra.mxu0 0.0
      %533 = vmatprep.subr.mxu0 0.0
      %534 = vmatpush1.msra.mxu0 0.0
      %535 = vmatprep.subr.mxu0 0.0
      %536 = vmatpush1.msra.mxu0 0.0
      %537 = vmatprep.subr.mxu0 0.0
      %538 = vmatpush1.msra.mxu0 0.0
      %539 = vmatprep.mubr.f32.mxu0 0.0
      %540 = vmatmul.mubr.f32.gmra.mrb[0].mxu0 %v449
      %v541 = vpop.f32.mrb[0].mxu0
      %v542 = vadd.f32 %v410, %v541
      %v543 = vpop.f32.mrb[0].mxu0
      %544 = vmatprep.mubr.f32.mxu0 0.0
      %545 = vmatmul.mubr.f32.gmra.mrb[0].mxu0 %v452
      %v546 = vpop.f32.mrb[0].mxu0
      %v547 = vadd.f32 %v415, %v546
      %v548 = vpop.f32.mrb[0].mxu0
      %549 = vmatprep.mubr.f32.mxu0 0.0
      %550 = vmatmul.mubr.f32.gmra.mrb[0].mxu0 %v455
      %v551 = vpop.f32.mrb[0].mxu0
      %v552 = vadd.f32 %v420, %v551
      %v553 = vpop.f32.mrb[0].mxu0
      %554 = vmatprep.mubr.f32.mxu0 0.0
      %555 = vmatmul.mubr.f32.gmra.mrb[0].mxu0 %v458
      %v556 = vpop.f32.mrb[0].mxu0
      %v557 = vadd.f32 %v425, %v556
      %v558 = vpop.f32.mrb[0].mxu0
      %559 = vmatprep.mubr.f32.mxu0 0.0
      %560 = vmatmul.mubr.f32.gmra.mrb[0].mxu0 %v461
      %v561 = vpop.f32.mrb[0].mxu0
      %v562 = vadd.f32 %v430, %v561
      %v563 = vpop.f32.mrb[0].mxu0
      %564 = vmatprep.mubr.f32.mxu0 0.0
      %565 = vmatmul.mubr.f32.gmra.mrb[0].mxu0 %v464
      %v566 = vpop.f32.mrb[0].mxu0
      %v567 = vadd.f32 %v435, %v566
      %v568 = vpop.f32.mrb[0].mxu0
      %569 = vmatprep.mubr.f32.mxu0 0.0
      %570 = vmatmul.mubr.f32.gmra.mrb[0].mxu0 %v467
      %v571 = vpop.f32.mrb[0].mxu0
      %v572 = vadd.f32 %v440, %v571
      %v573 = vpop.f32.mrb[0].mxu0
      %574 = vmatprep.mubr.f32.mxu0 0.0
      %575 = vmatmul.mubr.f32.gmra.mrb[0].mxu0 %v470
      %v576 = vpop.f32.mrb[0].mxu0
      %v577 = vadd.f32 %v445, %v576
      %v578 = vpop.f32.mrb[0].mxu0
      %579 = vdwg.mxu0
      %v588 = vrot.slane %v260, 1
      %v589 = vrot.slane %v261, 1
      %v590 = vsel %vm295, %v588, %v589
      %v591 = vrot.slane %v262, 1
      %v592 = vrot.slane %v263, 1
      %v593 = vsel %vm295, %v591, %v592
      %v594 = vrot.slane %v264, 1
      %v595 = vrot.slane %v265, 1
      %v596 = vsel %vm295, %v594, %v595
      %v597 = vrot.slane %v266, 1
      %v598 = vrot.slane %v267, 1
      %v599 = vsel %vm295, %v597, %v598
      %v600 = vrot.slane %v268, 1
      %v601 = vrot.slane %v269, 1
      %v602 = vsel %vm295, %v600, %v601
      %v603 = vrot.slane %v270, 1
      %v604 = vrot.slane %v271, 1
      %v605 = vsel %vm295, %v603, %v604
      %v606 = vrot.slane %v272, 1
      %v607 = vrot.slane %v273, 1
      %v608 = vsel %vm295, %v606, %v607
      %v609 = vrot.slane %v274, 1
      %v610 = vrot.slane %v275, 1
      %v611 = vsel %vm295, %v609, %v610
      %s612 = scalar_lea.vmem %s2, 8
      %v613 = vld [vmem:[%s612] sm:$0xf]
      %v614 = vsel %vm322, %v590, 0
      %v616 = vsel %vm322, %v593, 0
      %v618 = vsel %vm322, %v596, 0
      %v620 = vsel %vm322, %v599, 0
      %v622 = vsel %vm322, %v602, 0
      %v624 = vsel %vm322, %v605, 0
      %v626 = vsel %vm322, %v608, 0
      %v628 = vsel %vm322, %v611, 0
      %v631 = vsel %vm339, %v613, 0
      %633 = vmatprep.subr.mxu0 0.0
      %634 = vmatpush1.msra.mxu0 %v631
      %635 = vmatprep.subr.mxu0 0.0
      %636 = vmatpush1.msra.mxu0 0.0
      %637 = vmatprep.subr.mxu0 0.0
      %638 = vmatpush1.msra.mxu0 0.0
      %639 = vmatprep.subr.mxu0 0.0
      %640 = vmatpush1.msra.mxu0 0.0
      %641 = vmatprep.subr.mxu0 0.0
      %642 = vmatpush1.msra.mxu0 0.0
      %643 = vmatprep.subr.mxu0 0.0
      %644 = vmatpush1.msra.mxu0 0.0
      %645 = vmatprep.subr.mxu0 0.0
      %646 = vmatpush1.msra.mxu0 0.0
      %647 = vmatprep.subr.mxu0 0.0
      %648 = vmatpush1.msra.mxu0 0.0
      %649 = vmatprep.subr.mxu0 0.0
      %650 = vmatpush1.msra.mxu0 0.0
      %651 = vmatprep.subr.mxu0 0.0
      %652 = vmatpush1.msra.mxu0 0.0
      %653 = vmatprep.subr.mxu0 0.0
      %654 = vmatpush1.msra.mxu0 0.0
      %655 = vmatprep.subr.mxu0 0.0
      %656 = vmatpush1.msra.mxu0 0.0
      %657 = vmatprep.subr.mxu0 0.0
      %658 = vmatpush1.msra.mxu0 0.0
      %659 = vmatprep.subr.mxu0 0.0
      %660 = vmatpush1.msra.mxu0 0.0
      %661 = vmatprep.subr.mxu0 0.0
      %662 = vmatpush1.msra.mxu0 0.0
      %663 = vmatprep.subr.mxu0 0.0
      %664 = vmatpush1.msra.mxu0 0.0
      %665 = vmatprep.subr.mxu0 0.0
      %666 = vmatpush1.msra.mxu0 0.0
      %667 = vmatprep.subr.mxu0 0.0
      %668 = vmatpush1.msra.mxu0 0.0
      %669 = vmatprep.subr.mxu0 0.0
      %670 = vmatpush1.msra.mxu0 0.0
      %671 = vmatprep.subr.mxu0 0.0
      %672 = vmatpush1.msra.mxu0 0.0
      %673 = vmatprep.subr.mxu0 0.0
      %674 = vmatpush1.msra.mxu0 0.0
      %675 = vmatprep.subr.mxu0 0.0
      %676 = vmatpush1.msra.mxu0 0.0
      %677 = vmatprep.subr.mxu0 0.0
      %678 = vmatpush1.msra.mxu0 0.0
      %679 = vmatprep.subr.mxu0 0.0
      %680 = vmatpush1.msra.mxu0 0.0
      %681 = vmatprep.subr.mxu0 0.0
      %682 = vmatpush1.msra.mxu0 0.0
      %683 = vmatprep.subr.mxu0 0.0
      %684 = vmatpush1.msra.mxu0 0.0
      %685 = vmatprep.subr.mxu0 0.0
      %686 = vmatpush1.msra.mxu0 0.0
      %687 = vmatprep.subr.mxu0 0.0
      %688 = vmatpush1.msra.mxu0 0.0
      %689 = vmatprep.subr.mxu0 0.0
      %690 = vmatpush1.msra.mxu0 0.0
      %691 = vmatprep.subr.mxu0 0.0
      %692 = vmatpush1.msra.mxu0 0.0
      %693 = vmatprep.subr.mxu0 0.0
      %694 = vmatpush1.msra.mxu0 0.0
      %695 = vmatprep.subr.mxu0 0.0
      %696 = vmatpush1.msra.mxu0 0.0
      %697 = vmatprep.mubr.f32.mxu0 0.0
      %698 = vmatmul.mubr.f32.gmra.mrb[0].mxu0 %v614
      %v699 = vpop.f32.mrb[0].mxu0
      %v700 = vadd.f32 0.0, %v699
      %v701 = vpop.f32.mrb[0].mxu0
      %702 = vmatprep.mubr.f32.mxu0 0.0
      %703 = vmatmul.mubr.f32.gmra.mrb[0].mxu0 %v616
      %v704 = vpop.f32.mrb[0].mxu0
      %v705 = vadd.f32 0.0, %v704
      %v706 = vpop.f32.mrb[0].mxu0
      %707 = vmatprep.mubr.f32.mxu0 0.0
      %708 = vmatmul.mubr.f32.gmra.mrb[0].mxu0 %v618
      %v709 = vpop.f32.mrb[0].mxu0
      %v710 = vadd.f32 0.0, %v709
      %v711 = vpop.f32.mrb[0].mxu0
      %712 = vmatprep.mubr.f32.mxu0 0.0
      %713 = vmatmul.mubr.f32.gmra.mrb[0].mxu0 %v620
      %v714 = vpop.f32.mrb[0].mxu0
      %v715 = vadd.f32 0.0, %v714
      %v716 = vpop.f32.mrb[0].mxu0
      %717 = vmatprep.mubr.f32.mxu0 0.0
      %718 = vmatmul.mubr.f32.gmra.mrb[0].mxu0 %v622
      %v719 = vpop.f32.mrb[0].mxu0
      %v720 = vadd.f32 0.0, %v719
      %v721 = vpop.f32.mrb[0].mxu0
      %722 = vmatprep.mubr.f32.mxu0 0.0
      %723 = vmatmul.mubr.f32.gmra.mrb[0].mxu0 %v624
      %v724 = vpop.f32.mrb[0].mxu0
      %v725 = vadd.f32 0.0, %v724
      %v726 = vpop.f32.mrb[0].mxu0
      %727 = vmatprep.mubr.f32.mxu0 0.0
      %728 = vmatmul.mubr.f32.gmra.mrb[0].mxu0 %v626
      %v729 = vpop.f32.mrb[0].mxu0
      %v730 = vadd.f32 0.0, %v729
      %v731 = vpop.f32.mrb[0].mxu0
      %732 = vmatprep.mubr.f32.mxu0 0.0
      %733 = vmatmul.mubr.f32.gmra.mrb[0].mxu0 %v628
      %v734 = vpop.f32.mrb[0].mxu0
      %v735 = vadd.f32 0.0, %v734
      %v736 = vpop.f32.mrb[0].mxu0
      %737 = vdwg.mxu0
      %v738 = vadd.f32 %v542, %v700
      %v739 = vadd.f32 %v547, %v705
      %v740 = vadd.f32 %v552, %v710
      %v741 = vadd.f32 %v557, %v715
      %v742 = vadd.f32 %v562, %v720
      %v743 = vadd.f32 %v567, %v725
      %v744 = vadd.f32 %v572, %v730
      %v745 = vadd.f32 %v577, %v735
      %s746 = scalar_lea.vmem %s2, 12
      %v747 = vld [vmem:[%s746] sm:$0xf]
      %v749 = vsel %vm322, %v226, 0
      %v752 = vsel %vm322, %v228, 0
      %v755 = vsel %vm322, %v230, 0
      %v758 = vsel %vm322, %v232, 0
      %v761 = vsel %vm322, %v234, 0
      %v764 = vsel %vm322, %v236, 0
      %v767 = vsel %vm322, %v238, 0
      %v770 = vsel %vm322, %v240, 0
      %v773 = vsel %vm339, %v747, 0
      %775 = vmatprep.subr.mxu0 0.0
      %776 = vmatpush1.msra.mxu0 %v773
      %777 = vmatprep.subr.mxu0 0.0
      %778 = vmatpush1.msra.mxu0 0.0
      %779 = vmatprep.subr.mxu0 0.0
      %780 = vmatpush1.msra.mxu0 0.0
      %781 = vmatprep.subr.mxu0 0.0
      %782 = vmatpush1.msra.mxu0 0.0
      %783 = vmatprep.subr.mxu0 0.0
      %784 = vmatpush1.msra.mxu0 0.0
      %785 = vmatprep.subr.mxu0 0.0
      %786 = vmatpush1.msra.mxu0 0.0
      %787 = vmatprep.subr.mxu0 0.0
      %788 = vmatpush1.msra.mxu0 0.0
      %789 = vmatprep.subr.mxu0 0.0
      %790 = vmatpush1.msra.mxu0 0.0
      %791 = vmatprep.subr.mxu0 0.0
      %792 = vmatpush1.msra.mxu0 0.0
      %793 = vmatprep.subr.mxu0 0.0
      %794 = vmatpush1.msra.mxu0 0.0
      %795 = vmatprep.subr.mxu0 0.0
      %796 = vmatpush1.msra.mxu0 0.0
      %797 = vmatprep.subr.mxu0 0.0
      %798 = vmatpush1.msra.mxu0 0.0
      %799 = vmatprep.subr.mxu0 0.0
      %800 = vmatpush1.msra.mxu0 0.0
      %801 = vmatprep.subr.mxu0 0.0
      %802 = vmatpush1.msra.mxu0 0.0
      %803 = vmatprep.subr.mxu0 0.0
      %804 = vmatpush1.msra.mxu0 0.0
      %805 = vmatprep.subr.mxu0 0.0
      %806 = vmatpush1.msra.mxu0 0.0
      %807 = vmatprep.subr.mxu0 0.0
      %808 = vmatpush1.msra.mxu0 0.0
      %809 = vmatprep.subr.mxu0 0.0
      %810 = vmatpush1.msra.mxu0 0.0
      %811 = vmatprep.subr.mxu0 0.0
      %812 = vmatpush1.msra.mxu0 0.0
      %813 = vmatprep.subr.mxu0 0.0
      %814 = vmatpush1.msra.mxu0 0.0
      %815 = vmatprep.subr.mxu0 0.0
      %816 = vmatpush1.msra.mxu0 0.0
      %817 = vmatprep.subr.mxu0 0.0
      %818 = vmatpush1.msra.mxu0 0.0
      %819 = vmatprep.subr.mxu0 0.0
      %820 = vmatpush1.msra.mxu0 0.0
      %821 = vmatprep.subr.mxu0 0.0
      %822 = vmatpush1.msra.mxu0 0.0
      %823 = vmatprep.subr.mxu0 0.0
      %824 = vmatpush1.msra.mxu0 0.0
      %825 = vmatprep.subr.mxu0 0.0
      %826 = vmatpush1.msra.mxu0 0.0
      %827 = vmatprep.subr.mxu0 0.0
      %828 = vmatpush1.msra.mxu0 0.0
      %829 = vmatprep.subr.mxu0 0.0
      %830 = vmatpush1.msra.mxu0 0.0
      %831 = vmatprep.subr.mxu0 0.0
      %832 = vmatpush1.msra.mxu0 0.0
      %833 = vmatprep.subr.mxu0 0.0
      %834 = vmatpush1.msra.mxu0 0.0
      %835 = vmatprep.subr.mxu0 0.0
      %836 = vmatpush1.msra.mxu0 0.0
      %837 = vmatprep.subr.mxu0 0.0
      %838 = vmatpush1.msra.mxu0 0.0
      %839 = vmatprep.mubr.f32.mxu0 0.0
      %840 = vmatmul.mubr.f32.gmra.mrb[0].mxu0 %v749
      %v841 = vpop.f32.mrb[0].mxu0
      %v842 = vadd.f32 0.0, %v841
      %v843 = vpop.f32.mrb[0].mxu0
      %844 = vmatprep.mubr.f32.mxu0 0.0
      %845 = vmatmul.mubr.f32.gmra.mrb[0].mxu0 %v752
      %v846 = vpop.f32.mrb[0].mxu0
      %v847 = vadd.f32 0.0, %v846
      %v848 = vpop.f32.mrb[0].mxu0
      %849 = vmatprep.mubr.f32.mxu0 0.0
      %850 = vmatmul.mubr.f32.gmra.mrb[0].mxu0 %v755
      %v851 = vpop.f32.mrb[0].mxu0
      %v852 = vadd.f32 0.0, %v851
      %v853 = vpop.f32.mrb[0].mxu0
      %854 = vmatprep.mubr.f32.mxu0 0.0
      %855 = vmatmul.mubr.f32.gmra.mrb[0].mxu0 %v758
      %v856 = vpop.f32.mrb[0].mxu0
      %v857 = vadd.f32 0.0, %v856
      %v858 = vpop.f32.mrb[0].mxu0
      %859 = vmatprep.mubr.f32.mxu0 0.0
      %860 = vmatmul.mubr.f32.gmra.mrb[0].mxu0 %v761
      %v861 = vpop.f32.mrb[0].mxu0
      %v862 = vadd.f32 0.0, %v861
      %v863 = vpop.f32.mrb[0].mxu0
      %864 = vmatprep.mubr.f32.mxu0 0.0
      %865 = vmatmul.mubr.f32.gmra.mrb[0].mxu0 %v764
      %v866 = vpop.f32.mrb[0].mxu0
      %v867 = vadd.f32 0.0, %v866
      %v868 = vpop.f32.mrb[0].mxu0
      %869 = vmatprep.mubr.f32.mxu0 0.0
      %870 = vmatmul.mubr.f32.gmra.mrb[0].mxu0 %v767
      %v871 = vpop.f32.mrb[0].mxu0
      %v872 = vadd.f32 0.0, %v871
      %v873 = vpop.f32.mrb[0].mxu0
      %874 = vmatprep.mubr.f32.mxu0 0.0
      %875 = vmatmul.mubr.f32.gmra.mrb[0].mxu0 %v770
      %v876 = vpop.f32.mrb[0].mxu0
      %v877 = vadd.f32 0.0, %v876
      %v878 = vpop.f32.mrb[0].mxu0
      %879 = vdwg.mxu0
      %v880 = vadd.f32 %v738, %v842
      %v881 = vadd.f32 %v739, %v847
      %v882 = vadd.f32 %v740, %v852
      %v883 = vadd.f32 %v741, %v857
      %v884 = vadd.f32 %v742, %v862
      %v885 = vadd.f32 %v743, %v867
      %v886 = vadd.f32 %v744, %v872
      %v887 = vadd.f32 %v745, %v877
      %v904 = vrot.slane %v210, 1
      %v905 = vrot.slane %v211, 1
      %v906 = vsel %vm295, %v904, %v905
      %v907 = vrot.slane %v212, 1
      %v908 = vrot.slane %v213, 1
      %v909 = vsel %vm295, %v907, %v908
      %v910 = vrot.slane %v214, 1
      %v911 = vrot.slane %v215, 1
      %v912 = vsel %vm295, %v910, %v911
      %v913 = vrot.slane %v216, 1
      %v914 = vrot.slane %v217, 1
      %v915 = vsel %vm295, %v913, %v914
      %v916 = vrot.slane %v218, 1
      %v917 = vrot.slane %v219, 1
      %v918 = vsel %vm295, %v916, %v917
      %v919 = vrot.slane %v220, 1
      %v920 = vrot.slane %v221, 1
      %v921 = vsel %vm295, %v919, %v920
      %v922 = vrot.slane %v222, 1
      %v923 = vrot.slane %v223, 1
      %v924 = vsel %vm295, %v922, %v923
      %v925 = vrot.slane %v224, 1
      %v926 = vrot.slane %v225, 1
      %v927 = vsel %vm295, %v925, %v926
      %s928 = scalar_lea.vmem %s2, 16
      %v929 = vld [vmem:[%s928] sm:$0xf]
      %v930 = vsel %vm322, %v906, 0
      %v932 = vsel %vm322, %v909, 0
      %v934 = vsel %vm322, %v912, 0
      %v936 = vsel %vm322, %v915, 0
      %v938 = vsel %vm322, %v918, 0
      %v940 = vsel %vm322, %v921, 0
      %v942 = vsel %vm322, %v924, 0
      %v944 = vsel %vm322, %v927, 0
      %v947 = vsel %vm339, %v929, 0
      %949 = vmatprep.subr.mxu0 0.0
      %950 = vmatpush1.msra.mxu0 %v947
      %951 = vmatprep.subr.mxu0 0.0
      %952 = vmatpush1.msra.mxu0 0.0
      %953 = vmatprep.subr.mxu0 0.0
      %954 = vmatpush1.msra.mxu0 0.0
      %955 = vmatprep.subr.mxu0 0.0
      %956 = vmatpush1.msra.mxu0 0.0
      %957 = vmatprep.subr.mxu0 0.0
      %958 = vmatpush1.msra.mxu0 0.0
      %959 = vmatprep.subr.mxu0 0.0
      %960 = vmatpush1.msra.mxu0 0.0
      %961 = vmatprep.subr.mxu0 0.0
      %962 = vmatpush1.msra.mxu0 0.0
      %963 = vmatprep.subr.mxu0 0.0
      %964 = vmatpush1.msra.mxu0 0.0
      %965 = vmatprep.subr.mxu0 0.0
      %966 = vmatpush1.msra.mxu0 0.0
      %967 = vmatprep.subr.mxu0 0.0
      %968 = vmatpush1.msra.mxu0 0.0
      %969 = vmatprep.subr.mxu0 0.0
      %970 = vmatpush1.msra.mxu0 0.0
      %971 = vmatprep.subr.mxu0 0.0
      %972 = vmatpush1.msra.mxu0 0.0
      %973 = vmatprep.subr.mxu0 0.0
      %974 = vmatpush1.msra.mxu0 0.0
      %975 = vmatprep.subr.mxu0 0.0
      %976 = vmatpush1.msra.mxu0 0.0
      %977 = vmatprep.subr.mxu0 0.0
      %978 = vmatpush1.msra.mxu0 0.0
      %979 = vmatprep.subr.mxu0 0.0
      %980 = vmatpush1.msra.mxu0 0.0
      %981 = vmatprep.subr.mxu0 0.0
      %982 = vmatpush1.msra.mxu0 0.0
      %983 = vmatprep.subr.mxu0 0.0
      %984 = vmatpush1.msra.mxu0 0.0
      %985 = vmatprep.subr.mxu0 0.0
      %986 = vmatpush1.msra.mxu0 0.0
      %987 = vmatprep.subr.mxu0 0.0
      %988 = vmatpush1.msra.mxu0 0.0
      %989 = vmatprep.subr.mxu0 0.0
      %990 = vmatpush1.msra.mxu0 0.0
      %991 = vmatprep.subr.mxu0 0.0
      %992 = vmatpush1.msra.mxu0 0.0
      %993 = vmatprep.subr.mxu0 0.0
      %994 = vmatpush1.msra.mxu0 0.0
      %995 = vmatprep.subr.mxu0 0.0
      %996 = vmatpush1.msra.mxu0 0.0
      %997 = vmatprep.subr.mxu0 0.0
      %998 = vmatpush1.msra.mxu0 0.0
      %999 = vmatprep.subr.mxu0 0.0
      %1000 = vmatpush1.msra.mxu0 0.0
      %1001 = vmatprep.subr.mxu0 0.0
      %1002 = vmatpush1.msra.mxu0 0.0
      %1003 = vmatprep.subr.mxu0 0.0
      %1004 = vmatpush1.msra.mxu0 0.0
      %1005 = vmatprep.subr.mxu0 0.0
      %1006 = vmatpush1.msra.mxu0 0.0
      %1007 = vmatprep.subr.mxu0 0.0
      %1008 = vmatpush1.msra.mxu0 0.0
      %1009 = vmatprep.subr.mxu0 0.0
      %1010 = vmatpush1.msra.mxu0 0.0
      %1011 = vmatprep.subr.mxu0 0.0
      %1012 = vmatpush1.msra.mxu0 0.0
      %1013 = vmatprep.mubr.f32.mxu0 0.0
      %1014 = vmatmul.mubr.f32.gmra.mrb[0].mxu0 %v930
      %v1015 = vpop.f32.mrb[0].mxu0
      %v1016 = vadd.f32 0.0, %v1015
      %v1017 = vpop.f32.mrb[0].mxu0
      %1018 = vmatprep.mubr.f32.mxu0 0.0
      %1019 = vmatmul.mubr.f32.gmra.mrb[0].mxu0 %v932
      %v1020 = vpop.f32.mrb[0].mxu0
      %v1021 = vadd.f32 0.0, %v1020
      %v1022 = vpop.f32.mrb[0].mxu0
      %1023 = vmatprep.mubr.f32.mxu0 0.0
      %1024 = vmatmul.mubr.f32.gmra.mrb[0].mxu0 %v934
      %v1025 = vpop.f32.mrb[0].mxu0
      %v1026 = vadd.f32 0.0, %v1025
      %v1027 = vpop.f32.mrb[0].mxu0
      %1028 = vmatprep.mubr.f32.mxu0 0.0
      %1029 = vmatmul.mubr.f32.gmra.mrb[0].mxu0 %v936
      %v1030 = vpop.f32.mrb[0].mxu0
      %v1031 = vadd.f32 0.0, %v1030
      %v1032 = vpop.f32.mrb[0].mxu0
      %1033 = vmatprep.mubr.f32.mxu0 0.0
      %1034 = vmatmul.mubr.f32.gmra.mrb[0].mxu0 %v938
      %v1035 = vpop.f32.mrb[0].mxu0
      %v1036 = vadd.f32 0.0, %v1035
      %v1037 = vpop.f32.mrb[0].mxu0
      %1038 = vmatprep.mubr.f32.mxu0 0.0
      %1039 = vmatmul.mubr.f32.gmra.mrb[0].mxu0 %v940
      %v1040 = vpop.f32.mrb[0].mxu0
      %v1041 = vadd.f32 0.0, %v1040
      %v1042 = vpop.f32.mrb[0].mxu0
      %1043 = vmatprep.mubr.f32.mxu0 0.0
      %1044 = vmatmul.mubr.f32.gmra.mrb[0].mxu0 %v942
      %v1045 = vpop.f32.mrb[0].mxu0
      %v1046 = vadd.f32 0.0, %v1045
      %v1047 = vpop.f32.mrb[0].mxu0
      %1048 = vmatprep.mubr.f32.mxu0 0.0
      %1049 = vmatmul.mubr.f32.gmra.mrb[0].mxu0 %v944
      %v1050 = vpop.f32.mrb[0].mxu0
      %v1051 = vadd.f32 0.0, %v1050
      %v1052 = vpop.f32.mrb[0].mxu0
      %1053 = vdwg.mxu0
      %v1054 = vadd.f32 %v880, %v1016
      %v1055 = vadd.f32 %v881, %v1021
      %v1056 = vadd.f32 %v882, %v1026
      %v1057 = vadd.f32 %v883, %v1031
      %v1058 = vadd.f32 %v884, %v1036
      %v1059 = vadd.f32 %v885, %v1041
      %v1060 = vadd.f32 %v886, %v1046
      %v1061 = vadd.f32 %v887, %v1051
      %v1070 = vrot.slane %v226, 1
      %v1071 = vrot.slane %v227, 1
      %v1072 = vsel %vm295, %v1070, %v1071
      %v1073 = vrot.slane %v228, 1
      %v1074 = vrot.slane %v229, 1
      %v1075 = vsel %vm295, %v1073, %v1074
      %v1076 = vrot.slane %v230, 1
      %v1077 = vrot.slane %v231, 1
      %v1078 = vsel %vm295, %v1076, %v1077
      %v1079 = vrot.slane %v232, 1
      %v1080 = vrot.slane %v233, 1
      %v1081 = vsel %vm295, %v1079, %v1080
      %v1082 = vrot.slane %v234, 1
      %v1083 = vrot.slane %v235, 1
      %v1084 = vsel %vm295, %v1082, %v1083
      %v1085 = vrot.slane %v236, 1
      %v1086 = vrot.slane %v237, 1
      %v1087 = vsel %vm295, %v1085, %v1086
      %v1088 = vrot.slane %v238, 1
      %v1089 = vrot.slane %v239, 1
      %v1090 = vsel %vm295, %v1088, %v1089
      %v1091 = vrot.slane %v240, 1
      %v1092 = vrot.slane %v241, 1
      %v1093 = vsel %vm295, %v1091, %v1092
      %s1094 = scalar_lea.vmem %s2, 20
      %v1095 = vld [vmem:[%s1094] sm:$0xf]
      %v1096 = vsel %vm322, %v1072, 0
      %v1098 = vsel %vm322, %v1075, 0
      %v1100 = vsel %vm322, %v1078, 0
      %v1102 = vsel %vm322, %v1081, 0
      %v1104 = vsel %vm322, %v1084, 0
      %v1106 = vsel %vm322, %v1087, 0
      %v1108 = vsel %vm322, %v1090, 0
      %v1110 = vsel %vm322, %v1093, 0
      %v1113 = vsel %vm339, %v1095, 0
      %1115 = vmatprep.subr.mxu0 0.0
      %1116 = vmatpush1.msra.mxu0 %v1113
      %1117 = vmatprep.subr.mxu0 0.0
      %1118 = vmatpush1.msra.mxu0 0.0
      %1119 = vmatprep.subr.mxu0 0.0
      %1120 = vmatpush1.msra.mxu0 0.0
      %1121 = vmatprep.subr.mxu0 0.0
      %1122 = vmatpush1.msra.mxu0 0.0
      %1123 = vmatprep.subr.mxu0 0.0
      %1124 = vmatpush1.msra.mxu0 0.0
      %1125 = vmatprep.subr.mxu0 0.0
      %1126 = vmatpush1.msra.mxu0 0.0
      %1127 = vmatprep.subr.mxu0 0.0
      %1128 = vmatpush1.msra.mxu0 0.0
      %1129 = vmatprep.subr.mxu0 0.0
      %1130 = vmatpush1.msra.mxu0 0.0
      %1131 = vmatprep.subr.mxu0 0.0
      %1132 = vmatpush1.msra.mxu0 0.0
      %1133 = vmatprep.subr.mxu0 0.0
      %1134 = vmatpush1.msra.mxu0 0.0
      %1135 = vmatprep.subr.mxu0 0.0
      %1136 = vmatpush1.msra.mxu0 0.0
      %1137 = vmatprep.subr.mxu0 0.0
      %1138 = vmatpush1.msra.mxu0 0.0
      %1139 = vmatprep.subr.mxu0 0.0
      %1140 = vmatpush1.msra.mxu0 0.0
      %1141 = vmatprep.subr.mxu0 0.0
      %1142 = vmatpush1.msra.mxu0 0.0
      %1143 = vmatprep.subr.mxu0 0.0
      %1144 = vmatpush1.msra.mxu0 0.0
      %1145 = vmatprep.subr.mxu0 0.0
      %1146 = vmatpush1.msra.mxu0 0.0
      %1147 = vmatprep.subr.mxu0 0.0
      %1148 = vmatpush1.msra.mxu0 0.0
      %1149 = vmatprep.subr.mxu0 0.0
      %1150 = vmatpush1.msra.mxu0 0.0
      %1151 = vmatprep.subr.mxu0 0.0
      %1152 = vmatpush1.msra.mxu0 0.0
      %1153 = vmatprep.subr.mxu0 0.0
      %1154 = vmatpush1.msra.mxu0 0.0
      %1155 = vmatprep.subr.mxu0 0.0
      %1156 = vmatpush1.msra.mxu0 0.0
      %1157 = vmatprep.subr.mxu0 0.0
      %1158 = vmatpush1.msra.mxu0 0.0
      %1159 = vmatprep.subr.mxu0 0.0
      %1160 = vmatpush1.msra.mxu0 0.0
      %1161 = vmatprep.subr.mxu0 0.0
      %1162 = vmatpush1.msra.mxu0 0.0
      %1163 = vmatprep.subr.mxu0 0.0
      %1164 = vmatpush1.msra.mxu0 0.0
      %1165 = vmatprep.subr.mxu0 0.0
      %1166 = vmatpush1.msra.mxu0 0.0
      %1167 = vmatprep.subr.mxu0 0.0
      %1168 = vmatpush1.msra.mxu0 0.0
      %1169 = vmatprep.subr.mxu0 0.0
      %1170 = vmatpush1.msra.mxu0 0.0
      %1171 = vmatprep.subr.mxu0 0.0
      %1172 = vmatpush1.msra.mxu0 0.0
      %1173 = vmatprep.subr.mxu0 0.0
      %1174 = vmatpush1.msra.mxu0 0.0
      %1175 = vmatprep.subr.mxu0 0.0
      %1176 = vmatpush1.msra.mxu0 0.0
      %1177 = vmatprep.subr.mxu0 0.0
      %1178 = vmatpush1.msra.mxu0 0.0
      %1179 = vmatprep.mubr.f32.mxu0 0.0
      %1180 = vmatmul.mubr.f32.gmra.mrb[0].mxu0 %v1096
      %v1181 = vpop.f32.mrb[0].mxu0
      %v1182 = vadd.f32 0.0, %v1181
      %v1183 = vpop.f32.mrb[0].mxu0
      %1184 = vmatprep.mubr.f32.mxu0 0.0
      %1185 = vmatmul.mubr.f32.gmra.mrb[0].mxu0 %v1098
      %v1186 = vpop.f32.mrb[0].mxu0
      %v1187 = vadd.f32 0.0, %v1186
      %v1188 = vpop.f32.mrb[0].mxu0
      %1189 = vmatprep.mubr.f32.mxu0 0.0
      %1190 = vmatmul.mubr.f32.gmra.mrb[0].mxu0 %v1100
      %v1191 = vpop.f32.mrb[0].mxu0
      %v1192 = vadd.f32 0.0, %v1191
      %v1193 = vpop.f32.mrb[0].mxu0
      %1194 = vmatprep.mubr.f32.mxu0 0.0
      %1195 = vmatmul.mubr.f32.gmra.mrb[0].mxu0 %v1102
      %v1196 = vpop.f32.mrb[0].mxu0
      %v1197 = vadd.f32 0.0, %v1196
      %v1198 = vpop.f32.mrb[0].mxu0
      %1199 = vmatprep.mubr.f32.mxu0 0.0
      %1200 = vmatmul.mubr.f32.gmra.mrb[0].mxu0 %v1104
      %v1201 = vpop.f32.mrb[0].mxu0
      %v1202 = vadd.f32 0.0, %v1201
      %v1203 = vpop.f32.mrb[0].mxu0
      %1204 = vmatprep.mubr.f32.mxu0 0.0
      %1205 = vmatmul.mubr.f32.gmra.mrb[0].mxu0 %v1106
      %v1206 = vpop.f32.mrb[0].mxu0
      %v1207 = vadd.f32 0.0, %v1206
      %v1208 = vpop.f32.mrb[0].mxu0
      %1209 = vmatprep.mubr.f32.mxu0 0.0
      %1210 = vmatmul.mubr.f32.gmra.mrb[0].mxu0 %v1108
      %v1211 = vpop.f32.mrb[0].mxu0
      %v1212 = vadd.f32 0.0, %v1211
      %v1213 = vpop.f32.mrb[0].mxu0
      %1214 = vmatprep.mubr.f32.mxu0 0.0
      %1215 = vmatmul.mubr.f32.gmra.mrb[0].mxu0 %v1110
      %v1216 = vpop.f32.mrb[0].mxu0
      %v1217 = vadd.f32 0.0, %v1216
      %v1218 = vpop.f32.mrb[0].mxu0
      %1219 = vdwg.mxu0
      %v1220 = vadd.f32 %v1054, %v1182
      %v1221 = vadd.f32 %v1055, %v1187
      %v1222 = vadd.f32 %v1056, %v1192
      %v1223 = vadd.f32 %v1057, %v1197
      %v1224 = vadd.f32 %v1058, %v1202
      %v1225 = vadd.f32 %v1059, %v1207
      %v1226 = vadd.f32 %v1060, %v1212
      %v1227 = vadd.f32 %v1061, %v1217
      %s1228 = scalar_lea.vmem %s2, 24
      %v1229 = vld [vmem:[%s1228] sm:$0xf]
      %v1231 = vsel %vm322, %v276, 0
      %v1234 = vsel %vm339, %v1229, 0
      %1236 = vmatprep.subr.mxu0 0.0
      %1237 = vmatpush1.msra.mxu0 %v1234
      %1238 = vmatprep.subr.mxu0 0.0
      %1239 = vmatpush1.msra.mxu0 0.0
      %1240 = vmatprep.subr.mxu0 0.0
      %1241 = vmatpush1.msra.mxu0 0.0
      %1242 = vmatprep.subr.mxu0 0.0
      %1243 = vmatpush1.msra.mxu0 0.0
      %1244 = vmatprep.subr.mxu0 0.0
      %1245 = vmatpush1.msra.mxu0 0.0
      %1246 = vmatprep.subr.mxu0 0.0
      %1247 = vmatpush1.msra.mxu0 0.0
      %1248 = vmatprep.subr.mxu0 0.0
      %1249 = vmatpush1.msra.mxu0 0.0
      %1250 = vmatprep.subr.mxu0 0.0
      %1251 = vmatpush1.msra.mxu0 0.0
      %1252 = vmatprep.subr.mxu0 0.0
      %1253 = vmatpush1.msra.mxu0 0.0
      %1254 = vmatprep.subr.mxu0 0.0
      %1255 = vmatpush1.msra.mxu0 0.0
      %1256 = vmatprep.subr.mxu0 0.0
      %1257 = vmatpush1.msra.mxu0 0.0
      %1258 = vmatprep.subr.mxu0 0.0
      %1259 = vmatpush1.msra.mxu0 0.0
      %1260 = vmatprep.subr.mxu0 0.0
      %1261 = vmatpush1.msra.mxu0 0.0
      %1262 = vmatprep.subr.mxu0 0.0
      %1263 = vmatpush1.msra.mxu0 0.0
      %1264 = vmatprep.subr.mxu0 0.0
      %1265 = vmatpush1.msra.mxu0 0.0
      %1266 = vmatprep.subr.mxu0 0.0
      %1267 = vmatpush1.msra.mxu0 0.0
      %1268 = vmatprep.subr.mxu0 0.0
      %1269 = vmatpush1.msra.mxu0 0.0
      %1270 = vmatprep.subr.mxu0 0.0
      %1271 = vmatpush1.msra.mxu0 0.0
      %1272 = vmatprep.subr.mxu0 0.0
      %1273 = vmatpush1.msra.mxu0 0.0
      %1274 = vmatprep.subr.mxu0 0.0
      %1275 = vmatpush1.msra.mxu0 0.0
      %1276 = vmatprep.subr.mxu0 0.0
      %1277 = vmatpush1.msra.mxu0 0.0
      %1278 = vmatprep.subr.mxu0 0.0
      %1279 = vmatpush1.msra.mxu0 0.0
      %1280 = vmatprep.subr.mxu0 0.0
      %1281 = vmatpush1.msra.mxu0 0.0
      %1282 = vmatprep.subr.mxu0 0.0
      %1283 = vmatpush1.msra.mxu0 0.0
      %1284 = vmatprep.subr.mxu0 0.0
      %1285 = vmatpush1.msra.mxu0 0.0
      %1286 = vmatprep.subr.mxu0 0.0
      %1287 = vmatpush1.msra.mxu0 0.0
      %1288 = vmatprep.subr.mxu0 0.0
      %1289 = vmatpush1.msra.mxu0 0.0
      %1290 = vmatprep.subr.mxu0 0.0
      %1291 = vmatpush1.msra.mxu0 0.0
      %1292 = vmatprep.subr.mxu0 0.0
      %1293 = vmatpush1.msra.mxu0 0.0
      %1294 = vmatprep.subr.mxu0 0.0
      %1295 = vmatpush1.msra.mxu0 0.0
      %1296 = vmatprep.subr.mxu0 0.0
      %1297 = vmatpush1.msra.mxu0 0.0
      %1298 = vmatprep.subr.mxu0 0.0
      %1299 = vmatpush1.msra.mxu0 0.0
      %1300 = vmatprep.mubr.f32.mxu0 0.0
      %1301 = vmatmul.mubr.f32.gmra.mrb[0].mxu0 %v452
      %v1302 = vpop.f32.mrb[0].mxu0
      %v1303 = vadd.f32 0.0, %v1302
      %v1304 = vpop.f32.mrb[0].mxu0
      %1305 = vmatprep.mubr.f32.mxu0 0.0
      %1306 = vmatmul.mubr.f32.gmra.mrb[0].mxu0 %v455
      %v1307 = vpop.f32.mrb[0].mxu0
      %v1308 = vadd.f32 0.0, %v1307
      %v1309 = vpop.f32.mrb[0].mxu0
      %1310 = vmatprep.mubr.f32.mxu0 0.0
      %1311 = vmatmul.mubr.f32.gmra.mrb[0].mxu0 %v458
      %v1312 = vpop.f32.mrb[0].mxu0
      %v1313 = vadd.f32 0.0, %v1312
      %v1314 = vpop.f32.mrb[0].mxu0
      %1315 = vmatprep.mubr.f32.mxu0 0.0
      %1316 = vmatmul.mubr.f32.gmra.mrb[0].mxu0 %v461
      %v1317 = vpop.f32.mrb[0].mxu0
      %v1318 = vadd.f32 0.0, %v1317
      %v1319 = vpop.f32.mrb[0].mxu0
      %1320 = vmatprep.mubr.f32.mxu0 0.0
      %1321 = vmatmul.mubr.f32.gmra.mrb[0].mxu0 %v464
      %v1322 = vpop.f32.mrb[0].mxu0
      %v1323 = vadd.f32 0.0, %v1322
      %v1324 = vpop.f32.mrb[0].mxu0
      %1325 = vmatprep.mubr.f32.mxu0 0.0
      %1326 = vmatmul.mubr.f32.gmra.mrb[0].mxu0 %v467
      %v1327 = vpop.f32.mrb[0].mxu0
      %v1328 = vadd.f32 0.0, %v1327
      %v1329 = vpop.f32.mrb[0].mxu0
      %1330 = vmatprep.mubr.f32.mxu0 0.0
      %1331 = vmatmul.mubr.f32.gmra.mrb[0].mxu0 %v470
      %v1332 = vpop.f32.mrb[0].mxu0
      %v1333 = vadd.f32 0.0, %v1332
      %v1334 = vpop.f32.mrb[0].mxu0
      %1335 = vmatprep.mubr.f32.mxu0 0.0
      %1336 = vmatmul.mubr.f32.gmra.mrb[0].mxu0 %v1231
      %v1337 = vpop.f32.mrb[0].mxu0
      %v1338 = vadd.f32 0.0, %v1337
      %v1339 = vpop.f32.mrb[0].mxu0
      %1340 = vdwg.mxu0
      %v1341 = vadd.f32 %v1220, %v1303
      %v1342 = vadd.f32 %v1221, %v1308
      %v1343 = vadd.f32 %v1222, %v1313
      %v1344 = vadd.f32 %v1223, %v1318
      %v1345 = vadd.f32 %v1224, %v1323
      %v1346 = vadd.f32 %v1225, %v1328
      %v1347 = vadd.f32 %v1226, %v1333
      %v1348 = vadd.f32 %v1227, %v1338
      %v1351 = vrot.slane %v258, 1
      %v1352 = vrot.slane %v259, 1
      %v1353 = vsel %vm295, %v1351, %v1352
      %s1354 = scalar_lea.vmem %s2, 28
      %v1355 = vld [vmem:[%s1354] sm:$0xf]
      %v1356 = vsel %vm322, %v1353, 0
      %v1359 = vsel %vm339, %v1355, 0
      %1361 = vmatprep.subr.mxu0 0.0
      %1362 = vmatpush1.msra.mxu0 %v1359
      %1363 = vmatprep.subr.mxu0 0.0
      %1364 = vmatpush1.msra.mxu0 0.0
      %1365 = vmatprep.subr.mxu0 0.0
      %1366 = vmatpush1.msra.mxu0 0.0
      %1367 = vmatprep.subr.mxu0 0.0
      %1368 = vmatpush1.msra.mxu0 0.0
      %1369 = vmatprep.subr.mxu0 0.0
      %1370 = vmatpush1.msra.mxu0 0.0
      %1371 = vmatprep.subr.mxu0 0.0
      %1372 = vmatpush1.msra.mxu0 0.0
      %1373 = vmatprep.subr.mxu0 0.0
      %1374 = vmatpush1.msra.mxu0 0.0
      %1375 = vmatprep.subr.mxu0 0.0
      %1376 = vmatpush1.msra.mxu0 0.0
      %1377 = vmatprep.subr.mxu0 0.0
      %1378 = vmatpush1.msra.mxu0 0.0
      %1379 = vmatprep.subr.mxu0 0.0
      %1380 = vmatpush1.msra.mxu0 0.0
      %1381 = vmatprep.subr.mxu0 0.0
      %1382 = vmatpush1.msra.mxu0 0.0
      %1383 = vmatprep.subr.mxu0 0.0
      %1384 = vmatpush1.msra.mxu0 0.0
      %1385 = vmatprep.subr.mxu0 0.0
      %1386 = vmatpush1.msra.mxu0 0.0
      %1387 = vmatprep.subr.mxu0 0.0
      %1388 = vmatpush1.msra.mxu0 0.0
      %1389 = vmatprep.subr.mxu0 0.0
      %1390 = vmatpush1.msra.mxu0 0.0
      %1391 = vmatprep.subr.mxu0 0.0
      %1392 = vmatpush1.msra.mxu0 0.0
      %1393 = vmatprep.subr.mxu0 0.0
      %1394 = vmatpush1.msra.mxu0 0.0
      %1395 = vmatprep.subr.mxu0 0.0
      %1396 = vmatpush1.msra.mxu0 0.0
      %1397 = vmatprep.subr.mxu0 0.0
      %1398 = vmatpush1.msra.mxu0 0.0
      %1399 = vmatprep.subr.mxu0 0.0
      %1400 = vmatpush1.msra.mxu0 0.0
      %1401 = vmatprep.subr.mxu0 0.0
      %1402 = vmatpush1.msra.mxu0 0.0
      %1403 = vmatprep.subr.mxu0 0.0
      %1404 = vmatpush1.msra.mxu0 0.0
      %1405 = vmatprep.subr.mxu0 0.0
      %1406 = vmatpush1.msra.mxu0 0.0
      %1407 = vmatprep.subr.mxu0 0.0
      %1408 = vmatpush1.msra.mxu0 0.0
      %1409 = vmatprep.subr.mxu0 0.0
      %1410 = vmatpush1.msra.mxu0 0.0
      %1411 = vmatprep.subr.mxu0 0.0
      %1412 = vmatpush1.msra.mxu0 0.0
      %1413 = vmatprep.subr.mxu0 0.0
      %1414 = vmatpush1.msra.mxu0 0.0
      %1415 = vmatprep.subr.mxu0 0.0
      %1416 = vmatpush1.msra.mxu0 0.0
      %1417 = vmatprep.subr.mxu0 0.0
      %1418 = vmatpush1.msra.mxu0 0.0
      %1419 = vmatprep.subr.mxu0 0.0
      %1420 = vmatpush1.msra.mxu0 0.0
      %1421 = vmatprep.subr.mxu0 0.0
      %1422 = vmatpush1.msra.mxu0 0.0
      %1423 = vmatprep.subr.mxu0 0.0
      %1424 = vmatpush1.msra.mxu0 0.0
      %1425 = vmatprep.mubr.f32.mxu0 0.0
      %1426 = vmatmul.mubr.f32.gmra.mrb[0].mxu0 %v325
      %v1427 = vpop.f32.mrb[0].mxu0
      %v1428 = vadd.f32 0.0, %v1427
      %v1429 = vpop.f32.mrb[0].mxu0
      %1430 = vmatprep.mubr.f32.mxu0 0.0
      %1431 = vmatmul.mubr.f32.gmra.mrb[0].mxu0 %v327
      %v1432 = vpop.f32.mrb[0].mxu0
      %v1433 = vadd.f32 0.0, %v1432
      %v1434 = vpop.f32.mrb[0].mxu0
      %1435 = vmatprep.mubr.f32.mxu0 0.0
      %1436 = vmatmul.mubr.f32.gmra.mrb[0].mxu0 %v329
      %v1437 = vpop.f32.mrb[0].mxu0
      %v1438 = vadd.f32 0.0, %v1437
      %v1439 = vpop.f32.mrb[0].mxu0
      %1440 = vmatprep.mubr.f32.mxu0 0.0
      %1441 = vmatmul.mubr.f32.gmra.mrb[0].mxu0 %v331
      %v1442 = vpop.f32.mrb[0].mxu0
      %v1443 = vadd.f32 0.0, %v1442
      %v1444 = vpop.f32.mrb[0].mxu0
      %1445 = vmatprep.mubr.f32.mxu0 0.0
      %1446 = vmatmul.mubr.f32.gmra.mrb[0].mxu0 %v333
      %v1447 = vpop.f32.mrb[0].mxu0
      %v1448 = vadd.f32 0.0, %v1447
      %v1449 = vpop.f32.mrb[0].mxu0
      %1450 = vmatprep.mubr.f32.mxu0 0.0
      %1451 = vmatmul.mubr.f32.gmra.mrb[0].mxu0 %v335
      %v1452 = vpop.f32.mrb[0].mxu0
      %v1453 = vadd.f32 0.0, %v1452
      %v1454 = vpop.f32.mrb[0].mxu0
      %1455 = vmatprep.mubr.f32.mxu0 0.0
      %1456 = vmatmul.mubr.f32.gmra.mrb[0].mxu0 %v337
      %v1457 = vpop.f32.mrb[0].mxu0
      %v1458 = vadd.f32 0.0, %v1457
      %v1459 = vpop.f32.mrb[0].mxu0
      %1460 = vmatprep.mubr.f32.mxu0 0.0
      %1461 = vmatmul.mubr.f32.gmra.mrb[0].mxu0 %v1356
      %v1462 = vpop.f32.mrb[0].mxu0
      %v1463 = vadd.f32 0.0, %v1462
      %v1464 = vpop.f32.mrb[0].mxu0
      %1465 = vdwg.mxu0
      %v1466 = vadd.f32 %v1341, %v1428
      %v1467 = vadd.f32 %v1342, %v1433
      %v1468 = vadd.f32 %v1343, %v1438
      %v1469 = vadd.f32 %v1344, %v1443
      %v1470 = vadd.f32 %v1345, %v1448
      %v1471 = vadd.f32 %v1346, %v1453
      %v1472 = vadd.f32 %v1347, %v1458
      %v1473 = vadd.f32 %v1348, %v1463
      %v1475 = vrot.slane %v276, 1
      %v1476 = vrot.slane %v277, 1
      %v1477 = vsel %vm295, %v1475, %v1476
      %s1478 = scalar_lea.vmem %s2, 32
      %v1479 = vld [vmem:[%s1478] sm:$0xf]
      %v1480 = vsel %vm322, %v1477, 0
      %v1483 = vsel %vm339, %v1479, 0
      %1485 = vmatprep.subr.mxu0 0.0
      %1486 = vmatpush1.msra.mxu0 %v1483
      %1487 = vmatprep.subr.mxu0 0.0
      %1488 = vmatpush1.msra.mxu0 0.0
      %1489 = vmatprep.subr.mxu0 0.0
      %1490 = vmatpush1.msra.mxu0 0.0
      %1491 = vmatprep.subr.mxu0 0.0
      %1492 = vmatpush1.msra.mxu0 0.0
      %1493 = vmatprep.subr.mxu0 0.0
      %1494 = vmatpush1.msra.mxu0 0.0
      %1495 = vmatprep.subr.mxu0 0.0
      %1496 = vmatpush1.msra.mxu0 0.0
      %1497 = vmatprep.subr.mxu0 0.0
      %1498 = vmatpush1.msra.mxu0 0.0
      %1499 = vmatprep.subr.mxu0 0.0
      %1500 = vmatpush1.msra.mxu0 0.0
      %1501 = vmatprep.subr.mxu0 0.0
      %1502 = vmatpush1.msra.mxu0 0.0
      %1503 = vmatprep.subr.mxu0 0.0
      %1504 = vmatpush1.msra.mxu0 0.0
      %1505 = vmatprep.subr.mxu0 0.0
      %1506 = vmatpush1.msra.mxu0 0.0
      %1507 = vmatprep.subr.mxu0 0.0
      %1508 = vmatpush1.msra.mxu0 0.0
      %1509 = vmatprep.subr.mxu0 0.0
      %1510 = vmatpush1.msra.mxu0 0.0
      %1511 = vmatprep.subr.mxu0 0.0
      %1512 = vmatpush1.msra.mxu0 0.0
      %1513 = vmatprep.subr.mxu0 0.0
      %1514 = vmatpush1.msra.mxu0 0.0
      %1515 = vmatprep.subr.mxu0 0.0
      %1516 = vmatpush1.msra.mxu0 0.0
      %1517 = vmatprep.subr.mxu0 0.0
      %1518 = vmatpush1.msra.mxu0 0.0
      %1519 = vmatprep.subr.mxu0 0.0
      %1520 = vmatpush1.msra.mxu0 0.0
      %1521 = vmatprep.subr.mxu0 0.0
      %1522 = vmatpush1.msra.mxu0 0.0
      %1523 = vmatprep.subr.mxu0 0.0
      %1524 = vmatpush1.msra.mxu0 0.0
      %1525 = vmatprep.subr.mxu0 0.0
      %1526 = vmatpush1.msra.mxu0 0.0
      %1527 = vmatprep.subr.mxu0 0.0
      %1528 = vmatpush1.msra.mxu0 0.0
      %1529 = vmatprep.subr.mxu0 0.0
      %1530 = vmatpush1.msra.mxu0 0.0
      %1531 = vmatprep.subr.mxu0 0.0
      %1532 = vmatpush1.msra.mxu0 0.0
      %1533 = vmatprep.subr.mxu0 0.0
      %1534 = vmatpush1.msra.mxu0 0.0
      %1535 = vmatprep.subr.mxu0 0.0
      %1536 = vmatpush1.msra.mxu0 0.0
      %1537 = vmatprep.subr.mxu0 0.0
      %1538 = vmatpush1.msra.mxu0 0.0
      %1539 = vmatprep.subr.mxu0 0.0
      %1540 = vmatpush1.msra.mxu0 0.0
      %1541 = vmatprep.subr.mxu0 0.0
      %1542 = vmatpush1.msra.mxu0 0.0
      %1543 = vmatprep.subr.mxu0 0.0
      %1544 = vmatpush1.msra.mxu0 0.0
      %1545 = vmatprep.subr.mxu0 0.0
      %1546 = vmatpush1.msra.mxu0 0.0
      %1547 = vmatprep.subr.mxu0 0.0
      %1548 = vmatpush1.msra.mxu0 0.0
      %1549 = vmatprep.mubr.f32.mxu0 0.0
      %1550 = vmatmul.mubr.f32.gmra.mrb[0].mxu0 %v616
      %v1551 = vpop.f32.mrb[0].mxu0
      %v1552 = vadd.f32 0.0, %v1551
      %v1553 = vpop.f32.mrb[0].mxu0
      %1554 = vmatprep.mubr.f32.mxu0 0.0
      %1555 = vmatmul.mubr.f32.gmra.mrb[0].mxu0 %v618
      %v1556 = vpop.f32.mrb[0].mxu0
      %v1557 = vadd.f32 0.0, %v1556
      %v1558 = vpop.f32.mrb[0].mxu0
      %1559 = vmatprep.mubr.f32.mxu0 0.0
      %1560 = vmatmul.mubr.f32.gmra.mrb[0].mxu0 %v620
      %v1561 = vpop.f32.mrb[0].mxu0
      %v1562 = vadd.f32 0.0, %v1561
      %v1563 = vpop.f32.mrb[0].mxu0
      %1564 = vmatprep.mubr.f32.mxu0 0.0
      %1565 = vmatmul.mubr.f32.gmra.mrb[0].mxu0 %v622
      %v1566 = vpop.f32.mrb[0].mxu0
      %v1567 = vadd.f32 0.0, %v1566
      %v1568 = vpop.f32.mrb[0].mxu0
      %1569 = vmatprep.mubr.f32.mxu0 0.0
      %1570 = vmatmul.mubr.f32.gmra.mrb[0].mxu0 %v624
      %v1571 = vpop.f32.mrb[0].mxu0
      %v1572 = vadd.f32 0.0, %v1571
      %v1573 = vpop.f32.mrb[0].mxu0
      %1574 = vmatprep.mubr.f32.mxu0 0.0
      %1575 = vmatmul.mubr.f32.gmra.mrb[0].mxu0 %v626
      %v1576 = vpop.f32.mrb[0].mxu0
      %v1577 = vadd.f32 0.0, %v1576
      %v1578 = vpop.f32.mrb[0].mxu0
      %1579 = vmatprep.mubr.f32.mxu0 0.0
      %1580 = vmatmul.mubr.f32.gmra.mrb[0].mxu0 %v628
      %v1581 = vpop.f32.mrb[0].mxu0
      %v1582 = vadd.f32 0.0, %v1581
      %v1583 = vpop.f32.mrb[0].mxu0
      %1584 = vmatprep.mubr.f32.mxu0 0.0
      %1585 = vmatmul.mubr.f32.gmra.mrb[0].mxu0 %v1480
      %v1586 = vpop.f32.mrb[0].mxu0
      %v1587 = vadd.f32 0.0, %v1586
      %v1588 = vpop.f32.mrb[0].mxu0
      %1589 = vdwg.mxu0
      %v1590 = vadd.f32 %v1466, %v1552
      %v1591 = vadd.f32 %v1467, %v1557
      %v1592 = vadd.f32 %v1468, %v1562
      %v1593 = vadd.f32 %v1469, %v1567
      %v1594 = vadd.f32 %v1470, %v1572
      %v1595 = vadd.f32 %v1471, %v1577
      %v1596 = vadd.f32 %v1472, %v1582
      %v1597 = vadd.f32 %v1473, %v1587
      %vm1598 = vcmask 64512
      %v1599 = vsel %vm1598, %v1590, 0.0
      %v1600 = vsel %vm1598, %v1591, 0.0
      %v1601 = vadd.f32 %v1599, %v1600
      %v1602 = vsel %vm1598, %v1592, 0.0
      %v1603 = vadd.f32 %v1601, %v1602
      %v1604 = vsel %vm1598, %v1593, 0.0
      %v1605 = vadd.f32 %v1603, %v1604
      %v1606 = vsel %vm1598, %v1594, 0.0
      %v1607 = vadd.f32 %v1605, %v1606
      %v1608 = vsel %vm1598, %v1595, 0.0
      %v1609 = vadd.f32 %v1607, %v1608
      %v1610 = vsel %vm1598, %v1596, 0.0
      %v1611 = vadd.f32 %v1609, %v1610
      %v1612 = vsel %vm1598, %v1597, 0.0
      %v1613 = vadd.f32 %v1611, %v1612
      %v1614 = vrot.slane %v1613, 4
      %v1615 = vadd.f32 %v1613, %v1614
      %v1616 = vrot.slane %v1615, 2
      %v1617 = vadd.f32 %v1615, %v1616
      %v1618 = vrot.slane %v1617, 1
      %v1619 = vadd.f32 %v1617, %v1618
      %v1620 = vadd.f32 %v1619, 0.0
      %v1621 = vmul.f32 %v1590, %v1590
      %v1622 = vmul.f32 %v1591, %v1591
      %v1623 = vmul.f32 %v1592, %v1592
      %v1624 = vmul.f32 %v1593, %v1593
      %v1625 = vmul.f32 %v1594, %v1594
      %v1626 = vmul.f32 %v1595, %v1595
      %v1627 = vmul.f32 %v1596, %v1596
      %v1628 = vmul.f32 %v1597, %v1597
      %v1629 = vsel %vm1598, %v1621, 0.0
      %v1630 = vsel %vm1598, %v1622, 0.0
      %v1631 = vadd.f32 %v1629, %v1630
      %v1632 = vsel %vm1598, %v1623, 0.0
      %v1633 = vadd.f32 %v1631, %v1632
      %v1634 = vsel %vm1598, %v1624, 0.0
      %v1635 = vadd.f32 %v1633, %v1634
      %v1636 = vsel %vm1598, %v1625, 0.0
      %v1637 = vadd.f32 %v1635, %v1636
      %v1638 = vsel %vm1598, %v1626, 0.0
      %v1639 = vadd.f32 %v1637, %v1638
      %v1640 = vsel %vm1598, %v1627, 0.0
      %v1641 = vadd.f32 %v1639, %v1640
      %v1642 = vsel %vm1598, %v1628, 0.0
      %v1643 = vadd.f32 %v1641, %v1642
      %v1644 = vrot.slane %v1643, 4
      %v1645 = vadd.f32 %v1643, %v1644
      %v1646 = vrot.slane %v1645, 2
      %v1647 = vadd.f32 %v1645, %v1646
      %v1648 = vrot.slane %v1647, 1
      %v1649 = vadd.f32 %v1647, %v1648
      %v1650 = vadd.f32 %v1649, 0.0
      %v1652 = vlaneseq
      %v1653 = vshrl.u32 %v1652, 7
      %v1654 = vsub.s32 0, %v1653
      %v1655 = vrot.slane %v209, %v1654
      %v1657 = vadd.f32 %v1590, %v1655
      %v1658 = vadd.f32 %v1591, %v1655
      %v1659 = vadd.f32 %v1592, %v1655
      %v1660 = vadd.f32 %v1593, %v1655
      %v1661 = vadd.f32 %v1594, %v1655
      %v1662 = vadd.f32 %v1595, %v1655
      %v1663 = vadd.f32 %v1596, %v1655
      %v1664 = vadd.f32 %v1597, %v1655
      %1665 = vst.msk [vmem:[%s204] sm:$0xff] %vm1598, %v1657
      %1666 = vst.msk [vmem:[%s204 + $0x8] sm:$0xff] %vm1598, %v1658
      %1667 = vst.msk [vmem:[%s204 + $0x10] sm:$0xff] %vm1598, %v1659
      %1668 = vst.msk [vmem:[%s204 + $0x18] sm:$0xff] %vm1598, %v1660
      %1669 = vst.msk [vmem:[%s204 + $0x20] sm:$0xff] %vm1598, %v1661
      %1670 = vst.msk [vmem:[%s204 + $0x28] sm:$0xff] %vm1598, %v1662
      %1671 = vst.msk [vmem:[%s204 + $0x30] sm:$0xff] %vm1598, %v1663
      %1672 = vst.msk [vmem:[%s204 + $0x38] sm:$0xff] %vm1598, %v1664
      %vm1673 = vcmask 1040384
      %v1674 = vsel %vm1673, %v1620, %v1650
      %vm1675 = vcmask 58368
      %1676 = vst.msk [vmem:[%s208] sm:$0x3] %vm1675, %v1674
      %p1677 = scmp.lt.s32.totalorder %s16, 1
      %s1678 = scalar_select %p1677, %s16, 1
      %s1679 = smul.addr %s1678, 8
      %s1680 = smul.addr %s1679, 8
      %s1681 = scalar_lea.vmem %s3, %s1680
      %p1682 = scmp.lt.s32.totalorder %s16, 1
      %s1683 = scalar_select %p1682, %s16, 1
      %s1684 = smul.addr %s1683, 2
      %s1685 = scalar_lea.vmem %s4, %s1684
      // Predicated region
      $region33: #{forward.4} parent=31 // pred_check
        %p1686 = pneg %p102
      $region34: #{forward.4} parent=31 // pred_check_branch
        %1688 = sbr.rel (%p1686) target = $region36
      $region35: #{forward.4} parent=31 // pred_region
        _
      $region36: #{forward.4} parent=31 // pred_fallthru
        _
      // Predicated region
      $region37: #{forward.4} parent=31 // pred_check
        %p1689 = pneg %p128
      $region38: #{forward.4} parent=31 // pred_check_branch
        %1691 = sbr.rel (%p1689) target = $region40
      $region39: #{forward.4} parent=31 // pred_region
        _
      $region40: #{forward.4} parent=31 // pred_fallthru
        _
    $region32: #{forward.4} parent=5 // pred_fallthru
      _
    %p1692 = scmp.le.s32.totalorder 2, %s11
    // Predicated region
    $region41: #{forward.4} parent=5 // pred_check
      %p1693 = pneg %p1692
    $region42: #{forward.4} parent=5 // pred_check_branch
      %1695 = sbr.rel (%p1693) target = $region44
    $region43: #{forward.4} parent=5 // pred_region
      %s1696 = ssub.s32 %s11, 2
      // Predicated region
      $region45: #{forward.4} parent=43 // pred_check
        %p1697 = pneg %p108
      $region46: #{forward.4} parent=43 // pred_check_branch
        %1699 = sbr.rel (%p1697) target = $region48
      $region47: #{forward.4} parent=43 // pred_region
        %p1700 = scmp.lt.s32.totalorder %s17, 1
        %s1701 = scalar_select %p1700, %s17, 1
        %s1702 = smul.addr %s1701, 8
        %s1703 = smul.addr %s1702, 8
        %s1704 = scalar_lea.vmem %s3, %s1703
      $region48: #{forward.4} parent=43 // pred_fallthru
        _
      // Predicated region
      $region49: #{forward.4} parent=43 // pred_check
        %p1705 = pneg %p134
      $region50: #{forward.4} parent=43 // pred_check_branch
        %1707 = sbr.rel (%p1705) target = $region52
      $region51: #{forward.4} parent=43 // pred_region
        %p1708 = scmp.lt.s32.totalorder %s17, 1
        %s1709 = scalar_select %p1708, %s17, 1
        %s1710 = smul.addr %s1709, 2
        %s1711 = scalar_lea.vmem %s4, %s1710
      $region52: #{forward.4} parent=43 // pred_fallthru
        _
    $region44: #{forward.4} parent=5 // pred_fallthru
      _
  $region6: #{forward.4} parent=0 // loop_footer
    %s15 = sadd.s32 1, %s11
  $region7: #{forward.4} parent=0 // loop_footer_branch
    %10 = sbr.rel target = $region3
  $region8: #{forward.4} parent=0 // loop_exit
    _

// kernel: forward.7
$region0: #{forward.7}
  #allocation0 [shape = 'u32[]', space=smem, size = 0x4, offset = 0x4, fixed_abs, tag = 'smem constant byte address 0x4 - core index']
  #allocation1 [shape = 'u32[144,128]{1,0:T(1,128)}', space=vmem, size = 0x12000, scoped, tag = 'internal scratch']
  %s0 = inlined_call_operand.vmem [shape: f32[2,1,9,9,8], index: 0, kind: input, shape index: {}]
  %s1 = inlined_call_operand.vmem [shape: f32[1,16], index: 1, kind: input, shape index: {}]
  %s2 = inlined_call_operand.vmem [shape: f32[4,8,16], index: 2, kind: input, shape index: {}]
  %s3 = inlined_call_operand.vmem [shape: f32[2,64,16], index: 3, kind: output, shape index: {0}]
  %s4 = inlined_call_operand.hbm [shape: f32[2,2,16], index: 4, kind: output, shape index: {1}]
  %5 = xla_tuple %s3, %s4
  %s6 = sld [smem:[#allocation0]]
  $region53: #{forward.7} parent=0
    _
  %s8 = ssub.s32 1, %s6
  %s9 = scalar_select 0, %s8, %s6
  $region1: #{forward.7} parent=0
    #allocation2 [shape = 'u8[2048]{0}', space=vmem, size = 0x800, scoped, tag = 'output window, operand 1']
    #allocation3 [shape = 's32[2]{0}', space=sflag, size = 0x8, scoped, tag = 'scoped memory for forward.7']
    %10 = vsyncpa [#allocation3], 0
    %s11 = scalar_lea.sflag [#allocation3], 1
    %12 = vsyncpa %s11, 0
    loop: start=0, step=1, limit=4
    $region2: #{forward.7} parent=1 // loop_pre_header
      _
    $region3: #{forward.7} parent=1 // loop_header
      %s14 = sphi 0, %s18
      %p15 = scmp.ge.s32.totalorder %s14, 4
      %s24 = sphi 0, %s26
      %s27 = sphi 0, %s24
      %s28 = sphi 0, %s27
      %s44 = sphi 0, %s28
      %s48 = sphi 0, %s48
      %s50 = sphi 0, %s48
      %s51 = sphi 0, %s50
      %s65 = sphi 0, %s51
      %s69 = sphi 0, %s69
      %s71 = sphi 0, %s69
      %s72 = sphi 0, %s71
      %s86 = sphi 0, %s72
      %s92 = sphi 0, %s94
      %s95 = sphi 0, %s92
      %s96 = sphi 0, %s95
      %s112 = sphi 0, %s96
      %s118 = sphi 0, %s120
      %s121 = sphi 0, %s118
      %s122 = sphi 0, %s121
      %s138 = sphi 0, %s122
    $region4: #{forward.7} parent=1 // loop_header_branch
      %17 = sbr.rel (%p15) target = $region8
    $region5: #{forward.7} parent=1 // loop_body
      %s19 = ssub.s32 %s14, 1
      %s20 = ssub.s32 %s14, 2
      %s21 = sadd.s32 %s14, 1
      %s22 = ssub.s32 %s14, %s21
      %p23 = scmp.eq.s32.totalorder %s22, 0
      %s25 = sadd.s32 %s24, 1
      %s26 = scalar_select %p23, %s24, %s25
      %p29 = pneg %p23
      %p30 = scmp.eq.s32.totalorder %s14, 1
      %p31 = por %p29, %p30
      %p32 = scmp.ne.s32.totalorder %s24, %s27
      %p33 = scmp.eq.s32.totalorder %s14, 0
      %p34 = por %p32, %p33
      %p35 = scmp.ne.s32.totalorder %s24, %s27
      %p36 = scmp.eq.s32.totalorder %s19, 1
      %p37 = por %p35, %p36
      %p38 = scmp.ne.s32.totalorder %s27, %s28
      %p39 = scmp.eq.s32.totalorder %s19, 0
      %p40 = por %p38, %p39
      %p41 = scmp.ne.s32.totalorder %s27, %s28
      %p42 = scmp.eq.s32.totalorder %s20, 1
      %p43 = por %p41, %p42
      %p45 = scmp.ne.s32.totalorder %s28, %s44
      %p46 = scmp.eq.s32.totalorder %s20, 0
      %p47 = por %p45, %p46
      %s49 = sadd.s32 %s48, 1
      %p52 = scmp.eq.s32.totalorder %s14, 1
      %p53 = scmp.ne.s32.totalorder %s48, %s50
      %p54 = scmp.eq.s32.totalorder %s14, 0
      %p55 = por %p53, %p54
      %p56 = scmp.ne.s32.totalorder %s48, %s50
      %p57 = scmp.eq.s32.totalorder %s19, 1
      %p58 = por %p56, %p57
      %p59 = scmp.ne.s32.totalorder %s50, %s51
      %p60 = scmp.eq.s32.totalorder %s19, 0
      %p61 = por %p59, %p60
      %p62 = scmp.ne.s32.totalorder %s50, %s51
      %p63 = scmp.eq.s32.totalorder %s20, 1
      %p64 = por %p62, %p63
      %p66 = scmp.ne.s32.totalorder %s51, %s65
      %p67 = scmp.eq.s32.totalorder %s20, 0
      %p68 = por %p66, %p67
      %s70 = sadd.s32 %s69, 1
      %p73 = scmp.eq.s32.totalorder %s14, 1
      %p74 = scmp.ne.s32.totalorder %s69, %s71
      %p75 = scmp.eq.s32.totalorder %s14, 0
      %p76 = por %p74, %p75
      %p77 = scmp.ne.s32.totalorder %s69, %s71
      %p78 = scmp.eq.s32.totalorder %s19, 1
      %p79 = por %p77, %p78
      %p80 = scmp.ne.s32.totalorder %s71, %s72
      %p81 = scmp.eq.s32.totalorder %s19, 0
      %p82 = por %p80, %p81
      %p83 = scmp.ne.s32.totalorder %s71, %s72
      %p84 = scmp.eq.s32.totalorder %s20, 1
      %p85 = por %p83, %p84
      %p87 = scmp.ne.s32.totalorder %s72, %s86
      %p88 = scmp.eq.s32.totalorder %s20, 0
      %p89 = por %p87, %p88
      %s90 = ssub.s32 %s14, %s21
      %p91 = scmp.eq.s32.totalorder %s90, 0
      %s93 = sadd.s32 %s92, 1
      %s94 = scalar_select %p91, %s92, %s93
      %p97 = pneg %p91
      %p98 = scmp.eq.s32.totalorder %s14, 1
      %p99 = por %p97, %p98
      %p100 = scmp.ne.s32.totalorder %s92, %s95
      %p101 = scmp.eq.s32.totalorder %s14, 0
      %p102 = por %p100, %p101
      %p103 = scmp.ne.s32.totalorder %s92, %s95
      %p104 = scmp.eq.s32.totalorder %s19, 1
      %p105 = por %p103, %p104
      %p106 = scmp.ne.s32.totalorder %s95, %s96
      %p107 = scmp.eq.s32.totalorder %s19, 0
      %p108 = por %p106, %p107
      %p109 = scmp.ne.s32.totalorder %s95, %s96
      %p110 = scmp.eq.s32.totalorder %s20, 1
      %p111 = por %p109, %p110
      %p113 = scmp.ne.s32.totalorder %s96, %s112
      %p114 = scmp.eq.s32.totalorder %s20, 0
      %p115 = por %p113, %p114
      %s116 = ssub.s32 %s14, %s21
      %p117 = scmp.eq.s32.totalorder %s116, 0
      %s119 = sadd.s32 %s118, 1
      %s120 = scalar_select %p117, %s118, %s119
      %p123 = pneg %p117
      %p124 = scmp.eq.s32.totalorder %s14, 1
      %p125 = por %p123, %p124
      %p126 = scmp.ne.s32.totalorder %s118, %s121
      %p127 = scmp.eq.s32.totalorder %s14, 0
      %p128 = por %p126, %p127
      %p129 = scmp.ne.s32.totalorder %s118, %s121
      %p130 = scmp.eq.s32.totalorder %s19, 1
      %p131 = por %p129, %p130
      %p132 = scmp.ne.s32.totalorder %s121, %s122
      %p133 = scmp.eq.s32.totalorder %s19, 0
      %p134 = por %p132, %p133
      %p135 = scmp.ne.s32.totalorder %s121, %s122
      %p136 = scmp.eq.s32.totalorder %s20, 1
      %p137 = por %p135, %p136
      %p139 = scmp.ne.s32.totalorder %s122, %s138
      %p140 = scmp.eq.s32.totalorder %s20, 0
      %p141 = por %p139, %p140
      %p142 = scmp.le.s32.totalorder 1, %s14
      %p143 = scmp.lt.s32.totalorder %s14, 3
      %p144 = pnand %p142, %p143
      %p145 = pneg %p144
      // Predicated region
      $region9: #{forward.7} parent=5 // pred_check
        _
      $region10: #{forward.7} parent=5 // pred_check_branch
        %147 = sbr.rel (%p144) target = $region12
      $region11: #{forward.7} parent=5 // pred_region
        %s148 = ssub.s32 %s14, 1
        // Predicated region
        $region13: #{forward.7} parent=11 // pred_check
          %p149 = pneg %p61
        $region14: #{forward.7} parent=11 // pred_check_branch
          %151 = sbr.rel (%p149) target = $region16
        $region15: #{forward.7} parent=11 // pred_region
          _
        $region16: #{forward.7} parent=11 // pred_fallthru
          _
        // Predicated region
        $region17: #{forward.7} parent=11 // pred_check
          %p152 = pneg %p82
        $region18: #{forward.7} parent=11 // pred_check_branch
          %154 = sbr.rel (%p152) target = $region20
        $region19: #{forward.7} parent=11 // pred_region
          _
        $region20: #{forward.7} parent=11 // pred_fallthru
          _
      $region12: #{forward.7} parent=5 // pred_fallthru
        _
      %p155 = scmp.lt.s32.totalorder %s14, 2
      // Predicated region
      $region21: #{forward.7} parent=5 // pred_check
        %p156 = pneg %p155
      $region22: #{forward.7} parent=5 // pred_check_branch
        %158 = sbr.rel (%p156) target = $region24
      $region23: #{forward.7} parent=5 // pred_region
        // Predicated region
        $region25: #{forward.7} parent=23 // pred_check
          %p159 = pneg %p34
        $region26: #{forward.7} parent=23 // pred_check_branch
          %161 = sbr.rel (%p159) target = $region28
        $region27: #{forward.7} parent=23 // pred_region
          %p162 = scmp.lt.s32.totalorder %s14, 1
          %s163 = scalar_select %p162, %s14, 1
          %s164 = smul.addr %s163, 18
          %s165 = smul.addr %s164, 8
          %s166 = scalar_lea.vmem %s0, %s165
        $region28: #{forward.7} parent=23 // pred_fallthru
          _
      $region24: #{forward.7} parent=5 // pred_fallthru
        _
      %p167 = scmp.le.s32.totalorder 1, %s14
      %p168 = scmp.lt.s32.totalorder %s14, 3
      %p169 = pnand %p167, %p168
      %p170 = pneg %p169
      // Predicated region
      $region29: #{forward.7} parent=5 // pred_check
        _
      $region30: #{forward.7} parent=5 // pred_check_branch
        %172 = sbr.rel (%p169) target = $region32
      $region31: #{forward.7} parent=5 // pred_region
        %s173 = ssub.s32 %s14, 1
        %p174 = scmp.lt.s32.totalorder %s19, 1
        %s175 = scalar_select %p174, %s19, 1
        %s176 = smul.addr %s175, 18
        %s177 = smul.addr %s176, 8
        %s178 = scalar_lea.vmem %s0, %s177
        %p179 = pneg %p40
        %p180 = pneg %p37
        %p181 = pneg %p61
        %p182 = pneg %p58
        %p183 = pneg %p82
        %p184 = pneg %p79
        %p185 = pneg %p108
        %p186 = pneg %p105
        %p187 = scmp.lt.s32.totalorder %s19, 1
        %s188 = scalar_select %p187, %s19, 1
        %s189 = smul.addr %s188, 8
        %s190 = smul.addr %s189, 8
        %s191 = scalar_lea.vmem %s3, %s190
        %p192 = pneg %p134
        %p193 = pneg %p131
        %s194 = sand.u32 %s121, 1
        %s195 = scalar_lea.sflag [#allocation3], %s194
        %s196 = sand.u32 %s121, 1
        %s197 = smul.addr %s196, 2
        %s198 = scalar_lea.vmem [#allocation2], %s197
        %p199 = scmp.lt.s32.totalorder %s19, 1
        %s200 = scalar_select %p199, %s19, 1
        %s201 = smul.addr %s200, 18
        %s202 = smul.addr %s201, 8
        %s203 = scalar_lea.vmem %s0, %s202
        %p204 = scmp.lt.s32.totalorder %s19, 1
        %s205 = scalar_select %p204, %s19, 1
        %s206 = smul.addr %s205, 8
        %s207 = smul.addr %s206, 8
        %s208 = scalar_lea.vmem %s3, %s207
        %v209 = vld [vmem:[%s1] sm:$0x1]
        %v210 = vld [vmem:[%s203] sm:$0xff]
        %v211 = vld [vmem:[%s203 + $0x8] sm:$0x1]
        %v212 = vld [vmem:[%s203 + $0x10] sm:$0xff]
        %v213 = vld [vmem:[%s203 + $0x18] sm:$0x1]
        %v214 = vld [vmem:[%s203 + $0x20] sm:$0xff]
        %v215 = vld [vmem:[%s203 + $0x28] sm:$0x1]
        %v216 = vld [vmem:[%s203 + $0x30] sm:$0xff]
        %v217 = vld [vmem:[%s203 + $0x38] sm:$0x1]
        %v218 = vld [vmem:[%s203 + $0x40] sm:$0xff]
        %v219 = vld [vmem:[%s203 + $0x48] sm:$0x1]
        %v220 = vld [vmem:[%s203 + $0x50] sm:$0xff]
        %v221 = vld [vmem:[%s203 + $0x58] sm:$0x1]
        %v222 = vld [vmem:[%s203 + $0x60] sm:$0xff]
        %v223 = vld [vmem:[%s203 + $0x68] sm:$0x1]
        %v224 = vld [vmem:[%s203 + $0x70] sm:$0xff]
        %v225 = vld [vmem:[%s203 + $0x78] sm:$0x1]
        %v226 = vld [vmem:[%s203 + $0x80] sm:$0xff]
        %v227 = vld [vmem:[%s203 + $0x88] sm:$0x1]
        %v228 = vld [vmem:[%s2] sm:$0xff]
        %vm245 = vcmask 1046528
        %v246 = vrot.slane %v210, 1
        %v247 = vrot.slane %v211, 1
        %v248 = vsel %vm245, %v246, %v247
        %v249 = vrot.slane %v212, 1
        %v250 = vrot.slane %v213, 1
        %v251 = vsel %vm245, %v249, %v250
        %v252 = vrot.slane %v214, 1
        %v253 = vrot.slane %v215, 1
        %v254 = vsel %vm245, %v252, %v253
        %v255 = vrot.slane %v216, 1
        %v256 = vrot.slane %v217, 1
        %v257 = vsel %vm245, %v255, %v256
        %v258 = vrot.slane %v218, 1
        %v259 = vrot.slane %v219, 1
        %v260 = vsel %vm245, %v258, %v259
        %v261 = vrot.slane %v220, 1
        %v262 = vrot.slane %v221, 1
        %v263 = vsel %vm245, %v261, %v262
        %v264 = vrot.slane %v222, 1
        %v265 = vrot.slane %v223, 1
        %v266 = vsel %vm245, %v264, %v265
        %v267 = vrot.slane %v224, 1
        %v268 = vrot.slane %v225, 1
        %v269 = vsel %vm245, %v267, %v268
        %s270 = scalar_lea.vmem %s2, 8
        %v271 = vld [vmem:[%s270] sm:$0xff]
        %vm272 = vcmask 64512
        %v273 = vsel %vm272, %v248, 0
        %v275 = vsel %vm272, %v251, 0
        %v277 = vsel %vm272, %v254, 0
        %v279 = vsel %vm272, %v257, 0
        %v281 = vsel %vm272, %v260, 0
        %v283 = vsel %vm272, %v263, 0
        %v285 = vsel %vm272, %v266, 0
        %v287 = vsel %vm272, %v269, 0
        %289 = vmatprep.subr.mxu0 0.0
        %290 = vmatpush1.msra.mxu0 %v271
        %291 = vmatprep.subr.mxu0 0.0
        %292 = vmatpush1.msra.mxu0 0.0
        %293 = vmatprep.subr.mxu0 0.0
        %294 = vmatpush1.msra.mxu0 0.0
        %295 = vmatprep.subr.mxu0 0.0
        %296 = vmatpush1.msra.mxu0 0.0
        %297 = vmatprep.subr.mxu0 0.0
        %298 = vmatpush1.msra.mxu0 0.0
        %299 = vmatprep.subr.mxu0 0.0
        %300 = vmatpush1.msra.mxu0 0.0
        %301 = vmatprep.subr.mxu0 0.0
        %302 = vmatpush1.msra.mxu0 0.0
        %303 = vmatprep.subr.mxu0 0.0
        %304 = vmatpush1.msra.mxu0 0.0
        %305 = vmatprep.subr.mxu0 0.0
        %306 = vmatpush1.msra.mxu0 0.0
        %307 = vmatprep.subr.mxu0 0.0
        %308 = vmatpush1.msra.mxu0 0.0
        %309 = vmatprep.subr.mxu0 0.0
        %310 = vmatpush1.msra.mxu0 0.0
        %311 = vmatprep.subr.mxu0 0.0
        %312 = vmatpush1.msra.mxu0 0.0
        %313 = vmatprep.subr.mxu0 0.0
        %314 = vmatpush1.msra.mxu0 0.0
        %315 = vmatprep.subr.mxu0 0.0
        %316 = vmatpush1.msra.mxu0 0.0
        %317 = vmatprep.subr.mxu0 0.0
        %318 = vmatpush1.msra.mxu0 0.0
        %319 = vmatprep.subr.mxu0 0.0
        %320 = vmatpush1.msra.mxu0 0.0
        %321 = vmatprep.subr.mxu0 0.0
        %322 = vmatpush1.msra.mxu0 0.0
        %323 = vmatprep.subr.mxu0 0.0
        %324 = vmatpush1.msra.mxu0 0.0
        %325 = vmatprep.subr.mxu0 0.0
        %326 = vmatpush1.msra.mxu0 0.0
        %327 = vmatprep.subr.mxu0 0.0
        %328 = vmatpush1.msra.mxu0 0.0
        %329 = vmatprep.subr.mxu0 0.0
        %330 = vmatpush1.msra.mxu0 0.0
        %331 = vmatprep.subr.mxu0 0.0
        %332 = vmatpush1.msra.mxu0 0.0
        %333 = vmatprep.subr.mxu0 0.0
        %334 = vmatpush1.msra.mxu0 0.0
        %335 = vmatprep.subr.mxu0 0.0
        %336 = vmatpush1.msra.mxu0 0.0
        %337 = vmatprep.subr.mxu0 0.0
        %338 = vmatpush1.msra.mxu0 0.0
        %339 = vmatprep.subr.mxu0 0.0
        %340 = vmatpush1.msra.mxu0 0.0
        %341 = vmatprep.subr.mxu0 0.0
        %342 = vmatpush1.msra.mxu0 0.0
        %343 = vmatprep.subr.mxu0 0.0
        %344 = vmatpush1.msra.mxu0 0.0
        %345 = vmatprep.subr.mxu0 0.0
        %346 = vmatpush1.msra.mxu0 0.0
        %347 = vmatprep.subr.mxu0 0.0
        %348 = vmatpush1.msra.mxu0 0.0
        %349 = vmatprep.subr.mxu0 0.0
        %350 = vmatpush1.msra.mxu0 0.0
        %351 = vmatprep.subr.mxu0 0.0
        %352 = vmatpush1.msra.mxu0 0.0
        %353 = vmatprep.mubr.f32.mxu0 0.0
        %354 = vmatmul.mubr.f32.gmra.mrb[0].mxu0 %v273
        %v355 = vpop.f32.mrb[0].mxu0
        %v356 = vadd.f32 0.0, %v355
        %v357 = vpop.f32.mrb[0].mxu0
        %358 = vmatprep.mubr.f32.mxu0 0.0
        %359 = vmatmul.mubr.f32.gmra.mrb[0].mxu0 %v275
        %v360 = vpop.f32.mrb[0].mxu0
        %v361 = vadd.f32 0.0, %v360
        %v362 = vpop.f32.mrb[0].mxu0
        %363 = vmatprep.mubr.f32.mxu0 0.0
        %364 = vmatmul.mubr.f32.gmra.mrb[0].mxu0 %v277
        %v365 = vpop.f32.mrb[0].mxu0
        %v366 = vadd.f32 0.0, %v365
        %v367 = vpop.f32.mrb[0].mxu0
        %368 = vmatprep.mubr.f32.mxu0 0.0
        %369 = vmatmul.mubr.f32.gmra.mrb[0].mxu0 %v279
        %v370 = vpop.f32.mrb[0].mxu0
        %v371 = vadd.f32 0.0, %v370
        %v372 = vpop.f32.mrb[0].mxu0
        %373 = vmatprep.mubr.f32.mxu0 0.0
        %374 = vmatmul.mubr.f32.gmra.mrb[0].mxu0 %v281
        %v375 = vpop.f32.mrb[0].mxu0
        %v376 = vadd.f32 0.0, %v375
        %v377 = vpop.f32.mrb[0].mxu0
        %378 = vmatprep.mubr.f32.mxu0 0.0
        %379 = vmatmul.mubr.f32.gmra.mrb[0].mxu0 %v283
        %v380 = vpop.f32.mrb[0].mxu0
        %v381 = vadd.f32 0.0, %v380
        %v382 = vpop.f32.mrb[0].mxu0
        %383 = vmatprep.mubr.f32.mxu0 0.0
        %384 = vmatmul.mubr.f32.gmra.mrb[0].mxu0 %v285
        %v385 = vpop.f32.mrb[0].mxu0
        %v386 = vadd.f32 0.0, %v385
        %v387 = vpop.f32.mrb[0].mxu0
        %388 = vmatprep.mubr.f32.mxu0 0.0
        %389 = vmatmul.mubr.f32.gmra.mrb[0].mxu0 %v287
        %v390 = vpop.f32.mrb[0].mxu0
        %v391 = vadd.f32 0.0, %v390
        %v392 = vpop.f32.mrb[0].mxu0
        %393 = vdwg.mxu0
        %v394 = vsel %vm272, %v210, 0
        %v396 = vsel %vm272, %v212, 0
        %v398 = vsel %vm272, %v214, 0
        %v400 = vsel %vm272, %v216, 0
        %v402 = vsel %vm272, %v218, 0
        %v404 = vsel %vm272, %v220, 0
        %v406 = vsel %vm272, %v222, 0
        %v408 = vsel %vm272, %v224, 0
        %410 = vmatprep.subr.mxu0 0.0
        %411 = vmatpush1.msra.mxu0 %v228
        %412 = vmatprep.subr.mxu0 0.0
        %413 = vmatpush1.msra.mxu0 0.0
        %414 = vmatprep.subr.mxu0 0.0
        %415 = vmatpush1.msra.mxu0 0.0
        %416 = vmatprep.subr.mxu0 0.0
        %417 = vmatpush1.msra.mxu0 0.0
        %418 = vmatprep.subr.mxu0 0.0
        %419 = vmatpush1.msra.mxu0 0.0
        %420 = vmatprep.subr.mxu0 0.0
        %421 = vmatpush1.msra.mxu0 0.0
        %422 = vmatprep.subr.mxu0 0.0
        %423 = vmatpush1.msra.mxu0 0.0
        %424 = vmatprep.subr.mxu0 0.0
        %425 = vmatpush1.msra.mxu0 0.0
        %426 = vmatprep.subr.mxu0 0.0
        %427 = vmatpush1.msra.mxu0 0.0
        %428 = vmatprep.subr.mxu0 0.0
        %429 = vmatpush1.msra.mxu0 0.0
        %430 = vmatprep.subr.mxu0 0.0
        %431 = vmatpush1.msra.mxu0 0.0
        %432 = vmatprep.subr.mxu0 0.0
        %433 = vmatpush1.msra.mxu0 0.0
        %434 = vmatprep.subr.mxu0 0.0
        %435 = vmatpush1.msra.mxu0 0.0
        %436 = vmatprep.subr.mxu0 0.0
        %437 = vmatpush1.msra.mxu0 0.0
        %438 = vmatprep.subr.mxu0 0.0
        %439 = vmatpush1.msra.mxu0 0.0
        %440 = vmatprep.subr.mxu0 0.0
        %441 = vmatpush1.msra.mxu0 0.0
        %442 = vmatprep.subr.mxu0 0.0
        %443 = vmatpush1.msra.mxu0 0.0
        %444 = vmatprep.subr.mxu0 0.0
        %445 = vmatpush1.msra.mxu0 0.0
        %446 = vmatprep.subr.mxu0 0.0
        %447 = vmatpush1.msra.mxu0 0.0
        %448 = vmatprep.subr.mxu0 0.0
        %449 = vmatpush1.msra.mxu0 0.0
        %450 = vmatprep.subr.mxu0 0.0
        %451 = vmatpush1.msra.mxu0 0.0
        %452 = vmatprep.subr.mxu0 0.0
        %453 = vmatpush1.msra.mxu0 0.0
        %454 = vmatprep.subr.mxu0 0.0
        %455 = vmatpush1.msra.mxu0 0.0
        %456 = vmatprep.subr.mxu0 0.0
        %457 = vmatpush1.msra.mxu0 0.0
        %458 = vmatprep.subr.mxu0 0.0
        %459 = vmatpush1.msra.mxu0 0.0
        %460 = vmatprep.subr.mxu0 0.0
        %461 = vmatpush1.msra.mxu0 0.0
        %462 = vmatprep.subr.mxu0 0.0
        %463 = vmatpush1.msra.mxu0 0.0
        %464 = vmatprep.subr.mxu0 0.0
        %465 = vmatpush1.msra.mxu0 0.0
        %466 = vmatprep.subr.mxu0 0.0
        %467 = vmatpush1.msra.mxu0 0.0
        %468 = vmatprep.subr.mxu0 0.0
        %469 = vmatpush1.msra.mxu0 0.0
        %470 = vmatprep.subr.mxu0 0.0
        %471 = vmatpush1.msra.mxu0 0.0
        %472 = vmatprep.subr.mxu0 0.0
        %473 = vmatpush1.msra.mxu0 0.0
        %474 = vmatprep.mubr.f32.mxu0 0.0
        %475 = vmatmul.mubr.f32.gmra.mrb[0].mxu0 %v394
        %v476 = vpop.f32.mrb[0].mxu0
        %v477 = vadd.f32 %v356, %v476
        %v478 = vpop.f32.mrb[0].mxu0
        %479 = vmatprep.mubr.f32.mxu0 0.0
        %480 = vmatmul.mubr.f32.gmra.mrb[0].mxu0 %v396
        %v481 = vpop.f32.mrb[0].mxu0
        %v482 = vadd.f32 %v361, %v481
        %v483 = vpop.f32.mrb[0].mxu0
        %484 = vmatprep.mubr.f32.mxu0 0.0
        %485 = vmatmul.mubr.f32.gmra.mrb[0].mxu0 %v398
        %v486 = vpop.f32.mrb[0].mxu0
        %v487 = vadd.f32 %v366, %v486
        %v488 = vpop.f32.mrb[0].mxu0
        %489 = vmatprep.mubr.f32.mxu0 0.0
        %490 = vmatmul.mubr.f32.gmra.mrb[0].mxu0 %v400
        %v491 = vpop.f32.mrb[0].mxu0
        %v492 = vadd.f32 %v371, %v491
        %v493 = vpop.f32.mrb[0].mxu0
        %494 = vmatprep.mubr.f32.mxu0 0.0
        %495 = vmatmul.mubr.f32.gmra.mrb[0].mxu0 %v402
        %v496 = vpop.f32.mrb[0].mxu0
        %v497 = vadd.f32 %v376, %v496
        %v498 = vpop.f32.mrb[0].mxu0
        %499 = vmatprep.mubr.f32.mxu0 0.0
        %500 = vmatmul.mubr.f32.gmra.mrb[0].mxu0 %v404
        %v501 = vpop.f32.mrb[0].mxu0
        %v502 = vadd.f32 %v381, %v501
        %v503 = vpop.f32.mrb[0].mxu0
        %504 = vmatprep.mubr.f32.mxu0 0.0
        %505 = vmatmul.mubr.f32.gmra.mrb[0].mxu0 %v406
        %v506 = vpop.f32.mrb[0].mxu0
        %v507 = vadd.f32 %v386, %v506
        %v508 = vpop.f32.mrb[0].mxu0
        %509 = vmatprep.mubr.f32.mxu0 0.0
        %510 = vmatmul.mubr.f32.gmra.mrb[0].mxu0 %v408
        %v511 = vpop.f32.mrb[0].mxu0
        %v512 = vadd.f32 %v391, %v511
        %v513 = vpop.f32.mrb[0].mxu0
        %514 = vdwg.mxu0
        %s515 = scalar_lea.vmem %s2, 16
        %v516 = vld [vmem:[%s515] sm:$0xff]
        %v518 = vsel %vm272, %v226, 0
        %520 = vmatprep.subr.mxu0 0.0
        %521 = vmatpush1.msra.mxu0 %v516
        %522 = vmatprep.subr.mxu0 0.0
        %523 = vmatpush1.msra.mxu0 0.0
        %524 = vmatprep.subr.mxu0 0.0
        %525 = vmatpush1.msra.mxu0 0.0
        %526 = vmatprep.subr.mxu0 0.0
        %527 = vmatpush1.msra.mxu0 0.0
        %528 = vmatprep.subr.mxu0 0.0
        %529 = vmatpush1.msra.mxu0 0.0
        %530 = vmatprep.subr.mxu0 0.0
        %531 = vmatpush1.msra.mxu0 0.0
        %532 = vmatprep.subr.mxu0 0.0
        %533 = vmatpush1.msra.mxu0 0.0
        %534 = vmatprep.subr.mxu0 0.0
        %535 = vmatpush1.msra.mxu0 0.0
        %536 = vmatprep.subr.mxu0 0.0
        %537 = vmatpush1.msra.mxu0 0.0
        %538 = vmatprep.subr.mxu0 0.0
        %539 = vmatpush1.msra.mxu0 0.0
        %540 = vmatprep.subr.mxu0 0.0
        %541 = vmatpush1.msra.mxu0 0.0
        %542 = vmatprep.subr.mxu0 0.0
        %543 = vmatpush1.msra.mxu0 0.0
        %544 = vmatprep.subr.mxu0 0.0
        %545 = vmatpush1.msra.mxu0 0.0
        %546 = vmatprep.subr.mxu0 0.0
        %547 = vmatpush1.msra.mxu0 0.0
        %548 = vmatprep.subr.mxu0 0.0
        %549 = vmatpush1.msra.mxu0 0.0
        %550 = vmatprep.subr.mxu0 0.0
        %551 = vmatpush1.msra.mxu0 0.0
        %552 = vmatprep.subr.mxu0 0.0
        %553 = vmatpush1.msra.mxu0 0.0
        %554 = vmatprep.subr.mxu0 0.0
        %555 = vmatpush1.msra.mxu0 0.0
        %556 = vmatprep.subr.mxu0 0.0
        %557 = vmatpush1.msra.mxu0 0.0
        %558 = vmatprep.subr.mxu0 0.0
        %559 = vmatpush1.msra.mxu0 0.0
        %560 = vmatprep.subr.mxu0 0.0
        %561 = vmatpush1.msra.mxu0 0.0
        %562 = vmatprep.subr.mxu0 0.0
        %563 = vmatpush1.msra.mxu0 0.0
        %564 = vmatprep.subr.mxu0 0.0
        %565 = vmatpush1.msra.mxu0 0.0
        %566 = vmatprep.subr.mxu0 0.0
        %567 = vmatpush1.msra.mxu0 0.0
        %568 = vmatprep.subr.mxu0 0.0
        %569 = vmatpush1.msra.mxu0 0.0
        %570 = vmatprep.subr.mxu0 0.0
        %571 = vmatpush1.msra.mxu0 0.0
        %572 = vmatprep.subr.mxu0 0.0
        %573 = vmatpush1.msra.mxu0 0.0
        %574 = vmatprep.subr.mxu0 0.0
        %575 = vmatpush1.msra.mxu0 0.0
        %576 = vmatprep.subr.mxu0 0.0
        %577 = vmatpush1.msra.mxu0 0.0
        %578 = vmatprep.subr.mxu0 0.0
        %579 = vmatpush1.msra.mxu0 0.0
        %580 = vmatprep.subr.mxu0 0.0
        %581 = vmatpush1.msra.mxu0 0.0
        %582 = vmatprep.subr.mxu0 0.0
        %583 = vmatpush1.msra.mxu0 0.0
        %584 = vmatprep.mubr.f32.mxu0 0.0
        %585 = vmatmul.mubr.f32.gmra.mrb[0].mxu0 %v396
        %v586 = vpop.f32.mrb[0].mxu0
        %v587 = vadd.f32 0.0, %v586
        %v588 = vpop.f32.mrb[0].mxu0
        %589 = vmatprep.mubr.f32.mxu0 0.0
        %590 = vmatmul.mubr.f32.gmra.mrb[0].mxu0 %v398
        %v591 = vpop.f32.mrb[0].mxu0
        %v592 = vadd.f32 0.0, %v591
        %v593 = vpop.f32.mrb[0].mxu0
        %594 = vmatprep.mubr.f32.mxu0 0.0
        %595 = vmatmul.mubr.f32.gmra.mrb[0].mxu0 %v400
        %v596 = vpop.f32.mrb[0].mxu0
        %v597 = vadd.f32 0.0, %v596
        %v598 = vpop.f32.mrb[0].mxu0
        %599 = vmatprep.mubr.f32.mxu0 0.0
        %600 = vmatmul.mubr.f32.gmra.mrb[0].mxu0 %v402
        %v601 = vpop.f32.mrb[0].mxu0
        %v602 = vadd.f32 0.0, %v601
        %v603 = vpop.f32.mrb[0].mxu0
        %604 = vmatprep.mubr.f32.mxu0 0.0
        %605 = vmatmul.mubr.f32.gmra.mrb[0].mxu0 %v404
        %v606 = vpop.f32.mrb[0].mxu0
        %v607 = vadd.f32 0.0, %v606
        %v608 = vpop.f32.mrb[0].mxu0
        %609 = vmatprep.mubr.f32.mxu0 0.0
        %610 = vmatmul.mubr.f32.gmra.mrb[0].mxu0 %v406
        %v611 = vpop.f32.mrb[0].mxu0
        %v612 = vadd.f32 0.0, %v611
        %v613 = vpop.f32.mrb[0].mxu0
        %614 = vmatprep.mubr.f32.mxu0 0.0
        %615 = vmatmul.mubr.f32.gmra.mrb[0].mxu0 %v408
        %v616 = vpop.f32.mrb[0].mxu0
        %v617 = vadd.f32 0.0, %v616
        %v618 = vpop.f32.mrb[0].mxu0
        %619 = vmatprep.mubr.f32.mxu0 0.0
        %620 = vmatmul.mubr.f32.gmra.mrb[0].mxu0 %v518
        %v621 = vpop.f32.mrb[0].mxu0
        %v622 = vadd.f32 0.0, %v621
        %v623 = vpop.f32.mrb[0].mxu0
        %624 = vdwg.mxu0
        %v625 = vadd.f32 %v477, %v587
        %v626 = vadd.f32 %v482, %v592
        %v627 = vadd.f32 %v487, %v597
        %v628 = vadd.f32 %v492, %v602
        %v629 = vadd.f32 %v497, %v607
        %v630 = vadd.f32 %v502, %v612
        %v631 = vadd.f32 %v507, %v617
        %v632 = vadd.f32 %v512, %v622
        %v634 = vrot.slane %v226, 1
        %v635 = vrot.slane %v227, 1
        %v636 = vsel %vm245, %v634, %v635
        %s637 = scalar_lea.vmem %s2, 24
        %v638 = vld [vmem:[%s637] sm:$0xff]
        %v639 = vsel %vm272, %v636, 0
        %641 = vmatprep.subr.mxu0 0.0
        %642 = vmatpush1.msra.mxu0 %v638
        %643 = vmatprep.subr.mxu0 0.0
        %644 = vmatpush1.msra.mxu0 0.0
        %645 = vmatprep.subr.mxu0 0.0
        %646 = vmatpush1.msra.mxu0 0.0
        %647 = vmatprep.subr.mxu0 0.0
        %648 = vmatpush1.msra.mxu0 0.0
        %649 = vmatprep.subr.mxu0 0.0
        %650 = vmatpush1.msra.mxu0 0.0
        %651 = vmatprep.subr.mxu0 0.0
        %652 = vmatpush1.msra.mxu0 0.0
        %653 = vmatprep.subr.mxu0 0.0
        %654 = vmatpush1.msra.mxu0 0.0
        %655 = vmatprep.subr.mxu0 0.0
        %656 = vmatpush1.msra.mxu0 0.0
        %657 = vmatprep.subr.mxu0 0.0
        %658 = vmatpush1.msra.mxu0 0.0
        %659 = vmatprep.subr.mxu0 0.0
        %660 = vmatpush1.msra.mxu0 0.0
        %661 = vmatprep.subr.mxu0 0.0
        %662 = vmatpush1.msra.mxu0 0.0
        %663 = vmatprep.subr.mxu0 0.0
        %664 = vmatpush1.msra.mxu0 0.0
        %665 = vmatprep.subr.mxu0 0.0
        %666 = vmatpush1.msra.mxu0 0.0
        %667 = vmatprep.subr.mxu0 0.0
        %668 = vmatpush1.msra.mxu0 0.0
        %669 = vmatprep.subr.mxu0 0.0
        %670 = vmatpush1.msra.mxu0 0.0
        %671 = vmatprep.subr.mxu0 0.0
        %672 = vmatpush1.msra.mxu0 0.0
        %673 = vmatprep.subr.mxu0 0.0
        %674 = vmatpush1.msra.mxu0 0.0
        %675 = vmatprep.subr.mxu0 0.0
        %676 = vmatpush1.msra.mxu0 0.0
        %677 = vmatprep.subr.mxu0 0.0
        %678 = vmatpush1.msra.mxu0 0.0
        %679 = vmatprep.subr.mxu0 0.0
        %680 = vmatpush1.msra.mxu0 0.0
        %681 = vmatprep.subr.mxu0 0.0
        %682 = vmatpush1.msra.mxu0 0.0
        %683 = vmatprep.subr.mxu0 0.0
        %684 = vmatpush1.msra.mxu0 0.0
        %685 = vmatprep.subr.mxu0 0.0
        %686 = vmatpush1.msra.mxu0 0.0
        %687 = vmatprep.subr.mxu0 0.0
        %688 = vmatpush1.msra.mxu0 0.0
        %689 = vmatprep.subr.mxu0 0.0
        %690 = vmatpush1.msra.mxu0 0.0
        %691 = vmatprep.subr.mxu0 0.0
        %692 = vmatpush1.msra.mxu0 0.0
        %693 = vmatprep.subr.mxu0 0.0
        %694 = vmatpush1.msra.mxu0 0.0
        %695 = vmatprep.subr.mxu0 0.0
        %696 = vmatpush1.msra.mxu0 0.0
        %697 = vmatprep.subr.mxu0 0.0
        %698 = vmatpush1.msra.mxu0 0.0
        %699 = vmatprep.subr.mxu0 0.0
        %700 = vmatpush1.msra.mxu0 0.0
        %701 = vmatprep.subr.mxu0 0.0
        %702 = vmatpush1.msra.mxu0 0.0
        %703 = vmatprep.subr.mxu0 0.0
        %704 = vmatpush1.msra.mxu0 0.0
        %705 = vmatprep.mubr.f32.mxu0 0.0
        %706 = vmatmul.mubr.f32.gmra.mrb[0].mxu0 %v275
        %v707 = vpop.f32.mrb[0].mxu0
        %v708 = vadd.f32 0.0, %v707
        %v709 = vpop.f32.mrb[0].mxu0
        %710 = vmatprep.mubr.f32.mxu0 0.0
        %711 = vmatmul.mubr.f32.gmra.mrb[0].mxu0 %v277
        %v712 = vpop.f32.mrb[0].mxu0
        %v713 = vadd.f32 0.0, %v712
        %v714 = vpop.f32.mrb[0].mxu0
        %715 = vmatprep.mubr.f32.mxu0 0.0
        %716 = vmatmul.mubr.f32.gmra.mrb[0].mxu0 %v279
        %v717 = vpop.f32.mrb[0].mxu0
        %v718 = vadd.f32 0.0, %v717
        %v719 = vpop.f32.mrb[0].mxu0
        %720 = vmatprep.mubr.f32.mxu0 0.0
        %721 = vmatmul.mubr.f32.gmra.mrb[0].mxu0 %v281
        %v722 = vpop.f32.mrb[0].mxu0
        %v723 = vadd.f32 0.0, %v722
        %v724 = vpop.f32.mrb[0].mxu0
        %725 = vmatprep.mubr.f32.mxu0 0.0
        %726 = vmatmul.mubr.f32.gmra.mrb[0].mxu0 %v283
        %v727 = vpop.f32.mrb[0].mxu0
        %v728 = vadd.f32 0.0, %v727
        %v729 = vpop.f32.mrb[0].mxu0
        %730 = vmatprep.mubr.f32.mxu0 0.0
        %731 = vmatmul.mubr.f32.gmra.mrb[0].mxu0 %v285
        %v732 = vpop.f32.mrb[0].mxu0
        %v733 = vadd.f32 0.0, %v732
        %v734 = vpop.f32.mrb[0].mxu0
        %735 = vmatprep.mubr.f32.mxu0 0.0
        %736 = vmatmul.mubr.f32.gmra.mrb[0].mxu0 %v287
        %v737 = vpop.f32.mrb[0].mxu0
        %v738 = vadd.f32 0.0, %v737
        %v739 = vpop.f32.mrb[0].mxu0
        %740 = vmatprep.mubr.f32.mxu0 0.0
        %741 = vmatmul.mubr.f32.gmra.mrb[0].mxu0 %v639
        %v742 = vpop.f32.mrb[0].mxu0
        %v743 = vadd.f32 0.0, %v742
        %v744 = vpop.f32.mrb[0].mxu0
        %745 = vdwg.mxu0
        %v746 = vadd.f32 %v625, %v708
        %v747 = vadd.f32 %v626, %v713
        %v748 = vadd.f32 %v627, %v718
        %v749 = vadd.f32 %v628, %v723
        %v750 = vadd.f32 %v629, %v728
        %v751 = vadd.f32 %v630, %v733
        %v752 = vadd.f32 %v631, %v738
        %v753 = vadd.f32 %v632, %v743
        %vm754 = vcmask 130048
        %v755 = vsel %vm754, %v746, 0.0
        %v756 = vsel %vm754, %v747, 0.0
        %v757 = vadd.f32 %v755, %v756
        %v758 = vsel %vm754, %v748, 0.0
        %v759 = vadd.f32 %v757, %v758
        %v760 = vsel %vm754, %v749, 0.0
        %v761 = vadd.f32 %v759, %v760
        %v762 = vsel %vm754, %v750, 0.0
        %v763 = vadd.f32 %v761, %v762
        %v764 = vsel %vm754, %v751, 0.0
        %v765 = vadd.f32 %v763, %v764
        %v766 = vsel %vm754, %v752, 0.0
        %v767 = vadd.f32 %v765, %v766
        %v768 = vsel %vm754, %v753, 0.0
        %v769 = vadd.f32 %v767, %v768
        %v770 = vrot.slane %v769, 4
        %v771 = vadd.f32 %v769, %v770
        %v772 = vrot.slane %v771, 2
        %v773 = vadd.f32 %v771, %v772
        %v774 = vrot.slane %v773, 1
        %v775 = vadd.f32 %v773, %v774
        %v776 = vadd.f32 %v775, 0.0
        %v777 = vmul.f32 %v746, %v746
        %v778 = vmul.f32 %v747, %v747
        %v779 = vmul.f32 %v748, %v748
        %v780 = vmul.f32 %v749, %v749
        %v781 = vmul.f32 %v750, %v750
        %v782 = vmul.f32 %v751, %v751
        %v783 = vmul.f32 %v752, %v752
        %v784 = vmul.f32 %v753, %v753
        %v785 = vsel %vm754, %v777, 0.0
        %v786 = vsel %vm754, %v778, 0.0
        %v787 = vadd.f32 %v785, %v786
        %v788 = vsel %vm754, %v779, 0.0
        %v789 = vadd.f32 %v787, %v788
        %v790 = vsel %vm754, %v780, 0.0
        %v791 = vadd.f32 %v789, %v790
        %v792 = vsel %vm754, %v781, 0.0
        %v793 = vadd.f32 %v791, %v792
        %v794 = vsel %vm754, %v782, 0.0
        %v795 = vadd.f32 %v793, %v794
        %v796 = vsel %vm754, %v783, 0.0
        %v797 = vadd.f32 %v795, %v796
        %v798 = vsel %vm754, %v784, 0.0
        %v799 = vadd.f32 %v797, %v798
        %v800 = vrot.slane %v799, 4
        %v801 = vadd.f32 %v799, %v800
        %v802 = vrot.slane %v801, 2
        %v803 = vadd.f32 %v801, %v802
        %v804 = vrot.slane %v803, 1
        %v805 = vadd.f32 %v803, %v804
        %v806 = vadd.f32 %v805, 0.0
        %v808 = vlaneseq
        %v809 = vshrl.u32 %v808, 7
        %v810 = vsub.s32 0, %v809
        %v811 = vrot.slane %v209, %v810
        %v813 = vadd.f32 %v746, %v811
        %v814 = vadd.f32 %v747, %v811
        %v815 = vadd.f32 %v748, %v811
        %v816 = vadd.f32 %v749, %v811
        %v817 = vadd.f32 %v750, %v811
        %v818 = vadd.f32 %v751, %v811
        %v819 = vadd.f32 %v752, %v811
        %v820 = vadd.f32 %v753, %v811
        %821 = vst.msk [vmem:[%s208] sm:$0xff] %vm754, %v813
        %822 = vst.msk [vmem:[%s208 + $0x8] sm:$0xff] %vm754, %v814
        %823 = vst.msk [vmem:[%s208 + $0x10] sm:$0xff] %vm754, %v815
        %824 = vst.msk [vmem:[%s208 + $0x18] sm:$0xff] %vm754, %v816
        %825 = vst.msk [vmem:[%s208 + $0x20] sm:$0xff] %vm754, %v817
        %826 = vst.msk [vmem:[%s208 + $0x28] sm:$0xff] %vm754, %v818
        %827 = vst.msk [vmem:[%s208 + $0x30] sm:$0xff] %vm754, %v819
        %828 = vst.msk [vmem:[%s208 + $0x38] sm:$0xff] %vm754, %v820
        %vm829 = vcmask 1040384
        %v830 = vsel %vm829, %v776, %v806
        %vm831 = vcmask 123904
        %832 = vst.msk [vmem:[%s198] sm:$0x3] %vm831, %v830
        %p833 = scmp.lt.s32.totalorder %s19, 1
        %s834 = scalar_select %p833, %s19, 1
        %s835 = smul.addr %s834, 8
        %s836 = smul.addr %s835, 8
        %s837 = scalar_lea.vmem %s3, %s836
        %s838 = sand.u32 %s121, 1
        %s839 = scalar_lea.sflag [#allocation3], %s838
        %s840 = sand.u32 %s121, 1
        %s841 = smul.addr %s840, 2
        %s842 = scalar_lea.vmem [#allocation2], %s841
        // Predicated region
        $region33: #{forward.7} parent=31 // pred_check
          %p843 = pneg %p105
        $region34: #{forward.7} parent=31 // pred_check_branch
          %845 = sbr.rel (%p843) target = $region36
        $region35: #{forward.7} parent=31 // pred_region
          _
        $region36: #{forward.7} parent=31 // pred_fallthru
          _
        // Predicated region
        $region37: #{forward.7} parent=31 // pred_check
          %p846 = pneg %p131
        $region38: #{forward.7} parent=31 // pred_check_branch
          %848 = sbr.rel (%p846) target = $region40
        $region39: #{forward.7} parent=31 // pred_region
          %s850 = ssub.s32 32, 32
          %851 = vsyncadd %s839, %s850
          %s852 = smul.addr %s19, 32
          %s853 = scalar_lea.hbm %s4, %s852
          %s855 = sshll.u32 %s842, 4
          %s856 = int_to_ptr.vmem [resolvable:$true] %s855
          %858 = dma.vmem_to_hbm [thread:$0]  %s856, 32, %s853, %s839
        $region40: #{forward.7} parent=31 // pred_fallthru
          _
      $region32: #{forward.7} parent=5 // pred_fallthru
        _
      %p859 = scmp.le.s32.totalorder 2, %s14
      // Predicated region
      $region41: #{forward.7} parent=5 // pred_check
        %p860 = pneg %p859
      $region42: #{forward.7} parent=5 // pred_check_branch
        %862 = sbr.rel (%p860) target = $region44
      $region43: #{forward.7} parent=5 // pred_region
        %s863 = ssub.s32 %s14, 2
        // Predicated region
        $region45: #{forward.7} parent=43 // pred_check
          %p864 = pneg %p111
        $region46: #{forward.7} parent=43 // pred_check_branch
          %866 = sbr.rel (%p864) target = $region48
        $region47: #{forward.7} parent=43 // pred_region
          %p867 = scmp.lt.s32.totalorder %s20, 1
          %s868 = scalar_select %p867, %s20, 1
          %s869 = smul.addr %s868, 8
          %s870 = smul.addr %s869, 8
          %s871 = scalar_lea.vmem %s3, %s870
        $region48: #{forward.7} parent=43 // pred_fallthru
          _
        // Predicated region
        $region49: #{forward.7} parent=43 // pred_check
          %p872 = pneg %p137
        $region50: #{forward.7} parent=43 // pred_check_branch
          %874 = sbr.rel (%p872) target = $region52
        $region51: #{forward.7} parent=43 // pred_region
          %s875 = sand.u32 %s122, 1
          %s876 = scalar_lea.sflag [#allocation3], %s875
          %s877 = sand.u32 %s122, 1
          %s878 = smul.addr %s877, 2
          %s879 = scalar_lea.vmem [#allocation2], %s878
          %880 = dma.done %s876, 32
        $region52: #{forward.7} parent=43 // pred_fallthru
          _
      $region44: #{forward.7} parent=5 // pred_fallthru
        _
    $region6: #{forward.7} parent=1 // loop_footer
      %s18 = sadd.s32 1, %s14
    $region7: #{forward.7} parent=1 // loop_footer_branch
      %13 = sbr.rel target = $region3
    $region8: #{forward.7} parent=1 // loop_exit
      _
    %881 = vsyncpa [#allocation3], 1
    %s882 = scalar_lea.sflag [#allocation3], 1
    %883 = vsyncpa %s882, 1

</llo_original>
